<compile_context>
chip_gen: v5e
topology: v5e:2x2
jax: 0.10.0
libtpu: 0.0.40
codegen_flags: <defaults>
</compile_context>

<pallas_src>
import numpy as np
import jax
import jax.numpy as jnp
from jax import lax
from jax.experimental import pallas as pl
from jax.experimental.pallas import tpu as pltpu


CFG = dict(image_size=16, patch_size=4, channels=3, hidden=32,
           heads=4, intermediate=64, layers=2)
SELECT_LAYER = -2          # HF hidden_states index (second-to-last)
LN_EPS = 1e-5
LANE = 128

# Interpolation targets scaled down 8x vs the real model (128/64/32/16 px).
RESIZE_TARGETS = {
    "stem": (16, 16), "res2": (16, 16), "res3": (8, 8),
    "res4": (4, 4), "res5": (2, 2), "clip_vis_dense": (2, 2),
}
UNIQ_TARGETS = []
for _t in RESIZE_TARGETS.values():
    if _t not in UNIQ_TARGETS:
        UNIQ_TARGETS.append(_t)


# ----------------------------------------------------------------------------
# In-kernel helpers (trace-time; run inside the Pallas kernel)
# ----------------------------------------------------------------------------

def _ln(x, g, b, eps=LN_EPS):
    # Single-pass variance: E[x^2] - mean^2  (one XLU reduction fewer).
    mu = jnp.mean(x, axis=-1, keepdims=True)
    ms = jnp.mean(x * x, axis=-1, keepdims=True)
    var = ms - mu * mu
    return (x - mu) * lax.rsqrt(var + eps) * g + b


def _quick_gelu(x):
    return x * jax.nn.sigmoid(1.702 * x)


# ----------------------------------------------------------------------------
# Bilinear-interpolation Kronecker matrix (PyTorch align_corners=False weights)
# ----------------------------------------------------------------------------

def _interp_matrix(out_size, in_size):
    M = np.zeros((out_size, in_size), dtype=np.float32)
    scale = in_size / out_size
    for i in range(out_size):
        src = max((i + 0.5) * scale - 0.5, 0.0)
        i0 = min(int(np.floor(src)), in_size - 1)
        i1 = min(i0 + 1, in_size - 1)
        lam = min(max(src - i0, 0.0), 1.0)
        M[i, i0] += 1.0 - lam
        M[i, i1] += lam
    return M


def _kron_interp(out_hw, in_hw):
    A = _interp_matrix(out_hw[0], in_hw[0])      # (Ho, H)
    Bm = _interp_matrix(out_hw[1], in_hw[1])     # (Wo, W)
    return np.kron(A, Bm).T                      # (H*W, Ho*Wo)


def _build_kmat(in_hw, targets):
    mats = [_kron_interp(t, in_hw) for t in targets]
    K = np.concatenate(mats, axis=1)
    pad = (-K.shape[1]) % LANE                   # lane-dense output (mult of 128)
    if pad:
        K = np.concatenate([K, np.zeros((K.shape[0], pad), np.float32)], axis=1)
    return K


# ----------------------------------------------------------------------------
# The fused forward kernel: embed + L layers + select + resize, one grid step / image
# ----------------------------------------------------------------------------

def _make_fused_kernel(cfg, num_layers, select_layer):
    D = cfg["hidden"]
    NH = cfg["heads"]
    DH = D // NH

    def kernel(patches_ref, wpe_ref, cls_ref, pos_ref, preg_ref, preb_ref,
               ln1g_ref, ln1b_ref, wqkv_ref, bqkv_ref, wo_ref, bo_ref,
               ln2g_ref, ln2b_ref, w1_ref, b1_ref, w2_ref, b2_ref,
               kmat_ref, feat_ref, rz_ref, emb_s, ctx_s):
        # ---- patch-embed matmul (bf16 MXU operands, f32 accumulate)
        pe = jnp.dot(patches_ref[0].astype(jnp.bfloat16), wpe_ref[...],
                     preferred_element_type=jnp.float32)            # (nP, D)

        # ---- CLS + position embeddings: row-range stores, no concat copy
        pos = pos_ref[...]                                          # (S, D)
        emb_s[0:1, :] = cls_ref[...] + pos[0:1, :]
        emb_s[1:, :] = pe + pos[1:, :]

        # ---- pre-layernorm (CLIPVisionTransformer.pre_layrnorm)
        h = _ln(emb_s[...], preg_ref[...], preb_ref[...])           # (S, D) f32

        hiddens = [h]
        for l in range(num_layers):
            # --- self-attention block (scale already folded into wq/bq)
            hn = _ln(h, ln1g_ref[l], ln1b_ref[l])
            qkv = jnp.dot(hn.astype(jnp.bfloat16), wqkv_ref[l],
                          preferred_element_type=jnp.float32) + bqkv_ref[l]
            for hh in range(NH):
                q = qkv[:, hh * DH:(hh + 1) * DH]
                k = qkv[:, D + hh * DH:D + (hh + 1) * DH]
                v = qkv[:, 2 * D + hh * DH:2 * D + (hh + 1) * DH]
                s = lax.dot_general(q.astype(jnp.bfloat16), k.astype(jnp.bfloat16),
                                    (((1,), (1,)), ((), ())),
                                    preferred_element_type=jnp.float32)   # (S, S)
                s = s - jnp.max(s, axis=-1, keepdims=True)
                p = jnp.exp(s)
                p = p * pl.reciprocal(jnp.sum(p, axis=-1, keepdims=True),
                                      approx=True)
                # write this head's context into its column slice (no concat)
                ctx_s[:, hh * DH:(hh + 1) * DH] = jnp.dot(
                    p.astype(jnp.bfloat16), v.astype(jnp.bfloat16),
                    preferred_element_type=jnp.float32)
            attn = jnp.dot(ctx_s[...].astype(jnp.bfloat16), wo_ref[l],
                           preferred_element_type=jnp.float32) + bo_ref[l]
            h = h + attn

            # --- MLP block (quick-gelu, f32 elementwise)
            hn2 = _ln(h, ln2g_ref[l], ln2b_ref[l])
            m = jnp.dot(hn2.astype(jnp.bfloat16), w1_ref[l],
                        preferred_element_type=jnp.float32) + b1_ref[l]
            m = _quick_gelu(m)
            h = h + jnp.dot(m.astype(jnp.bfloat16), w2_ref[l],
                            preferred_element_type=jnp.float32) + b2_ref[l]
            hiddens.append(h)

        # ---- feature select: hidden_states[-2], drop CLS (select_feature='patch')
        feats = hiddens[select_layer][1:, :]                        # (nP, D) f32
        feat_ref[0] = feats.astype(feat_ref.dtype)

        # ---- all bilinear resizes: (D, nP) @ (nP, sum Ho*Wo padded to 128-mult)
        #      (the permute(0,2,1) of the reference is this in-VMEM transpose)
        rz_ref[0] = jnp.dot(feats.T.astype(jnp.bfloat16), kmat_ref[...],
                            preferred_element_type=jnp.float32)     # (D, TOTpad)

    return kernel


# ----------------------------------------------------------------------------
# Parameters
# ----------------------------------------------------------------------------

def init_params(key, cfg=CFG):
    D, I, C, p = cfg["hidden"], cfg["intermediate"], cfg["channels"], cfg["patch_size"]
    nP = (cfg["image_size"] // p) ** 2
    ks = iter(jax.random.split(key, 64))
    n = lambda shape: (0.02 * jax.random.normal(next(ks), shape)).astype(jnp.float32)
    params = {
        "patch_w": n((D, C, p, p)),                 # conv weight, no bias (CLIP)
        "class_emb": n((D,)),
        "pos_emb": n((nP + 1, D)),
        "pre_ln_g": jnp.ones((D,), jnp.float32), "pre_ln_b": jnp.zeros((D,), jnp.float32),
        "layers": [],
    }
    for _ in range(cfg["layers"]):
        params["layers"].append({
            "ln1_g": jnp.ones((D,), jnp.float32), "ln1_b": jnp.zeros((D,), jnp.float32),
            "wq": n((D, D)), "bq": jnp.zeros((D,), jnp.float32),
            "wk": n((D, D)), "bk": jnp.zeros((D,), jnp.float32),
            "wv": n((D, D)), "bv": jnp.zeros((D,), jnp.float32),
            "wo": n((D, D)), "bo": jnp.zeros((D,), jnp.float32),
            "ln2_g": jnp.ones((D,), jnp.float32), "ln2_b": jnp.zeros((D,), jnp.float32),
            "w1": n((D, I)), "b1": jnp.zeros((I,), jnp.float32),
            "w2": n((I, D)), "b2": jnp.zeros((D,), jnp.float32),
        })
    return params


def prepare_params(params, cfg=CFG):
    """One-time prep: fuse QKV + fold attention scale into wq/bq, stack the
    per-layer weights along a leading layer axis, cast MXU weights to bf16,
    reshape 1-D params to (1, N) rows, and build the lane-padded resize matrix."""
    D, I = cfg["hidden"], cfg["intermediate"]
    nh = cfg["heads"]
    dh = D // nh
    scale = dh ** -0.5
    side = cfg["image_size"] // cfg["patch_size"]
    Ls = params["layers"]

    def stk(fn, dtype=jnp.float32):
        return jnp.stack([fn(lp) for lp in Ls]).astype(dtype)

    return {
        # bf16 MXU weights
        "patch_w2d": params["patch_w"].reshape(D, -1).T.astype(jnp.bfloat16),  # (C*p*p, D)
        "w_qkv": stk(lambda lp: jnp.concatenate(
            [lp["wq"] * scale, lp["wk"], lp["wv"]], axis=1), jnp.bfloat16),    # (L, D, 3D)
        "wo": stk(lambda lp: lp["wo"], jnp.bfloat16),                          # (L, D, D)
        "w1": stk(lambda lp: lp["w1"], jnp.bfloat16),                          # (L, D, I)
        "w2": stk(lambda lp: lp["w2"], jnp.bfloat16),                          # (L, I, D)
        # f32 everything that feeds the VPU/EUP
        "class_emb": params["class_emb"].reshape(1, D).astype(jnp.float32),
        "pos_emb": params["pos_emb"].astype(jnp.float32),
        "pre_ln_g": params["pre_ln_g"].reshape(1, D).astype(jnp.float32),
        "pre_ln_b": params["pre_ln_b"].reshape(1, D).astype(jnp.float32),
        "ln1_g": stk(lambda lp: lp["ln1_g"].reshape(1, D)),
        "ln1_b": stk(lambda lp: lp["ln1_b"].reshape(1, D)),
        "b_qkv": stk(lambda lp: jnp.concatenate(
            [lp["bq"] * scale, lp["bk"], lp["bv"]]).reshape(1, 3 * D)),
        "bo": stk(lambda lp: lp["bo"].reshape(1, D)),
        "ln2_g": stk(lambda lp: lp["ln2_g"].reshape(1, D)),
        "ln2_b": stk(lambda lp: lp["ln2_b"].reshape(1, D)),
        "b1": stk(lambda lp: lp["b1"].reshape(1, I)),
        "b2": stk(lambda lp: lp["b2"].reshape(1, D)),
        # fused (deduped) resize Kronecker matrix, columns padded to mult of 128
        "kmat": jnp.asarray(_build_kmat((side, side), UNIQ_TARGETS),
                            dtype=jnp.bfloat16),
    }


# ----------------------------------------------------------------------------
# Forward pass (mirrors CLIPVisionTower.forward for a batched input)
# ----------------------------------------------------------------------------

def clip_vision_tower_forward(images, fparams, cfg=CFG):
    """images: (B, C, H, W) NCHW. Returns (image_features, image_features_dict)."""
    B, C, H, W = images.shape
    p = cfg["patch_size"]
    D = cfg["hidden"]
    L = cfg["layers"]
    gh, gw = H // p, W // p
    nP = gh * gw
    S = nP + 1

    # Patch-embedding conv (stride=patch, no pad) == matmul over flattened patches.
    patches = images.reshape(B, C, gh, p, gw, p).transpose(0, 2, 4, 1, 3, 5)
    patches = patches.reshape(B, nP, C * p * p).astype(jnp.float32)

    kmat = fparams["kmat"]
    TOT = kmat.shape[1]                     # padded, multiple of 128

    weights = (fparams["patch_w2d"], fparams["class_emb"], fparams["pos_emb"],
               fparams["pre_ln_g"], fparams["pre_ln_b"],
               fparams["ln1_g"], fparams["ln1_b"], fparams["w_qkv"], fparams["b_qkv"],
               fparams["wo"], fparams["bo"], fparams["ln2_g"], fparams["ln2_b"],
               fparams["w1"], fparams["b1"], fparams["w2"], fparams["b2"],
               kmat)

    def _const_spec(a):
        nd = a.ndim
        # TODO(synk): pipeline_mode=pl.Buffered(1) here once weight VMEM matters
        #             at real (1024-dim) scale; negligible at this size.
        return pl.BlockSpec(a.shape, lambda i, _nd=nd: (0,) * _nd)

    feat_out, rz_out = pl.pallas_call(
        _make_fused_kernel(cfg, L, SELECT_LAYER),
        grid=(B,),
        in_specs=[pl.BlockSpec((1, nP, C * p * p), lambda i: (i, 0, 0))]
                 + [_const_spec(a) for a in weights],
        out_specs=(pl.BlockSpec((1, nP, D), lambda i: (i, 0, 0)),
                   pl.BlockSpec((1, D, TOT), lambda i: (i, 0, 0))),
        out_shape=(jax.ShapeDtypeStruct((B, nP, D), jnp.float32),
                   jax.ShapeDtypeStruct((B, D, TOT), jnp.float32)),
        scratch_shapes=[pltpu.VMEM((S, D), jnp.float32),     # embedding rows
                        pltpu.VMEM((S, D), jnp.float32)],    # per-head context
        compiler_params=pltpu.CompilerParams(
            dimension_semantics=("parallel",)),
    )(patches, *weights)

    raw_features = feat_out.astype(images.dtype)              # (B, nP, D) = res6

    # Unpack the concatenated (deduped) resize columns; drop the lane padding.
    results = {}
    off = 0
    for t in UNIQ_TARGETS:
        n = t[0] * t[1]
        results[t] = rz_out[:, :, off:off + n].reshape(B, D, t[0], t[1])
        off += n

    image_features_dict = {k: results[t] for k, t in RESIZE_TARGETS.items()}
    image_features_dict["res6"] = raw_features
    image_features = image_features_dict["res6"]
    return image_features, image_features_dict


# ----------------------------------------------------------------------------

if __name__ == "__main__":
    key = jax.random.PRNGKey(0)
    k_img, k_par = jax.random.split(key)

    B = 2
    images = jax.random.normal(
        k_img, (B, CFG["channels"], CFG["image_size"], CFG["image_size"]),
        dtype=jnp.float32)                                    # NCHW, like PyTorch

    params = init_params(k_par)
    fparams = prepare_params(params)

    fwd = jax.jit(clip_vision_tower_forward)
    image_features, feat_dict = fwd(images, fparams)

    jax.block_until_ready(image_features)
    for v in feat_dict.values():
        jax.block_until_ready(v)

    # Shape / sanity checks (16 patches, hidden=32).
    assert image_features.shape == (B, 16, CFG["hidden"])
    assert feat_dict["stem"].shape == (B, CFG["hidden"], 16, 16)
    assert feat_dict["res2"].shape == (B, CFG["hidden"], 16, 16)
    assert feat_dict["res3"].shape == (B, CFG["hidden"], 8, 8)
    assert feat_dict["res4"].shape == (B, CFG["hidden"], 4, 4)
    assert feat_dict["res5"].shape == (B, CFG["hidden"], 2, 2)
    assert feat_dict["clip_vis_dense"].shape == (B, CFG["hidden"], 2, 2)
    assert np.isfinite(np.asarray(image_features)).all()
    assert np.isfinite(np.asarray(feat_dict["stem"])).all()
    assert np.isfinite(np.asarray(feat_dict["res5"])).all()

    print("KERNEL_OK")
</pallas_src>

<mosaic_0001>
module attributes {stable_mosaic.version = 11 : i64} {
  func.func @kernel(%arg0: i32, %arg1: memref<1x16x48xf32, #tpu.memory_space<vmem>>, %arg2: memref<48x32xbf16, #tpu.memory_space<vmem>>, %arg3: memref<1x32xf32, #tpu.memory_space<vmem>>, %arg4: memref<17x32xf32, #tpu.memory_space<vmem>>, %arg5: memref<1x32xf32, #tpu.memory_space<vmem>>, %arg6: memref<1x32xf32, #tpu.memory_space<vmem>>, %arg7: memref<2x1x32xf32, #tpu.memory_space<vmem>>, %arg8: memref<2x1x32xf32, #tpu.memory_space<vmem>>, %arg9: memref<2x32x96xbf16, #tpu.memory_space<vmem>>, %arg10: memref<2x1x96xf32, #tpu.memory_space<vmem>>, %arg11: memref<2x32x32xbf16, #tpu.memory_space<vmem>>, %arg12: memref<2x1x32xf32, #tpu.memory_space<vmem>>, %arg13: memref<2x1x32xf32, #tpu.memory_space<vmem>>, %arg14: memref<2x1x32xf32, #tpu.memory_space<vmem>>, %arg15: memref<2x32x64xbf16, #tpu.memory_space<vmem>>, %arg16: memref<2x1x64xf32, #tpu.memory_space<vmem>>, %arg17: memref<2x64x32xbf16, #tpu.memory_space<vmem>>, %arg18: memref<2x1x32xf32, #tpu.memory_space<vmem>>, %arg19: memref<16x384xbf16, #tpu.memory_space<vmem>>, %arg20: memref<1x16x32xf32, #tpu.memory_space<vmem>>, %arg21: memref<1x32x384xf32, #tpu.memory_space<vmem>>, %arg22: memref<17x32xf32, #tpu.memory_space<vmem>>, %arg23: memref<17x32xf32, #tpu.memory_space<vmem>>) attributes {dimension_semantics = [#tpu.dimension_semantics<parallel>], iteration_bounds = array<i64: 2>, scalar_prefetch = 0 : i64, scratch_operands = 2 : i64, tpu.core_type = #tpu.core_type<tc>, window_params = [{transform_indices = @transform_0, window_bounds = array<i64: 1, 16, 48>}, {pipeline_mode = #tpu.pipeline_mode<synchronous>, transform_indices = @transform_1, window_bounds = array<i64: 48, 32>}, {pipeline_mode = #tpu.pipeline_mode<synchronous>, transform_indices = @transform_2, window_bounds = array<i64: 1, 32>}, {pipeline_mode = #tpu.pipeline_mode<synchronous>, transform_indices = @transform_3, window_bounds = array<i64: 17, 32>}, {pipeline_mode = #tpu.pipeline_mode<synchronous>, transform_indices = @transform_4, window_bounds = array<i64: 1, 32>}, {pipeline_mode = #tpu.pipeline_mode<synchronous>, transform_indices = @transform_5, window_bounds = array<i64: 1, 32>}, {pipeline_mode = #tpu.pipeline_mode<synchronous>, transform_indices = @transform_6, window_bounds = array<i64: 2, 1, 32>}, {pipeline_mode = #tpu.pipeline_mode<synchronous>, transform_indices = @transform_7, window_bounds = array<i64: 2, 1, 32>}, {pipeline_mode = #tpu.pipeline_mode<synchronous>, transform_indices = @transform_8, window_bounds = array<i64: 2, 32, 96>}, {pipeline_mode = #tpu.pipeline_mode<synchronous>, transform_indices = @transform_9, window_bounds = array<i64: 2, 1, 96>}, {pipeline_mode = #tpu.pipeline_mode<synchronous>, transform_indices = @transform_10, window_bounds = array<i64: 2, 32, 32>}, {pipeline_mode = #tpu.pipeline_mode<synchronous>, transform_indices = @transform_11, window_bounds = array<i64: 2, 1, 32>}, {pipeline_mode = #tpu.pipeline_mode<synchronous>, transform_indices = @transform_12, window_bounds = array<i64: 2, 1, 32>}, {pipeline_mode = #tpu.pipeline_mode<synchronous>, transform_indices = @transform_13, window_bounds = array<i64: 2, 1, 32>}, {pipeline_mode = #tpu.pipeline_mode<synchronous>, transform_indices = @transform_14, window_bounds = array<i64: 2, 32, 64>}, {pipeline_mode = #tpu.pipeline_mode<synchronous>, transform_indices = @transform_15, window_bounds = array<i64: 2, 1, 64>}, {pipeline_mode = #tpu.pipeline_mode<synchronous>, transform_indices = @transform_16, window_bounds = array<i64: 2, 64, 32>}, {pipeline_mode = #tpu.pipeline_mode<synchronous>, transform_indices = @transform_17, window_bounds = array<i64: 2, 1, 32>}, {pipeline_mode = #tpu.pipeline_mode<synchronous>, transform_indices = @transform_18, window_bounds = array<i64: 16, 384>}, {transform_indices = @transform_19, window_bounds = array<i64: 1, 16, 32>}, {transform_indices = @transform_20, window_bounds = array<i64: 1, 32, 384>}]} {
    %c0 = arith.constant 0 : index
    %c0_0 = arith.constant 0 : index
    %c0_1 = arith.constant 0 : index
    %0 = vector.load %arg1[%c0, %c0_0, %c0_1] : memref<1x16x48xf32, #tpu.memory_space<vmem>>, vector<1x16x48xf32>
    %1 = vector.shape_cast %0 : vector<1x16x48xf32> to vector<16x48xf32>
    %2 = arith.truncf %1 : vector<16x48xf32> to vector<16x48xbf16>
    %c0_2 = arith.constant 0 : index
    %c0_3 = arith.constant 0 : index
    %3 = vector.load %arg2[%c0_2, %c0_3] : memref<48x32xbf16, #tpu.memory_space<vmem>>, vector<48x32xbf16>
    %cst = arith.constant dense<0.000000e+00> : vector<16x32xf32>
    %4 = tpu.matmul %2, %3, %cst {dimension_numbers = #tpu.dot_dimension_numbers<[1], [0], [0], [1], [0, 0, 1, 1], [], []>} : vector<16x48xbf16>, vector<48x32xbf16>, vector<16x32xf32> -> vector<16x32xf32>
    %c0_4 = arith.constant 0 : index
    %c0_5 = arith.constant 0 : index
    %5 = vector.load %arg4[%c0_4, %c0_5] : memref<17x32xf32, #tpu.memory_space<vmem>>, vector<17x32xf32>
    %c0_6 = arith.constant 0 : index
    %c0_7 = arith.constant 0 : index
    %6 = vector.load %arg3[%c0_6, %c0_7] : memref<1x32xf32, #tpu.memory_space<vmem>>, vector<1x32xf32>
    %7 = vector.extract_strided_slice %5 {offsets = [0, 0], sizes = [1, 32], strides = [1, 1]} : vector<17x32xf32> to vector<1x32xf32>
    %8 = arith.addf %6, %7 : vector<1x32xf32>
    %c0_8 = arith.constant 0 : index
    %c0_9 = arith.constant 0 : index
    %9 = vector.load %arg22[%c0_8, %c0_9] : memref<17x32xf32, #tpu.memory_space<vmem>>, vector<1x32xf32>
    tpu.vector_store %arg22[%c0_8, %c0_9], %8 {strides = array<i32>} : memref<17x32xf32, #tpu.memory_space<vmem>>, vector<1x32xf32>,
    %10 = vector.extract_strided_slice %5 {offsets = [1, 0], sizes = [16, 32], strides = [1, 1]} : vector<17x32xf32> to vector<16x32xf32>
    %11 = arith.addf %4, %10 : vector<16x32xf32>
    %c1 = arith.constant 1 : index
    %c0_10 = arith.constant 0 : index
    %12 = vector.load %arg22[%c1, %c0_10] : memref<17x32xf32, #tpu.memory_space<vmem>>, vector<16x32xf32>
    tpu.vector_store %arg22[%c1, %c0_10], %11 {strides = array<i32>} : memref<17x32xf32, #tpu.memory_space<vmem>>, vector<16x32xf32>,
    %c0_11 = arith.constant 0 : index
    %c0_12 = arith.constant 0 : index
    %13 = vector.load %arg22[%c0_11, %c0_12] : memref<17x32xf32, #tpu.memory_space<vmem>>, vector<17x32xf32>
    %c0_13 = arith.constant 0 : index
    %c0_14 = arith.constant 0 : index
    %14 = vector.load %arg5[%c0_13, %c0_14] : memref<1x32xf32, #tpu.memory_space<vmem>>, vector<1x32xf32>
    %c0_15 = arith.constant 0 : index
    %c0_16 = arith.constant 0 : index
    %15 = vector.load %arg6[%c0_15, %c0_16] : memref<1x32xf32, #tpu.memory_space<vmem>>, vector<1x32xf32>
    %cst_17 = arith.constant dense<0.000000e+00> : vector<17xf32>
    %16 = vector.multi_reduction <add>, %13, %cst_17 [1] : vector<17x32xf32> to vector<17xf32>
    %17 = vector.shape_cast %16 : vector<17xf32> to vector<17x1xf32>
    %cst_18 = arith.constant 3.200000e+01 : f32
    %18 = vector.broadcast %cst_18 : f32 to vector<17x1xf32>
    %19 = arith.divf %17, %18 : vector<17x1xf32>
    %20 = arith.mulf %13, %13 : vector<17x32xf32>
    %cst_19 = arith.constant dense<0.000000e+00> : vector<17xf32>
    %21 = vector.multi_reduction <add>, %20, %cst_19 [1] : vector<17x32xf32> to vector<17xf32>
    %22 = vector.shape_cast %21 : vector<17xf32> to vector<17x1xf32>
    %cst_20 = arith.constant 3.200000e+01 : f32
    %23 = vector.broadcast %cst_20 : f32 to vector<17x1xf32>
    %24 = arith.divf %22, %23 : vector<17x1xf32>
    %25 = arith.mulf %19, %19 : vector<17x1xf32>
    %26 = arith.subf %24, %25 : vector<17x1xf32>
    %27 = vector.broadcast %19 : vector<17x1xf32> to vector<17x32xf32>
    %28 = arith.subf %13, %27 : vector<17x32xf32>
    %cst_21 = arith.constant 9.99999974E-6 : f32
    %29 = vector.broadcast %cst_21 : f32 to vector<17x1xf32>
    %30 = arith.addf %26, %29 : vector<17x1xf32>
    %31 = math.rsqrt %30 : vector<17x1xf32>
    %32 = vector.broadcast %31 : vector<17x1xf32> to vector<17x32xf32>
    %33 = arith.mulf %28, %32 : vector<17x32xf32>
    %34 = vector.broadcast %14 : vector<1x32xf32> to vector<17x32xf32>
    %35 = arith.mulf %33, %34 : vector<17x32xf32>
    %36 = vector.broadcast %15 : vector<1x32xf32> to vector<17x32xf32>
    %37 = arith.addf %35, %36 : vector<17x32xf32>
    %c0_22 = arith.constant 0 : index
    %c0_23 = arith.constant 0 : index
    %c0_24 = arith.constant 0 : index
    %38 = vector.load %arg7[%c0_22, %c0_23, %c0_24] : memref<2x1x32xf32, #tpu.memory_space<vmem>>, vector<1x1x32xf32>
    %39 = vector.shape_cast %38 : vector<1x1x32xf32> to vector<1x32xf32>
    %c0_25 = arith.constant 0 : index
    %c0_26 = arith.constant 0 : index
    %c0_27 = arith.constant 0 : index
    %40 = vector.load %arg8[%c0_25, %c0_26, %c0_27] : memref<2x1x32xf32, #tpu.memory_space<vmem>>, vector<1x1x32xf32>
    %41 = vector.shape_cast %40 : vector<1x1x32xf32> to vector<1x32xf32>
    %cst_28 = arith.constant dense<0.000000e+00> : vector<17xf32>
    %42 = vector.multi_reduction <add>, %37, %cst_28 [1] : vector<17x32xf32> to vector<17xf32>
    %43 = vector.shape_cast %42 : vector<17xf32> to vector<17x1xf32>
    %cst_29 = arith.constant 3.200000e+01 : f32
    %44 = vector.broadcast %cst_29 : f32 to vector<17x1xf32>
    %45 = arith.divf %43, %44 : vector<17x1xf32>
    %46 = arith.mulf %37, %37 : vector<17x32xf32>
    %cst_30 = arith.constant dense<0.000000e+00> : vector<17xf32>
    %47 = vector.multi_reduction <add>, %46, %cst_30 [1] : vector<17x32xf32> to vector<17xf32>
    %48 = vector.shape_cast %47 : vector<17xf32> to vector<17x1xf32>
    %cst_31 = arith.constant 3.200000e+01 : f32
    %49 = vector.broadcast %cst_31 : f32 to vector<17x1xf32>
    %50 = arith.divf %48, %49 : vector<17x1xf32>
    %51 = arith.mulf %45, %45 : vector<17x1xf32>
    %52 = arith.subf %50, %51 : vector<17x1xf32>
    %53 = vector.broadcast %45 : vector<17x1xf32> to vector<17x32xf32>
    %54 = arith.subf %37, %53 : vector<17x32xf32>
    %cst_32 = arith.constant 9.99999974E-6 : f32
    %55 = vector.broadcast %cst_32 : f32 to vector<17x1xf32>
    %56 = arith.addf %52, %55 : vector<17x1xf32>
    %57 = math.rsqrt %56 : vector<17x1xf32>
    %58 = vector.broadcast %57 : vector<17x1xf32> to vector<17x32xf32>
    %59 = arith.mulf %54, %58 : vector<17x32xf32>
    %60 = vector.broadcast %39 : vector<1x32xf32> to vector<17x32xf32>
    %61 = arith.mulf %59, %60 : vector<17x32xf32>
    %62 = vector.broadcast %41 : vector<1x32xf32> to vector<17x32xf32>
    %63 = arith.addf %61, %62 : vector<17x32xf32>
    %64 = arith.truncf %63 : vector<17x32xf32> to vector<17x32xbf16>
    %c0_33 = arith.constant 0 : index
    %c0_34 = arith.constant 0 : index
    %c0_35 = arith.constant 0 : index
    %65 = vector.load %arg9[%c0_33, %c0_34, %c0_35] : memref<2x32x96xbf16, #tpu.memory_space<vmem>>, vector<1x32x96xbf16>
    %66 = vector.shape_cast %65 : vector<1x32x96xbf16> to vector<32x96xbf16>
    %cst_36 = arith.constant dense<0.000000e+00> : vector<17x96xf32>
    %67 = tpu.matmul %64, %66, %cst_36 {dimension_numbers = #tpu.dot_dimension_numbers<[1], [0], [0], [1], [0, 0, 1, 1], [], []>} : vector<17x32xbf16>, vector<32x96xbf16>, vector<17x96xf32> -> vector<17x96xf32>
    %c0_37 = arith.constant 0 : index
    %c0_38 = arith.constant 0 : index
    %c0_39 = arith.constant 0 : index
    %68 = vector.load %arg10[%c0_37, %c0_38, %c0_39] : memref<2x1x96xf32, #tpu.memory_space<vmem>>, vector<1x1x96xf32>
    %69 = vector.shape_cast %68 : vector<1x1x96xf32> to vector<1x96xf32>
    %70 = vector.broadcast %69 : vector<1x96xf32> to vector<17x96xf32>
    %71 = arith.addf %67, %70 : vector<17x96xf32>
    %72 = vector.extract_strided_slice %71 {offsets = [0, 0], sizes = [17, 8], strides = [1, 1]} : vector<17x96xf32> to vector<17x8xf32>
    %73 = vector.extract_strided_slice %71 {offsets = [0, 32], sizes = [17, 8], strides = [1, 1]} : vector<17x96xf32> to vector<17x8xf32>
    %74 = vector.extract_strided_slice %71 {offsets = [0, 64], sizes = [17, 8], strides = [1, 1]} : vector<17x96xf32> to vector<17x8xf32>
    %75 = arith.truncf %72 : vector<17x8xf32> to vector<17x8xbf16>
    %76 = arith.truncf %73 : vector<17x8xf32> to vector<17x8xbf16>
    %cst_40 = arith.constant dense<0.000000e+00> : vector<17x17xf32>
    %77 = tpu.matmul %75, %76, %cst_40 {dimension_numbers = #tpu.dot_dimension_numbers<[1], [1], [0], [0], [0, 0, 1, 0], [], []>} : vector<17x8xbf16>, vector<17x8xbf16>, vector<17x17xf32> -> vector<17x17xf32>
    %cst_41 = arith.constant dense<0xFF800000> : vector<17xf32>
    %78 = vector.multi_reduction <maximumf>, %77, %cst_41 [1] : vector<17x17xf32> to vector<17xf32>
    %79 = vector.shape_cast %78 : vector<17xf32> to vector<17x1xf32>
    %80 = vector.broadcast %79 : vector<17x1xf32> to vector<17x17xf32>
    %81 = arith.subf %77, %80 : vector<17x17xf32>
    %82 = math.exp %81 : vector<17x17xf32>
    %cst_42 = arith.constant dense<0.000000e+00> : vector<17xf32>
    %83 = vector.multi_reduction <add>, %82, %cst_42 [1] : vector<17x17xf32> to vector<17xf32>
    %84 = vector.shape_cast %83 : vector<17xf32> to vector<17x1xf32>
    %85 = tpu.reciprocal %84 {approx = true} : vector<17x1xf32> -> vector<17x1xf32>
    %86 = vector.broadcast %85 : vector<17x1xf32> to vector<17x17xf32>
    %87 = arith.mulf %82, %86 : vector<17x17xf32>
    %88 = arith.truncf %87 : vector<17x17xf32> to vector<17x17xbf16>
    %89 = arith.truncf %74 : vector<17x8xf32> to vector<17x8xbf16>
    %cst_43 = arith.constant dense<0.000000e+00> : vector<17x8xf32>
    %90 = tpu.matmul %88, %89, %cst_43 {dimension_numbers = #tpu.dot_dimension_numbers<[1], [0], [0], [1], [0, 0, 1, 1], [], []>} : vector<17x17xbf16>, vector<17x8xbf16>, vector<17x8xf32> -> vector<17x8xf32>
    %c0_44 = arith.constant 0 : index
    %c0_45 = arith.constant 0 : index
    %91 = vector.load %arg23[%c0_44, %c0_45] : memref<17x32xf32, #tpu.memory_space<vmem>>, vector<17x8xf32>
    tpu.vector_store %arg23[%c0_44, %c0_45], %90 {strides = array<i32>} : memref<17x32xf32, #tpu.memory_space<vmem>>, vector<17x8xf32>,
    %92 = vector.extract_strided_slice %71 {offsets = [0, 8], sizes = [17, 8], strides = [1, 1]} : vector<17x96xf32> to vector<17x8xf32>
    %93 = vector.extract_strided_slice %71 {offsets = [0, 40], sizes = [17, 8], strides = [1, 1]} : vector<17x96xf32> to vector<17x8xf32>
    %94 = vector.extract_strided_slice %71 {offsets = [0, 72], sizes = [17, 8], strides = [1, 1]} : vector<17x96xf32> to vector<17x8xf32>
    %95 = arith.truncf %92 : vector<17x8xf32> to vector<17x8xbf16>
    %96 = arith.truncf %93 : vector<17x8xf32> to vector<17x8xbf16>
    %cst_46 = arith.constant dense<0.000000e+00> : vector<17x17xf32>
    %97 = tpu.matmul %95, %96, %cst_46 {dimension_numbers = #tpu.dot_dimension_numbers<[1], [1], [0], [0], [0, 0, 1, 0], [], []>} : vector<17x8xbf16>, vector<17x8xbf16>, vector<17x17xf32> -> vector<17x17xf32>
    %cst_47 = arith.constant dense<0xFF800000> : vector<17xf32>
    %98 = vector.multi_reduction <maximumf>, %97, %cst_47 [1] : vector<17x17xf32> to vector<17xf32>
    %99 = vector.shape_cast %98 : vector<17xf32> to vector<17x1xf32>
    %100 = vector.broadcast %99 : vector<17x1xf32> to vector<17x17xf32>
    %101 = arith.subf %97, %100 : vector<17x17xf32>
    %102 = math.exp %101 : vector<17x17xf32>
    %cst_48 = arith.constant dense<0.000000e+00> : vector<17xf32>
    %103 = vector.multi_reduction <add>, %102, %cst_48 [1] : vector<17x17xf32> to vector<17xf32>
    %104 = vector.shape_cast %103 : vector<17xf32> to vector<17x1xf32>
    %105 = tpu.reciprocal %104 {approx = true} : vector<17x1xf32> -> vector<17x1xf32>
    %106 = vector.broadcast %105 : vector<17x1xf32> to vector<17x17xf32>
    %107 = arith.mulf %102, %106 : vector<17x17xf32>
    %108 = arith.truncf %107 : vector<17x17xf32> to vector<17x17xbf16>
    %109 = arith.truncf %94 : vector<17x8xf32> to vector<17x8xbf16>
    %cst_49 = arith.constant dense<0.000000e+00> : vector<17x8xf32>
    %110 = tpu.matmul %108, %109, %cst_49 {dimension_numbers = #tpu.dot_dimension_numbers<[1], [0], [0], [1], [0, 0, 1, 1], [], []>} : vector<17x17xbf16>, vector<17x8xbf16>, vector<17x8xf32> -> vector<17x8xf32>
    %c0_50 = arith.constant 0 : index
    %c8 = arith.constant 8 : index
    %111 = vector.load %arg23[%c0_50, %c8] : memref<17x32xf32, #tpu.memory_space<vmem>>, vector<17x8xf32>
    tpu.vector_store %arg23[%c0_50, %c8], %110 {strides = array<i32>} : memref<17x32xf32, #tpu.memory_space<vmem>>, vector<17x8xf32>,
    %112 = vector.extract_strided_slice %71 {offsets = [0, 16], sizes = [17, 8], strides = [1, 1]} : vector<17x96xf32> to vector<17x8xf32>
    %113 = vector.extract_strided_slice %71 {offsets = [0, 48], sizes = [17, 8], strides = [1, 1]} : vector<17x96xf32> to vector<17x8xf32>
    %114 = vector.extract_strided_slice %71 {offsets = [0, 80], sizes = [17, 8], strides = [1, 1]} : vector<17x96xf32> to vector<17x8xf32>
    %115 = arith.truncf %112 : vector<17x8xf32> to vector<17x8xbf16>
    %116 = arith.truncf %113 : vector<17x8xf32> to vector<17x8xbf16>
    %cst_51 = arith.constant dense<0.000000e+00> : vector<17x17xf32>
    %117 = tpu.matmul %115, %116, %cst_51 {dimension_numbers = #tpu.dot_dimension_numbers<[1], [1], [0], [0], [0, 0, 1, 0], [], []>} : vector<17x8xbf16>, vector<17x8xbf16>, vector<17x17xf32> -> vector<17x17xf32>
    %cst_52 = arith.constant dense<0xFF800000> : vector<17xf32>
    %118 = vector.multi_reduction <maximumf>, %117, %cst_52 [1] : vector<17x17xf32> to vector<17xf32>
    %119 = vector.shape_cast %118 : vector<17xf32> to vector<17x1xf32>
    %120 = vector.broadcast %119 : vector<17x1xf32> to vector<17x17xf32>
    %121 = arith.subf %117, %120 : vector<17x17xf32>
    %122 = math.exp %121 : vector<17x17xf32>
    %cst_53 = arith.constant dense<0.000000e+00> : vector<17xf32>
    %123 = vector.multi_reduction <add>, %122, %cst_53 [1] : vector<17x17xf32> to vector<17xf32>
    %124 = vector.shape_cast %123 : vector<17xf32> to vector<17x1xf32>
    %125 = tpu.reciprocal %124 {approx = true} : vector<17x1xf32> -> vector<17x1xf32>
    %126 = vector.broadcast %125 : vector<17x1xf32> to vector<17x17xf32>
    %127 = arith.mulf %122, %126 : vector<17x17xf32>
    %128 = arith.truncf %127 : vector<17x17xf32> to vector<17x17xbf16>
    %129 = arith.truncf %114 : vector<17x8xf32> to vector<17x8xbf16>
    %cst_54 = arith.constant dense<0.000000e+00> : vector<17x8xf32>
    %130 = tpu.matmul %128, %129, %cst_54 {dimension_numbers = #tpu.dot_dimension_numbers<[1], [0], [0], [1], [0, 0, 1, 1], [], []>} : vector<17x17xbf16>, vector<17x8xbf16>, vector<17x8xf32> -> vector<17x8xf32>
    %c0_55 = arith.constant 0 : index
    %c16 = arith.constant 16 : index
    %131 = vector.load %arg23[%c0_55, %c16] : memref<17x32xf32, #tpu.memory_space<vmem>>, vector<17x8xf32>
    tpu.vector_store %arg23[%c0_55, %c16], %130 {strides = array<i32>} : memref<17x32xf32, #tpu.memory_space<vmem>>, vector<17x8xf32>,
    %132 = vector.extract_strided_slice %71 {offsets = [0, 24], sizes = [17, 8], strides = [1, 1]} : vector<17x96xf32> to vector<17x8xf32>
    %133 = vector.extract_strided_slice %71 {offsets = [0, 56], sizes = [17, 8], strides = [1, 1]} : vector<17x96xf32> to vector<17x8xf32>
    %134 = vector.extract_strided_slice %71 {offsets = [0, 88], sizes = [17, 8], strides = [1, 1]} : vector<17x96xf32> to vector<17x8xf32>
    %135 = arith.truncf %132 : vector<17x8xf32> to vector<17x8xbf16>
    %136 = arith.truncf %133 : vector<17x8xf32> to vector<17x8xbf16>
    %cst_56 = arith.constant dense<0.000000e+00> : vector<17x17xf32>
    %137 = tpu.matmul %135, %136, %cst_56 {dimension_numbers = #tpu.dot_dimension_numbers<[1], [1], [0], [0], [0, 0, 1, 0], [], []>} : vector<17x8xbf16>, vector<17x8xbf16>, vector<17x17xf32> -> vector<17x17xf32>
    %cst_57 = arith.constant dense<0xFF800000> : vector<17xf32>
    %138 = vector.multi_reduction <maximumf>, %137, %cst_57 [1] : vector<17x17xf32> to vector<17xf32>
    %139 = vector.shape_cast %138 : vector<17xf32> to vector<17x1xf32>
    %140 = vector.broadcast %139 : vector<17x1xf32> to vector<17x17xf32>
    %141 = arith.subf %137, %140 : vector<17x17xf32>
    %142 = math.exp %141 : vector<17x17xf32>
    %cst_58 = arith.constant dense<0.000000e+00> : vector<17xf32>
    %143 = vector.multi_reduction <add>, %142, %cst_58 [1] : vector<17x17xf32> to vector<17xf32>
    %144 = vector.shape_cast %143 : vector<17xf32> to vector<17x1xf32>
    %145 = tpu.reciprocal %144 {approx = true} : vector<17x1xf32> -> vector<17x1xf32>
    %146 = vector.broadcast %145 : vector<17x1xf32> to vector<17x17xf32>
    %147 = arith.mulf %142, %146 : vector<17x17xf32>
    %148 = arith.truncf %147 : vector<17x17xf32> to vector<17x17xbf16>
    %149 = arith.truncf %134 : vector<17x8xf32> to vector<17x8xbf16>
    %cst_59 = arith.constant dense<0.000000e+00> : vector<17x8xf32>
    %150 = tpu.matmul %148, %149, %cst_59 {dimension_numbers = #tpu.dot_dimension_numbers<[1], [0], [0], [1], [0, 0, 1, 1], [], []>} : vector<17x17xbf16>, vector<17x8xbf16>, vector<17x8xf32> -> vector<17x8xf32>
    %c0_60 = arith.constant 0 : index
    %c24 = arith.constant 24 : index
    %151 = vector.load %arg23[%c0_60, %c24] : memref<17x32xf32, #tpu.memory_space<vmem>>, vector<17x8xf32>
    tpu.vector_store %arg23[%c0_60, %c24], %150 {strides = array<i32>} : memref<17x32xf32, #tpu.memory_space<vmem>>, vector<17x8xf32>,
    %c0_61 = arith.constant 0 : index
    %c0_62 = arith.constant 0 : index
    %152 = vector.load %arg23[%c0_61, %c0_62] : memref<17x32xf32, #tpu.memory_space<vmem>>, vector<17x32xf32>
    %153 = arith.truncf %152 : vector<17x32xf32> to vector<17x32xbf16>
    %c0_63 = arith.constant 0 : index
    %c0_64 = arith.constant 0 : index
    %c0_65 = arith.constant 0 : index
    %154 = vector.load %arg11[%c0_63, %c0_64, %c0_65] : memref<2x32x32xbf16, #tpu.memory_space<vmem>>, vector<1x32x32xbf16>
    %155 = vector.shape_cast %154 : vector<1x32x32xbf16> to vector<32x32xbf16>
    %cst_66 = arith.constant dense<0.000000e+00> : vector<17x32xf32>
    %156 = tpu.matmul %153, %155, %cst_66 {dimension_numbers = #tpu.dot_dimension_numbers<[1], [0], [0], [1], [0, 0, 1, 1], [], []>} : vector<17x32xbf16>, vector<32x32xbf16>, vector<17x32xf32> -> vector<17x32xf32>
    %c0_67 = arith.constant 0 : index
    %c0_68 = arith.constant 0 : index
    %c0_69 = arith.constant 0 : index
    %157 = vector.load %arg12[%c0_67, %c0_68, %c0_69] : memref<2x1x32xf32, #tpu.memory_space<vmem>>, vector<1x1x32xf32>
    %158 = vector.shape_cast %157 : vector<1x1x32xf32> to vector<1x32xf32>
    %159 = vector.broadcast %158 : vector<1x32xf32> to vector<17x32xf32>
    %160 = arith.addf %156, %159 : vector<17x32xf32>
    %161 = arith.addf %37, %160 : vector<17x32xf32>
    %c0_70 = arith.constant 0 : index
    %c0_71 = arith.constant 0 : index
    %c0_72 = arith.constant 0 : index
    %162 = vector.load %arg13[%c0_70, %c0_71, %c0_72] : memref<2x1x32xf32, #tpu.memory_space<vmem>>, vector<1x1x32xf32>
    %163 = vector.shape_cast %162 : vector<1x1x32xf32> to vector<1x32xf32>
    %c0_73 = arith.constant 0 : index
    %c0_74 = arith.constant 0 : index
    %c0_75 = arith.constant 0 : index
    %164 = vector.load %arg14[%c0_73, %c0_74, %c0_75] : memref<2x1x32xf32, #tpu.memory_space<vmem>>, vector<1x1x32xf32>
    %165 = vector.shape_cast %164 : vector<1x1x32xf32> to vector<1x32xf32>
    %cst_76 = arith.constant dense<0.000000e+00> : vector<17xf32>
    %166 = vector.multi_reduction <add>, %161, %cst_76 [1] : vector<17x32xf32> to vector<17xf32>
    %167 = vector.shape_cast %166 : vector<17xf32> to vector<17x1xf32>
    %cst_77 = arith.constant 3.200000e+01 : f32
    %168 = vector.broadcast %cst_77 : f32 to vector<17x1xf32>
    %169 = arith.divf %167, %168 : vector<17x1xf32>
    %170 = arith.mulf %161, %161 : vector<17x32xf32>
    %cst_78 = arith.constant dense<0.000000e+00> : vector<17xf32>
    %171 = vector.multi_reduction <add>, %170, %cst_78 [1] : vector<17x32xf32> to vector<17xf32>
    %172 = vector.shape_cast %171 : vector<17xf32> to vector<17x1xf32>
    %cst_79 = arith.constant 3.200000e+01 : f32
    %173 = vector.broadcast %cst_79 : f32 to vector<17x1xf32>
    %174 = arith.divf %172, %173 : vector<17x1xf32>
    %175 = arith.mulf %169, %169 : vector<17x1xf32>
    %176 = arith.subf %174, %175 : vector<17x1xf32>
    %177 = vector.broadcast %169 : vector<17x1xf32> to vector<17x32xf32>
    %178 = arith.subf %161, %177 : vector<17x32xf32>
    %cst_80 = arith.constant 9.99999974E-6 : f32
    %179 = vector.broadcast %cst_80 : f32 to vector<17x1xf32>
    %180 = arith.addf %176, %179 : vector<17x1xf32>
    %181 = math.rsqrt %180 : vector<17x1xf32>
    %182 = vector.broadcast %181 : vector<17x1xf32> to vector<17x32xf32>
    %183 = arith.mulf %178, %182 : vector<17x32xf32>
    %184 = vector.broadcast %163 : vector<1x32xf32> to vector<17x32xf32>
    %185 = arith.mulf %183, %184 : vector<17x32xf32>
    %186 = vector.broadcast %165 : vector<1x32xf32> to vector<17x32xf32>
    %187 = arith.addf %185, %186 : vector<17x32xf32>
    %188 = arith.truncf %187 : vector<17x32xf32> to vector<17x32xbf16>
    %c0_81 = arith.constant 0 : index
    %c0_82 = arith.constant 0 : index
    %c0_83 = arith.constant 0 : index
    %189 = vector.load %arg15[%c0_81, %c0_82, %c0_83] : memref<2x32x64xbf16, #tpu.memory_space<vmem>>, vector<1x32x64xbf16>
    %190 = vector.shape_cast %189 : vector<1x32x64xbf16> to vector<32x64xbf16>
    %cst_84 = arith.constant dense<0.000000e+00> : vector<17x64xf32>
    %191 = tpu.matmul %188, %190, %cst_84 {dimension_numbers = #tpu.dot_dimension_numbers<[1], [0], [0], [1], [0, 0, 1, 1], [], []>} : vector<17x32xbf16>, vector<32x64xbf16>, vector<17x64xf32> -> vector<17x64xf32>
    %c0_85 = arith.constant 0 : index
    %c0_86 = arith.constant 0 : index
    %c0_87 = arith.constant 0 : index
    %192 = vector.load %arg16[%c0_85, %c0_86, %c0_87] : memref<2x1x64xf32, #tpu.memory_space<vmem>>, vector<1x1x64xf32>
    %193 = vector.shape_cast %192 : vector<1x1x64xf32> to vector<1x64xf32>
    %194 = vector.broadcast %193 : vector<1x64xf32> to vector<17x64xf32>
    %195 = arith.addf %191, %194 : vector<17x64xf32>
    %cst_88 = arith.constant 1.702000e+00 : f32
    %196 = vector.broadcast %cst_88 : f32 to vector<17x64xf32>
    %197 = arith.mulf %196, %195 : vector<17x64xf32>
    %198 = arith.negf %197 : vector<17x64xf32>
    %199 = math.exp %198 : vector<17x64xf32>
    %cst_89 = arith.constant 1.000000e+00 : f32
    %200 = vector.broadcast %cst_89 : f32 to vector<17x64xf32>
    %201 = arith.addf %200, %199 : vector<17x64xf32>
    %202 = arith.divf %200, %201 : vector<17x64xf32>
    %203 = arith.mulf %195, %202 : vector<17x64xf32>
    %204 = arith.truncf %203 : vector<17x64xf32> to vector<17x64xbf16>
    %c0_90 = arith.constant 0 : index
    %c0_91 = arith.constant 0 : index
    %c0_92 = arith.constant 0 : index
    %205 = vector.load %arg17[%c0_90, %c0_91, %c0_92] : memref<2x64x32xbf16, #tpu.memory_space<vmem>>, vector<1x64x32xbf16>
    %206 = vector.shape_cast %205 : vector<1x64x32xbf16> to vector<64x32xbf16>
    %cst_93 = arith.constant dense<0.000000e+00> : vector<17x32xf32>
    %207 = tpu.matmul %204, %206, %cst_93 {dimension_numbers = #tpu.dot_dimension_numbers<[1], [0], [0], [1], [0, 0, 1, 1], [], []>} : vector<17x64xbf16>, vector<64x32xbf16>, vector<17x32xf32> -> vector<17x32xf32>
    %208 = arith.addf %161, %207 : vector<17x32xf32>
    %c0_94 = arith.constant 0 : index
    %c0_95 = arith.constant 0 : index
    %c0_96 = arith.constant 0 : index
    %209 = vector.load %arg18[%c0_94, %c0_95, %c0_96] : memref<2x1x32xf32, #tpu.memory_space<vmem>>, vector<1x1x32xf32>
    %210 = vector.shape_cast %209 : vector<1x1x32xf32> to vector<1x32xf32>
    %211 = vector.broadcast %210 : vector<1x32xf32> to vector<17x32xf32>
    %212 = arith.addf %208, %211 : vector<17x32xf32>
    %c1_97 = arith.constant 1 : index
    %c0_98 = arith.constant 0 : index
    %c0_99 = arith.constant 0 : index
    %213 = vector.load %arg7[%c1_97, %c0_98, %c0_99] : memref<2x1x32xf32, #tpu.memory_space<vmem>>, vector<1x1x32xf32>
    %214 = vector.shape_cast %213 : vector<1x1x32xf32> to vector<1x32xf32>
    %c1_100 = arith.constant 1 : index
    %c0_101 = arith.constant 0 : index
    %c0_102 = arith.constant 0 : index
    %215 = vector.load %arg8[%c1_100, %c0_101, %c0_102] : memref<2x1x32xf32, #tpu.memory_space<vmem>>, vector<1x1x32xf32>
    %216 = vector.shape_cast %215 : vector<1x1x32xf32> to vector<1x32xf32>
    %cst_103 = arith.constant dense<0.000000e+00> : vector<17xf32>
    %217 = vector.multi_reduction <add>, %212, %cst_103 [1] : vector<17x32xf32> to vector<17xf32>
    %218 = vector.shape_cast %217 : vector<17xf32> to vector<17x1xf32>
    %cst_104 = arith.constant 3.200000e+01 : f32
    %219 = vector.broadcast %cst_104 : f32 to vector<17x1xf32>
    %220 = arith.divf %218, %219 : vector<17x1xf32>
    %221 = arith.mulf %212, %212 : vector<17x32xf32>
    %cst_105 = arith.constant dense<0.000000e+00> : vector<17xf32>
    %222 = vector.multi_reduction <add>, %221, %cst_105 [1] : vector<17x32xf32> to vector<17xf32>
    %223 = vector.shape_cast %222 : vector<17xf32> to vector<17x1xf32>
    %cst_106 = arith.constant 3.200000e+01 : f32
    %224 = vector.broadcast %cst_106 : f32 to vector<17x1xf32>
    %225 = arith.divf %223, %224 : vector<17x1xf32>
    %226 = arith.mulf %220, %220 : vector<17x1xf32>
    %227 = arith.subf %225, %226 : vector<17x1xf32>
    %228 = vector.broadcast %220 : vector<17x1xf32> to vector<17x32xf32>
    %229 = arith.subf %212, %228 : vector<17x32xf32>
    %cst_107 = arith.constant 9.99999974E-6 : f32
    %230 = vector.broadcast %cst_107 : f32 to vector<17x1xf32>
    %231 = arith.addf %227, %230 : vector<17x1xf32>
    %232 = math.rsqrt %231 : vector<17x1xf32>
    %233 = vector.broadcast %232 : vector<17x1xf32> to vector<17x32xf32>
    %234 = arith.mulf %229, %233 : vector<17x32xf32>
    %235 = vector.broadcast %214 : vector<1x32xf32> to vector<17x32xf32>
    %236 = arith.mulf %234, %235 : vector<17x32xf32>
    %237 = vector.broadcast %216 : vector<1x32xf32> to vector<17x32xf32>
    %238 = arith.addf %236, %237 : vector<17x32xf32>
    %239 = arith.truncf %238 : vector<17x32xf32> to vector<17x32xbf16>
    %c1_108 = arith.constant 1 : index
    %c0_109 = arith.constant 0 : index
    %c0_110 = arith.constant 0 : index
    %240 = vector.load %arg9[%c1_108, %c0_109, %c0_110] : memref<2x32x96xbf16, #tpu.memory_space<vmem>>, vector<1x32x96xbf16>
    %241 = vector.shape_cast %240 : vector<1x32x96xbf16> to vector<32x96xbf16>
    %cst_111 = arith.constant dense<0.000000e+00> : vector<17x96xf32>
    %242 = tpu.matmul %239, %241, %cst_111 {dimension_numbers = #tpu.dot_dimension_numbers<[1], [0], [0], [1], [0, 0, 1, 1], [], []>} : vector<17x32xbf16>, vector<32x96xbf16>, vector<17x96xf32> -> vector<17x96xf32>
    %c1_112 = arith.constant 1 : index
    %c0_113 = arith.constant 0 : index
    %c0_114 = arith.constant 0 : index
    %243 = vector.load %arg10[%c1_112, %c0_113, %c0_114] : memref<2x1x96xf32, #tpu.memory_space<vmem>>, vector<1x1x96xf32>
    %244 = vector.shape_cast %243 : vector<1x1x96xf32> to vector<1x96xf32>
    %245 = vector.broadcast %244 : vector<1x96xf32> to vector<17x96xf32>
    %246 = arith.addf %242, %245 : vector<17x96xf32>
    %247 = vector.extract_strided_slice %246 {offsets = [0, 0], sizes = [17, 8], strides = [1, 1]} : vector<17x96xf32> to vector<17x8xf32>
    %248 = vector.extract_strided_slice %246 {offsets = [0, 32], sizes = [17, 8], strides = [1, 1]} : vector<17x96xf32> to vector<17x8xf32>
    %249 = vector.extract_strided_slice %246 {offsets = [0, 64], sizes = [17, 8], strides = [1, 1]} : vector<17x96xf32> to vector<17x8xf32>
    %250 = arith.truncf %247 : vector<17x8xf32> to vector<17x8xbf16>
    %251 = arith.truncf %248 : vector<17x8xf32> to vector<17x8xbf16>
    %cst_115 = arith.constant dense<0.000000e+00> : vector<17x17xf32>
    %252 = tpu.matmul %250, %251, %cst_115 {dimension_numbers = #tpu.dot_dimension_numbers<[1], [1], [0], [0], [0, 0, 1, 0], [], []>} : vector<17x8xbf16>, vector<17x8xbf16>, vector<17x17xf32> -> vector<17x17xf32>
    %cst_116 = arith.constant dense<0xFF800000> : vector<17xf32>
    %253 = vector.multi_reduction <maximumf>, %252, %cst_116 [1] : vector<17x17xf32> to vector<17xf32>
    %254 = vector.shape_cast %253 : vector<17xf32> to vector<17x1xf32>
    %255 = vector.broadcast %254 : vector<17x1xf32> to vector<17x17xf32>
    %256 = arith.subf %252, %255 : vector<17x17xf32>
    %257 = math.exp %256 : vector<17x17xf32>
    %cst_117 = arith.constant dense<0.000000e+00> : vector<17xf32>
    %258 = vector.multi_reduction <add>, %257, %cst_117 [1] : vector<17x17xf32> to vector<17xf32>
    %259 = vector.shape_cast %258 : vector<17xf32> to vector<17x1xf32>
    %260 = tpu.reciprocal %259 {approx = true} : vector<17x1xf32> -> vector<17x1xf32>
    %261 = vector.broadcast %260 : vector<17x1xf32> to vector<17x17xf32>
    %262 = arith.mulf %257, %261 : vector<17x17xf32>
    %263 = arith.truncf %262 : vector<17x17xf32> to vector<17x17xbf16>
    %264 = arith.truncf %249 : vector<17x8xf32> to vector<17x8xbf16>
    %cst_118 = arith.constant dense<0.000000e+00> : vector<17x8xf32>
    %265 = tpu.matmul %263, %264, %cst_118 {dimension_numbers = #tpu.dot_dimension_numbers<[1], [0], [0], [1], [0, 0, 1, 1], [], []>} : vector<17x17xbf16>, vector<17x8xbf16>, vector<17x8xf32> -> vector<17x8xf32>
    %c0_119 = arith.constant 0 : index
    %c0_120 = arith.constant 0 : index
    %266 = vector.load %arg23[%c0_119, %c0_120] : memref<17x32xf32, #tpu.memory_space<vmem>>, vector<17x8xf32>
    tpu.vector_store %arg23[%c0_119, %c0_120], %265 {strides = array<i32>} : memref<17x32xf32, #tpu.memory_space<vmem>>, vector<17x8xf32>,
    %267 = vector.extract_strided_slice %246 {offsets = [0, 8], sizes = [17, 8], strides = [1, 1]} : vector<17x96xf32> to vector<17x8xf32>
    %268 = vector.extract_strided_slice %246 {offsets = [0, 40], sizes = [17, 8], strides = [1, 1]} : vector<17x96xf32> to vector<17x8xf32>
    %269 = vector.extract_strided_slice %246 {offsets = [0, 72], sizes = [17, 8], strides = [1, 1]} : vector<17x96xf32> to vector<17x8xf32>
    %270 = arith.truncf %267 : vector<17x8xf32> to vector<17x8xbf16>
    %271 = arith.truncf %268 : vector<17x8xf32> to vector<17x8xbf16>
    %cst_121 = arith.constant dense<0.000000e+00> : vector<17x17xf32>
    %272 = tpu.matmul %270, %271, %cst_121 {dimension_numbers = #tpu.dot_dimension_numbers<[1], [1], [0], [0], [0, 0, 1, 0], [], []>} : vector<17x8xbf16>, vector<17x8xbf16>, vector<17x17xf32> -> vector<17x17xf32>
    %cst_122 = arith.constant dense<0xFF800000> : vector<17xf32>
    %273 = vector.multi_reduction <maximumf>, %272, %cst_122 [1] : vector<17x17xf32> to vector<17xf32>
    %274 = vector.shape_cast %273 : vector<17xf32> to vector<17x1xf32>
    %275 = vector.broadcast %274 : vector<17x1xf32> to vector<17x17xf32>
    %276 = arith.subf %272, %275 : vector<17x17xf32>
    %277 = math.exp %276 : vector<17x17xf32>
    %cst_123 = arith.constant dense<0.000000e+00> : vector<17xf32>
    %278 = vector.multi_reduction <add>, %277, %cst_123 [1] : vector<17x17xf32> to vector<17xf32>
    %279 = vector.shape_cast %278 : vector<17xf32> to vector<17x1xf32>
    %280 = tpu.reciprocal %279 {approx = true} : vector<17x1xf32> -> vector<17x1xf32>
    %281 = vector.broadcast %280 : vector<17x1xf32> to vector<17x17xf32>
    %282 = arith.mulf %277, %281 : vector<17x17xf32>
    %283 = arith.truncf %282 : vector<17x17xf32> to vector<17x17xbf16>
    %284 = arith.truncf %269 : vector<17x8xf32> to vector<17x8xbf16>
    %cst_124 = arith.constant dense<0.000000e+00> : vector<17x8xf32>
    %285 = tpu.matmul %283, %284, %cst_124 {dimension_numbers = #tpu.dot_dimension_numbers<[1], [0], [0], [1], [0, 0, 1, 1], [], []>} : vector<17x17xbf16>, vector<17x8xbf16>, vector<17x8xf32> -> vector<17x8xf32>
    %c0_125 = arith.constant 0 : index
    %c8_126 = arith.constant 8 : index
    %286 = vector.load %arg23[%c0_125, %c8_126] : memref<17x32xf32, #tpu.memory_space<vmem>>, vector<17x8xf32>
    tpu.vector_store %arg23[%c0_125, %c8_126], %285 {strides = array<i32>} : memref<17x32xf32, #tpu.memory_space<vmem>>, vector<17x8xf32>,
    %287 = vector.extract_strided_slice %246 {offsets = [0, 16], sizes = [17, 8], strides = [1, 1]} : vector<17x96xf32> to vector<17x8xf32>
    %288 = vector.extract_strided_slice %246 {offsets = [0, 48], sizes = [17, 8], strides = [1, 1]} : vector<17x96xf32> to vector<17x8xf32>
    %289 = vector.extract_strided_slice %246 {offsets = [0, 80], sizes = [17, 8], strides = [1, 1]} : vector<17x96xf32> to vector<17x8xf32>
    %290 = arith.truncf %287 : vector<17x8xf32> to vector<17x8xbf16>
    %291 = arith.truncf %288 : vector<17x8xf32> to vector<17x8xbf16>
    %cst_127 = arith.constant dense<0.000000e+00> : vector<17x17xf32>
    %292 = tpu.matmul %290, %291, %cst_127 {dimension_numbers = #tpu.dot_dimension_numbers<[1], [1], [0], [0], [0, 0, 1, 0], [], []>} : vector<17x8xbf16>, vector<17x8xbf16>, vector<17x17xf32> -> vector<17x17xf32>
    %cst_128 = arith.constant dense<0xFF800000> : vector<17xf32>
    %293 = vector.multi_reduction <maximumf>, %292, %cst_128 [1] : vector<17x17xf32> to vector<17xf32>
    %294 = vector.shape_cast %293 : vector<17xf32> to vector<17x1xf32>
    %295 = vector.broadcast %294 : vector<17x1xf32> to vector<17x17xf32>
    %296 = arith.subf %292, %295 : vector<17x17xf32>
    %297 = math.exp %296 : vector<17x17xf32>
    %cst_129 = arith.constant dense<0.000000e+00> : vector<17xf32>
    %298 = vector.multi_reduction <add>, %297, %cst_129 [1] : vector<17x17xf32> to vector<17xf32>
    %299 = vector.shape_cast %298 : vector<17xf32> to vector<17x1xf32>
    %300 = tpu.reciprocal %299 {approx = true} : vector<17x1xf32> -> vector<17x1xf32>
    %301 = vector.broadcast %300 : vector<17x1xf32> to vector<17x17xf32>
    %302 = arith.mulf %297, %301 : vector<17x17xf32>
    %303 = arith.truncf %302 : vector<17x17xf32> to vector<17x17xbf16>
    %304 = arith.truncf %289 : vector<17x8xf32> to vector<17x8xbf16>
    %cst_130 = arith.constant dense<0.000000e+00> : vector<17x8xf32>
    %305 = tpu.matmul %303, %304, %cst_130 {dimension_numbers = #tpu.dot_dimension_numbers<[1], [0], [0], [1], [0, 0, 1, 1], [], []>} : vector<17x17xbf16>, vector<17x8xbf16>, vector<17x8xf32> -> vector<17x8xf32>
    %c0_131 = arith.constant 0 : index
    %c16_132 = arith.constant 16 : index
    %306 = vector.load %arg23[%c0_131, %c16_132] : memref<17x32xf32, #tpu.memory_space<vmem>>, vector<17x8xf32>
    tpu.vector_store %arg23[%c0_131, %c16_132], %305 {strides = array<i32>} : memref<17x32xf32, #tpu.memory_space<vmem>>, vector<17x8xf32>,
    %307 = vector.extract_strided_slice %246 {offsets = [0, 24], sizes = [17, 8], strides = [1, 1]} : vector<17x96xf32> to vector<17x8xf32>
    %308 = vector.extract_strided_slice %246 {offsets = [0, 56], sizes = [17, 8], strides = [1, 1]} : vector<17x96xf32> to vector<17x8xf32>
    %309 = vector.extract_strided_slice %246 {offsets = [0, 88], sizes = [17, 8], strides = [1, 1]} : vector<17x96xf32> to vector<17x8xf32>
    %310 = arith.truncf %307 : vector<17x8xf32> to vector<17x8xbf16>
    %311 = arith.truncf %308 : vector<17x8xf32> to vector<17x8xbf16>
    %cst_133 = arith.constant dense<0.000000e+00> : vector<17x17xf32>
    %312 = tpu.matmul %310, %311, %cst_133 {dimension_numbers = #tpu.dot_dimension_numbers<[1], [1], [0], [0], [0, 0, 1, 0], [], []>} : vector<17x8xbf16>, vector<17x8xbf16>, vector<17x17xf32> -> vector<17x17xf32>
    %cst_134 = arith.constant dense<0xFF800000> : vector<17xf32>
    %313 = vector.multi_reduction <maximumf>, %312, %cst_134 [1] : vector<17x17xf32> to vector<17xf32>
    %314 = vector.shape_cast %313 : vector<17xf32> to vector<17x1xf32>
    %315 = vector.broadcast %314 : vector<17x1xf32> to vector<17x17xf32>
    %316 = arith.subf %312, %315 : vector<17x17xf32>
    %317 = math.exp %316 : vector<17x17xf32>
    %cst_135 = arith.constant dense<0.000000e+00> : vector<17xf32>
    %318 = vector.multi_reduction <add>, %317, %cst_135 [1] : vector<17x17xf32> to vector<17xf32>
    %319 = vector.shape_cast %318 : vector<17xf32> to vector<17x1xf32>
    %320 = tpu.reciprocal %319 {approx = true} : vector<17x1xf32> -> vector<17x1xf32>
    %321 = vector.broadcast %320 : vector<17x1xf32> to vector<17x17xf32>
    %322 = arith.mulf %317, %321 : vector<17x17xf32>
    %323 = arith.truncf %322 : vector<17x17xf32> to vector<17x17xbf16>
    %324 = arith.truncf %309 : vector<17x8xf32> to vector<17x8xbf16>
    %cst_136 = arith.constant dense<0.000000e+00> : vector<17x8xf32>
    %325 = tpu.matmul %323, %324, %cst_136 {dimension_numbers = #tpu.dot_dimension_numbers<[1], [0], [0], [1], [0, 0, 1, 1], [], []>} : vector<17x17xbf16>, vector<17x8xbf16>, vector<17x8xf32> -> vector<17x8xf32>
    %c0_137 = arith.constant 0 : index
    %c24_138 = arith.constant 24 : index
    %326 = vector.load %arg23[%c0_137, %c24_138] : memref<17x32xf32, #tpu.memory_space<vmem>>, vector<17x8xf32>
    tpu.vector_store %arg23[%c0_137, %c24_138], %325 {strides = array<i32>} : memref<17x32xf32, #tpu.memory_space<vmem>>, vector<17x8xf32>,
    %327 = vector.extract_strided_slice %212 {offsets = [1, 0], sizes = [16, 32], strides = [1, 1]} : vector<17x32xf32> to vector<16x32xf32>
    %c0_139 = arith.constant 0 : index
    %c0_140 = arith.constant 0 : index
    %c0_141 = arith.constant 0 : index
    %328 = vector.load %arg20[%c0_139, %c0_140, %c0_141] : memref<1x16x32xf32, #tpu.memory_space<vmem>>, vector<1x16x32xf32>
    %329 = vector.shape_cast %328 : vector<1x16x32xf32> to vector<16x32xf32>
    %330 = vector.shape_cast %327 : vector<16x32xf32> to vector<1x16x32xf32>
    tpu.vector_store %arg20[%c0_139, %c0_140, %c0_141], %330 {strides = array<i32>} : memref<1x16x32xf32, #tpu.memory_space<vmem>>, vector<1x16x32xf32>,
    %331 = tpu.transpose %327, [1, 0] : vector<16x32xf32> -> vector<32x16xf32>
    %332 = arith.truncf %331 : vector<32x16xf32> to vector<32x16xbf16>
    %c0_142 = arith.constant 0 : index
    %c0_143 = arith.constant 0 : index
    %333 = vector.load %arg19[%c0_142, %c0_143] : memref<16x384xbf16, #tpu.memory_space<vmem>>, vector<16x384xbf16>
    %cst_144 = arith.constant dense<0.000000e+00> : vector<32x384xf32>
    %334 = tpu.matmul %332, %333, %cst_144 {dimension_numbers = #tpu.dot_dimension_numbers<[1], [0], [0], [1], [0, 0, 1, 1], [], []>} : vector<32x16xbf16>, vector<16x384xbf16>, vector<32x384xf32> -> vector<32x384xf32>
    %c0_145 = arith.constant 0 : index
    %c0_146 = arith.constant 0 : index
    %c0_147 = arith.constant 0 : index
    %335 = vector.load %arg21[%c0_145, %c0_146, %c0_147] : memref<1x32x384xf32, #tpu.memory_space<vmem>>, vector<1x32x384xf32>
    %336 = vector.shape_cast %335 : vector<1x32x384xf32> to vector<32x384xf32>
    %337 = vector.shape_cast %334 : vector<32x384xf32> to vector<1x32x384xf32>
    tpu.vector_store %arg21[%c0_145, %c0_146, %c0_147], %337 {strides = array<i32>} : memref<1x32x384xf32, #tpu.memory_space<vmem>>, vector<1x32x384xf32>,
    return
  }
  func.func @transform_0(%arg0: i32) -> (i32, i32, i32) {
    %c0_i32 = arith.constant 0 : i32
    %c0_i32_0 = arith.constant 0 : i32
    %c0_i32_1 = arith.constant 0 : i32
    return %arg0, %c0_i32, %c0_i32_0 : i32, i32, i32
  }
  func.func @transform_1(%arg0: i32) -> (i32, i32) {
    %c0_i32 = arith.constant 0 : i32
    %c0_i32_0 = arith.constant 0 : i32
    %c0_i32_1 = arith.constant 0 : i32
    return %c0_i32, %c0_i32_0 : i32, i32
  }
  func.func @transform_2(%arg0: i32) -> (i32, i32) {
    %c0_i32 = arith.constant 0 : i32
    %c0_i32_0 = arith.constant 0 : i32
    %c0_i32_1 = arith.constant 0 : i32
    return %c0_i32, %c0_i32_0 : i32, i32
  }
  func.func @transform_3(%arg0: i32) -> (i32, i32) {
    %c0_i32 = arith.constant 0 : i32
    %c0_i32_0 = arith.constant 0 : i32
    %c0_i32_1 = arith.constant 0 : i32
    return %c0_i32, %c0_i32_0 : i32, i32
  }
  func.func @transform_4(%arg0: i32) -> (i32, i32) {
    %c0_i32 = arith.constant 0 : i32
    %c0_i32_0 = arith.constant 0 : i32
    %c0_i32_1 = arith.constant 0 : i32
    return %c0_i32, %c0_i32_0 : i32, i32
  }
  func.func @transform_5(%arg0: i32) -> (i32, i32) {
    %c0_i32 = arith.constant 0 : i32
    %c0_i32_0 = arith.constant 0 : i32
    %c0_i32_1 = arith.constant 0 : i32
    return %c0_i32, %c0_i32_0 : i32, i32
  }
  func.func @transform_6(%arg0: i32) -> (i32, i32, i32) {
    %c0_i32 = arith.constant 0 : i32
    %c0_i32_0 = arith.constant 0 : i32
    %c0_i32_1 = arith.constant 0 : i32
    %c0_i32_2 = arith.constant 0 : i32
    return %c0_i32, %c0_i32_0, %c0_i32_1 : i32, i32, i32
  }
  func.func @transform_7(%arg0: i32) -> (i32, i32, i32) {
    %c0_i32 = arith.constant 0 : i32
    %c0_i32_0 = arith.constant 0 : i32
    %c0_i32_1 = arith.constant 0 : i32
    %c0_i32_2 = arith.constant 0 : i32
    return %c0_i32, %c0_i32_0, %c0_i32_1 : i32, i32, i32
  }
  func.func @transform_8(%arg0: i32) -> (i32, i32, i32) {
    %c0_i32 = arith.constant 0 : i32
    %c0_i32_0 = arith.constant 0 : i32
    %c0_i32_1 = arith.constant 0 : i32
    %c0_i32_2 = arith.constant 0 : i32
    return %c0_i32, %c0_i32_0, %c0_i32_1 : i32, i32, i32
  }
  func.func @transform_9(%arg0: i32) -> (i32, i32, i32) {
    %c0_i32 = arith.constant 0 : i32
    %c0_i32_0 = arith.constant 0 : i32
    %c0_i32_1 = arith.constant 0 : i32
    %c0_i32_2 = arith.constant 0 : i32
    return %c0_i32, %c0_i32_0, %c0_i32_1 : i32, i32, i32
  }
  func.func @transform_10(%arg0: i32) -> (i32, i32, i32) {
    %c0_i32 = arith.constant 0 : i32
    %c0_i32_0 = arith.constant 0 : i32
    %c0_i32_1 = arith.constant 0 : i32
    %c0_i32_2 = arith.constant 0 : i32
    return %c0_i32, %c0_i32_0, %c0_i32_1 : i32, i32, i32
  }
  func.func @transform_11(%arg0: i32) -> (i32, i32, i32) {
    %c0_i32 = arith.constant 0 : i32
    %c0_i32_0 = arith.constant 0 : i32
    %c0_i32_1 = arith.constant 0 : i32
    %c0_i32_2 = arith.constant 0 : i32
    return %c0_i32, %c0_i32_0, %c0_i32_1 : i32, i32, i32
  }
  func.func @transform_12(%arg0: i32) -> (i32, i32, i32) {
    %c0_i32 = arith.constant 0 : i32
    %c0_i32_0 = arith.constant 0 : i32
    %c0_i32_1 = arith.constant 0 : i32
    %c0_i32_2 = arith.constant 0 : i32
    return %c0_i32, %c0_i32_0, %c0_i32_1 : i32, i32, i32
  }
  func.func @transform_13(%arg0: i32) -> (i32, i32, i32) {
    %c0_i32 = arith.constant 0 : i32
    %c0_i32_0 = arith.constant 0 : i32
    %c0_i32_1 = arith.constant 0 : i32
    %c0_i32_2 = arith.constant 0 : i32
    return %c0_i32, %c0_i32_0, %c0_i32_1 : i32, i32, i32
  }
  func.func @transform_14(%arg0: i32) -> (i32, i32, i32) {
    %c0_i32 = arith.constant 0 : i32
    %c0_i32_0 = arith.constant 0 : i32
    %c0_i32_1 = arith.constant 0 : i32
    %c0_i32_2 = arith.constant 0 : i32
    return %c0_i32, %c0_i32_0, %c0_i32_1 : i32, i32, i32
  }
  func.func @transform_15(%arg0: i32) -> (i32, i32, i32) {
    %c0_i32 = arith.constant 0 : i32
    %c0_i32_0 = arith.constant 0 : i32
    %c0_i32_1 = arith.constant 0 : i32
    %c0_i32_2 = arith.constant 0 : i32
    return %c0_i32, %c0_i32_0, %c0_i32_1 : i32, i32, i32
  }
  func.func @transform_16(%arg0: i32) -> (i32, i32, i32) {
    %c0_i32 = arith.constant 0 : i32
    %c0_i32_0 = arith.constant 0 : i32
    %c0_i32_1 = arith.constant 0 : i32
    %c0_i32_2 = arith.constant 0 : i32
    return %c0_i32, %c0_i32_0, %c0_i32_1 : i32, i32, i32
  }
  func.func @transform_17(%arg0: i32) -> (i32, i32, i32) {
    %c0_i32 = arith.constant 0 : i32
    %c0_i32_0 = arith.constant 0 : i32
    %c0_i32_1 = arith.constant 0 : i32
    %c0_i32_2 = arith.constant 0 : i32
    return %c0_i32, %c0_i32_0, %c0_i32_1 : i32, i32, i32
  }
  func.func @transform_18(%arg0: i32) -> (i32, i32) {
    %c0_i32 = arith.constant 0 : i32
    %c0_i32_0 = arith.constant 0 : i32
    %c0_i32_1 = arith.constant 0 : i32
    return %c0_i32, %c0_i32_0 : i32, i32
  }
  func.func @transform_19(%arg0: i32) -> (i32, i32, i32) {
    %c0_i32 = arith.constant 0 : i32
    %c0_i32_0 = arith.constant 0 : i32
    %c0_i32_1 = arith.constant 0 : i32
    return %arg0, %c0_i32, %c0_i32_0 : i32, i32, i32
  }
  func.func @transform_20(%arg0: i32) -> (i32, i32, i32) {
    %c0_i32 = arith.constant 0 : i32
    %c0_i32_0 = arith.constant 0 : i32
    %c0_i32_1 = arith.constant 0 : i32
    return %arg0, %c0_i32, %c0_i32_0 : i32, i32, i32
  }
}

</mosaic_0001>

<llo_original>
// kernel: clip_vision_tower_forward.1
$region0: #{clip_vision_tower_forward.1}
  #allocation0 [shape = 'u32[]', space=smem, size = 0x4, offset = 0x4, fixed_abs, tag = 'smem constant byte address 0x4 - core index']
  #allocation1 [shape = 'u32[72,128]{1,0:T(1,128)}', space=vmem, size = 0x9000, scoped, tag = 'internal scratch']
  #allocation2 [shape = 'f32[17,32]{1,0:T(8,128)}', space=vmem, size = 0x3000, scoped, tag = 'scratch operand']
  #allocation3 [shape = 'f32[17,32]{1,0:T(8,128)}', space=vmem, size = 0x3000, scoped, tag = 'scratch operand']
  %s0 = inlined_call_operand.vmem [shape: f32[2,16,48], index: 0, kind: input, shape index: {}]
  %s1 = inlined_call_operand.vmem [shape: bf16[48,32], index: 1, kind: input, shape index: {}]
  %s2 = inlined_call_operand.vmem [shape: f32[1,32], index: 2, kind: input, shape index: {}]
  %s3 = inlined_call_operand.vmem [shape: f32[17,32], index: 3, kind: input, shape index: {}]
  %s4 = inlined_call_operand.vmem [shape: f32[1,32], index: 4, kind: input, shape index: {}]
  %s5 = inlined_call_operand.vmem [shape: f32[1,32], index: 5, kind: input, shape index: {}]
  %s6 = inlined_call_operand.vmem [shape: f32[2,1,32], index: 6, kind: input, shape index: {}]
  %s7 = inlined_call_operand.vmem [shape: f32[2,1,32], index: 7, kind: input, shape index: {}]
  %s8 = inlined_call_operand.vmem [shape: bf16[2,32,96], index: 8, kind: input, shape index: {}]
  %s9 = inlined_call_operand.vmem [shape: f32[2,1,96], index: 9, kind: input, shape index: {}]
  %s10 = inlined_call_operand.vmem [shape: bf16[2,32,32], index: 10, kind: input, shape index: {}]
  %s11 = inlined_call_operand.vmem [shape: f32[2,1,32], index: 11, kind: input, shape index: {}]
  %s12 = inlined_call_operand.vmem [shape: f32[2,1,32], index: 12, kind: input, shape index: {}]
  %s13 = inlined_call_operand.vmem [shape: f32[2,1,32], index: 13, kind: input, shape index: {}]
  %s14 = inlined_call_operand.vmem [shape: bf16[2,32,64], index: 14, kind: input, shape index: {}]
  %s15 = inlined_call_operand.vmem [shape: f32[2,1,64], index: 15, kind: input, shape index: {}]
  %s16 = inlined_call_operand.vmem [shape: bf16[2,64,32], index: 16, kind: input, shape index: {}]
  %s17 = inlined_call_operand.vmem [shape: f32[2,1,32], index: 17, kind: input, shape index: {}]
  %s18 = inlined_call_operand.vmem [shape: bf16[16,384], index: 18, kind: input, shape index: {}]
  %s19 = inlined_call_operand.vmem [shape: f32[2,16,32], index: 19, kind: output, shape index: {0}]
  %s20 = inlined_call_operand.vmem [shape: f32[2,32,384], index: 20, kind: output, shape index: {1}]
  %21 = xla_tuple %s19, %s20
  %s22 = sld [smem:[#allocation0]]
  $region117: #{clip_vision_tower_forward.1} parent=0
    _
  %s24 = ssub.s32 1, %s22
  %s25 = scalar_select 0, %s24, %s22
  loop: start=0, step=1, limit=4
  $region2: #{clip_vision_tower_forward.1} parent=0 // loop_pre_header
    _
  $region3: #{clip_vision_tower_forward.1} parent=0 // loop_header
    %s27 = sphi 0, %s31
    %p28 = scmp.ge.s32.totalorder %s27, 4
    %s37 = sphi 0, %s39
    %s40 = sphi 0, %s37
    %s41 = sphi 0, %s40
    %s57 = sphi 0, %s41
    %s61 = sphi 0, %s61
    %s63 = sphi 0, %s61
    %s64 = sphi 0, %s63
    %s78 = sphi 0, %s64
    %s82 = sphi 0, %s82
    %s84 = sphi 0, %s82
    %s85 = sphi 0, %s84
    %s99 = sphi 0, %s85
    %s103 = sphi 0, %s103
    %s105 = sphi 0, %s103
    %s106 = sphi 0, %s105
    %s120 = sphi 0, %s106
    %s124 = sphi 0, %s124
    %s126 = sphi 0, %s124
    %s127 = sphi 0, %s126
    %s141 = sphi 0, %s127
    %s145 = sphi 0, %s145
    %s147 = sphi 0, %s145
    %s148 = sphi 0, %s147
    %s162 = sphi 0, %s148
    %s166 = sphi 0, %s166
    %s168 = sphi 0, %s166
    %s169 = sphi 0, %s168
    %s183 = sphi 0, %s169
    %s187 = sphi 0, %s187
    %s189 = sphi 0, %s187
    %s190 = sphi 0, %s189
    %s204 = sphi 0, %s190
    %s208 = sphi 0, %s208
    %s210 = sphi 0, %s208
    %s211 = sphi 0, %s210
    %s225 = sphi 0, %s211
    %s229 = sphi 0, %s229
    %s231 = sphi 0, %s229
    %s232 = sphi 0, %s231
    %s246 = sphi 0, %s232
    %s250 = sphi 0, %s250
    %s252 = sphi 0, %s250
    %s253 = sphi 0, %s252
    %s267 = sphi 0, %s253
    %s271 = sphi 0, %s271
    %s273 = sphi 0, %s271
    %s274 = sphi 0, %s273
    %s288 = sphi 0, %s274
    %s292 = sphi 0, %s292
    %s294 = sphi 0, %s292
    %s295 = sphi 0, %s294
    %s309 = sphi 0, %s295
    %s313 = sphi 0, %s313
    %s315 = sphi 0, %s313
    %s316 = sphi 0, %s315
    %s330 = sphi 0, %s316
    %s334 = sphi 0, %s334
    %s336 = sphi 0, %s334
    %s337 = sphi 0, %s336
    %s351 = sphi 0, %s337
    %s355 = sphi 0, %s355
    %s357 = sphi 0, %s355
    %s358 = sphi 0, %s357
    %s372 = sphi 0, %s358
    %s376 = sphi 0, %s376
    %s378 = sphi 0, %s376
    %s379 = sphi 0, %s378
    %s393 = sphi 0, %s379
    %s397 = sphi 0, %s397
    %s399 = sphi 0, %s397
    %s400 = sphi 0, %s399
    %s414 = sphi 0, %s400
    %s418 = sphi 0, %s418
    %s420 = sphi 0, %s418
    %s421 = sphi 0, %s420
    %s435 = sphi 0, %s421
    %s441 = sphi 0, %s443
    %s444 = sphi 0, %s441
    %s445 = sphi 0, %s444
    %s461 = sphi 0, %s445
    %s467 = sphi 0, %s469
    %s470 = sphi 0, %s467
    %s471 = sphi 0, %s470
    %s487 = sphi 0, %s471
  $region4: #{clip_vision_tower_forward.1} parent=0 // loop_header_branch
    %30 = sbr.rel (%p28) target = $region8
  $region5: #{clip_vision_tower_forward.1} parent=0 // loop_body
    %s32 = ssub.s32 %s27, 1
    %s33 = ssub.s32 %s27, 2
    %s34 = sadd.s32 %s27, 1
    %s35 = ssub.s32 %s27, %s34
    %p36 = scmp.eq.s32.totalorder %s35, 0
    %s38 = sadd.s32 %s37, 1
    %s39 = scalar_select %p36, %s37, %s38
    %p42 = pneg %p36
    %p43 = scmp.eq.s32.totalorder %s27, 1
    %p44 = por %p42, %p43
    %p45 = scmp.ne.s32.totalorder %s37, %s40
    %p46 = scmp.eq.s32.totalorder %s27, 0
    %p47 = por %p45, %p46
    %p48 = scmp.ne.s32.totalorder %s37, %s40
    %p49 = scmp.eq.s32.totalorder %s32, 1
    %p50 = por %p48, %p49
    %p51 = scmp.ne.s32.totalorder %s40, %s41
    %p52 = scmp.eq.s32.totalorder %s32, 0
    %p53 = por %p51, %p52
    %p54 = scmp.ne.s32.totalorder %s40, %s41
    %p55 = scmp.eq.s32.totalorder %s33, 1
    %p56 = por %p54, %p55
    %p58 = scmp.ne.s32.totalorder %s41, %s57
    %p59 = scmp.eq.s32.totalorder %s33, 0
    %p60 = por %p58, %p59
    %s62 = sadd.s32 %s61, 1
    %p65 = scmp.eq.s32.totalorder %s27, 1
    %p66 = scmp.ne.s32.totalorder %s61, %s63
    %p67 = scmp.eq.s32.totalorder %s27, 0
    %p68 = por %p66, %p67
    %p69 = scmp.ne.s32.totalorder %s61, %s63
    %p70 = scmp.eq.s32.totalorder %s32, 1
    %p71 = por %p69, %p70
    %p72 = scmp.ne.s32.totalorder %s63, %s64
    %p73 = scmp.eq.s32.totalorder %s32, 0
    %p74 = por %p72, %p73
    %p75 = scmp.ne.s32.totalorder %s63, %s64
    %p76 = scmp.eq.s32.totalorder %s33, 1
    %p77 = por %p75, %p76
    %p79 = scmp.ne.s32.totalorder %s64, %s78
    %p80 = scmp.eq.s32.totalorder %s33, 0
    %p81 = por %p79, %p80
    %s83 = sadd.s32 %s82, 1
    %p86 = scmp.eq.s32.totalorder %s27, 1
    %p87 = scmp.ne.s32.totalorder %s82, %s84
    %p88 = scmp.eq.s32.totalorder %s27, 0
    %p89 = por %p87, %p88
    %p90 = scmp.ne.s32.totalorder %s82, %s84
    %p91 = scmp.eq.s32.totalorder %s32, 1
    %p92 = por %p90, %p91
    %p93 = scmp.ne.s32.totalorder %s84, %s85
    %p94 = scmp.eq.s32.totalorder %s32, 0
    %p95 = por %p93, %p94
    %p96 = scmp.ne.s32.totalorder %s84, %s85
    %p97 = scmp.eq.s32.totalorder %s33, 1
    %p98 = por %p96, %p97
    %p100 = scmp.ne.s32.totalorder %s85, %s99
    %p101 = scmp.eq.s32.totalorder %s33, 0
    %p102 = por %p100, %p101
    %s104 = sadd.s32 %s103, 1
    %p107 = scmp.eq.s32.totalorder %s27, 1
    %p108 = scmp.ne.s32.totalorder %s103, %s105
    %p109 = scmp.eq.s32.totalorder %s27, 0
    %p110 = por %p108, %p109
    %p111 = scmp.ne.s32.totalorder %s103, %s105
    %p112 = scmp.eq.s32.totalorder %s32, 1
    %p113 = por %p111, %p112
    %p114 = scmp.ne.s32.totalorder %s105, %s106
    %p115 = scmp.eq.s32.totalorder %s32, 0
    %p116 = por %p114, %p115
    %p117 = scmp.ne.s32.totalorder %s105, %s106
    %p118 = scmp.eq.s32.totalorder %s33, 1
    %p119 = por %p117, %p118
    %p121 = scmp.ne.s32.totalorder %s106, %s120
    %p122 = scmp.eq.s32.totalorder %s33, 0
    %p123 = por %p121, %p122
    %s125 = sadd.s32 %s124, 1
    %p128 = scmp.eq.s32.totalorder %s27, 1
    %p129 = scmp.ne.s32.totalorder %s124, %s126
    %p130 = scmp.eq.s32.totalorder %s27, 0
    %p131 = por %p129, %p130
    %p132 = scmp.ne.s32.totalorder %s124, %s126
    %p133 = scmp.eq.s32.totalorder %s32, 1
    %p134 = por %p132, %p133
    %p135 = scmp.ne.s32.totalorder %s126, %s127
    %p136 = scmp.eq.s32.totalorder %s32, 0
    %p137 = por %p135, %p136
    %p138 = scmp.ne.s32.totalorder %s126, %s127
    %p139 = scmp.eq.s32.totalorder %s33, 1
    %p140 = por %p138, %p139
    %p142 = scmp.ne.s32.totalorder %s127, %s141
    %p143 = scmp.eq.s32.totalorder %s33, 0
    %p144 = por %p142, %p143
    %s146 = sadd.s32 %s145, 1
    %p149 = scmp.eq.s32.totalorder %s27, 1
    %p150 = scmp.ne.s32.totalorder %s145, %s147
    %p151 = scmp.eq.s32.totalorder %s27, 0
    %p152 = por %p150, %p151
    %p153 = scmp.ne.s32.totalorder %s145, %s147
    %p154 = scmp.eq.s32.totalorder %s32, 1
    %p155 = por %p153, %p154
    %p156 = scmp.ne.s32.totalorder %s147, %s148
    %p157 = scmp.eq.s32.totalorder %s32, 0
    %p158 = por %p156, %p157
    %p159 = scmp.ne.s32.totalorder %s147, %s148
    %p160 = scmp.eq.s32.totalorder %s33, 1
    %p161 = por %p159, %p160
    %p163 = scmp.ne.s32.totalorder %s148, %s162
    %p164 = scmp.eq.s32.totalorder %s33, 0
    %p165 = por %p163, %p164
    %s167 = sadd.s32 %s166, 1
    %p170 = scmp.eq.s32.totalorder %s27, 1
    %p171 = scmp.ne.s32.totalorder %s166, %s168
    %p172 = scmp.eq.s32.totalorder %s27, 0
    %p173 = por %p171, %p172
    %p174 = scmp.ne.s32.totalorder %s166, %s168
    %p175 = scmp.eq.s32.totalorder %s32, 1
    %p176 = por %p174, %p175
    %p177 = scmp.ne.s32.totalorder %s168, %s169
    %p178 = scmp.eq.s32.totalorder %s32, 0
    %p179 = por %p177, %p178
    %p180 = scmp.ne.s32.totalorder %s168, %s169
    %p181 = scmp.eq.s32.totalorder %s33, 1
    %p182 = por %p180, %p181
    %p184 = scmp.ne.s32.totalorder %s169, %s183
    %p185 = scmp.eq.s32.totalorder %s33, 0
    %p186 = por %p184, %p185
    %s188 = sadd.s32 %s187, 1
    %p191 = scmp.eq.s32.totalorder %s27, 1
    %p192 = scmp.ne.s32.totalorder %s187, %s189
    %p193 = scmp.eq.s32.totalorder %s27, 0
    %p194 = por %p192, %p193
    %p195 = scmp.ne.s32.totalorder %s187, %s189
    %p196 = scmp.eq.s32.totalorder %s32, 1
    %p197 = por %p195, %p196
    %p198 = scmp.ne.s32.totalorder %s189, %s190
    %p199 = scmp.eq.s32.totalorder %s32, 0
    %p200 = por %p198, %p199
    %p201 = scmp.ne.s32.totalorder %s189, %s190
    %p202 = scmp.eq.s32.totalorder %s33, 1
    %p203 = por %p201, %p202
    %p205 = scmp.ne.s32.totalorder %s190, %s204
    %p206 = scmp.eq.s32.totalorder %s33, 0
    %p207 = por %p205, %p206
    %s209 = sadd.s32 %s208, 1
    %p212 = scmp.eq.s32.totalorder %s27, 1
    %p213 = scmp.ne.s32.totalorder %s208, %s210
    %p214 = scmp.eq.s32.totalorder %s27, 0
    %p215 = por %p213, %p214
    %p216 = scmp.ne.s32.totalorder %s208, %s210
    %p217 = scmp.eq.s32.totalorder %s32, 1
    %p218 = por %p216, %p217
    %p219 = scmp.ne.s32.totalorder %s210, %s211
    %p220 = scmp.eq.s32.totalorder %s32, 0
    %p221 = por %p219, %p220
    %p222 = scmp.ne.s32.totalorder %s210, %s211
    %p223 = scmp.eq.s32.totalorder %s33, 1
    %p224 = por %p222, %p223
    %p226 = scmp.ne.s32.totalorder %s211, %s225
    %p227 = scmp.eq.s32.totalorder %s33, 0
    %p228 = por %p226, %p227
    %s230 = sadd.s32 %s229, 1
    %p233 = scmp.eq.s32.totalorder %s27, 1
    %p234 = scmp.ne.s32.totalorder %s229, %s231
    %p235 = scmp.eq.s32.totalorder %s27, 0
    %p236 = por %p234, %p235
    %p237 = scmp.ne.s32.totalorder %s229, %s231
    %p238 = scmp.eq.s32.totalorder %s32, 1
    %p239 = por %p237, %p238
    %p240 = scmp.ne.s32.totalorder %s231, %s232
    %p241 = scmp.eq.s32.totalorder %s32, 0
    %p242 = por %p240, %p241
    %p243 = scmp.ne.s32.totalorder %s231, %s232
    %p244 = scmp.eq.s32.totalorder %s33, 1
    %p245 = por %p243, %p244
    %p247 = scmp.ne.s32.totalorder %s232, %s246
    %p248 = scmp.eq.s32.totalorder %s33, 0
    %p249 = por %p247, %p248
    %s251 = sadd.s32 %s250, 1
    %p254 = scmp.eq.s32.totalorder %s27, 1
    %p255 = scmp.ne.s32.totalorder %s250, %s252
    %p256 = scmp.eq.s32.totalorder %s27, 0
    %p257 = por %p255, %p256
    %p258 = scmp.ne.s32.totalorder %s250, %s252
    %p259 = scmp.eq.s32.totalorder %s32, 1
    %p260 = por %p258, %p259
    %p261 = scmp.ne.s32.totalorder %s252, %s253
    %p262 = scmp.eq.s32.totalorder %s32, 0
    %p263 = por %p261, %p262
    %p264 = scmp.ne.s32.totalorder %s252, %s253
    %p265 = scmp.eq.s32.totalorder %s33, 1
    %p266 = por %p264, %p265
    %p268 = scmp.ne.s32.totalorder %s253, %s267
    %p269 = scmp.eq.s32.totalorder %s33, 0
    %p270 = por %p268, %p269
    %s272 = sadd.s32 %s271, 1
    %p275 = scmp.eq.s32.totalorder %s27, 1
    %p276 = scmp.ne.s32.totalorder %s271, %s273
    %p277 = scmp.eq.s32.totalorder %s27, 0
    %p278 = por %p276, %p277
    %p279 = scmp.ne.s32.totalorder %s271, %s273
    %p280 = scmp.eq.s32.totalorder %s32, 1
    %p281 = por %p279, %p280
    %p282 = scmp.ne.s32.totalorder %s273, %s274
    %p283 = scmp.eq.s32.totalorder %s32, 0
    %p284 = por %p282, %p283
    %p285 = scmp.ne.s32.totalorder %s273, %s274
    %p286 = scmp.eq.s32.totalorder %s33, 1
    %p287 = por %p285, %p286
    %p289 = scmp.ne.s32.totalorder %s274, %s288
    %p290 = scmp.eq.s32.totalorder %s33, 0
    %p291 = por %p289, %p290
    %s293 = sadd.s32 %s292, 1
    %p296 = scmp.eq.s32.totalorder %s27, 1
    %p297 = scmp.ne.s32.totalorder %s292, %s294
    %p298 = scmp.eq.s32.totalorder %s27, 0
    %p299 = por %p297, %p298
    %p300 = scmp.ne.s32.totalorder %s292, %s294
    %p301 = scmp.eq.s32.totalorder %s32, 1
    %p302 = por %p300, %p301
    %p303 = scmp.ne.s32.totalorder %s294, %s295
    %p304 = scmp.eq.s32.totalorder %s32, 0
    %p305 = por %p303, %p304
    %p306 = scmp.ne.s32.totalorder %s294, %s295
    %p307 = scmp.eq.s32.totalorder %s33, 1
    %p308 = por %p306, %p307
    %p310 = scmp.ne.s32.totalorder %s295, %s309
    %p311 = scmp.eq.s32.totalorder %s33, 0
    %p312 = por %p310, %p311
    %s314 = sadd.s32 %s313, 1
    %p317 = scmp.eq.s32.totalorder %s27, 1
    %p318 = scmp.ne.s32.totalorder %s313, %s315
    %p319 = scmp.eq.s32.totalorder %s27, 0
    %p320 = por %p318, %p319
    %p321 = scmp.ne.s32.totalorder %s313, %s315
    %p322 = scmp.eq.s32.totalorder %s32, 1
    %p323 = por %p321, %p322
    %p324 = scmp.ne.s32.totalorder %s315, %s316
    %p325 = scmp.eq.s32.totalorder %s32, 0
    %p326 = por %p324, %p325
    %p327 = scmp.ne.s32.totalorder %s315, %s316
    %p328 = scmp.eq.s32.totalorder %s33, 1
    %p329 = por %p327, %p328
    %p331 = scmp.ne.s32.totalorder %s316, %s330
    %p332 = scmp.eq.s32.totalorder %s33, 0
    %p333 = por %p331, %p332
    %s335 = sadd.s32 %s334, 1
    %p338 = scmp.eq.s32.totalorder %s27, 1
    %p339 = scmp.ne.s32.totalorder %s334, %s336
    %p340 = scmp.eq.s32.totalorder %s27, 0
    %p341 = por %p339, %p340
    %p342 = scmp.ne.s32.totalorder %s334, %s336
    %p343 = scmp.eq.s32.totalorder %s32, 1
    %p344 = por %p342, %p343
    %p345 = scmp.ne.s32.totalorder %s336, %s337
    %p346 = scmp.eq.s32.totalorder %s32, 0
    %p347 = por %p345, %p346
    %p348 = scmp.ne.s32.totalorder %s336, %s337
    %p349 = scmp.eq.s32.totalorder %s33, 1
    %p350 = por %p348, %p349
    %p352 = scmp.ne.s32.totalorder %s337, %s351
    %p353 = scmp.eq.s32.totalorder %s33, 0
    %p354 = por %p352, %p353
    %s356 = sadd.s32 %s355, 1
    %p359 = scmp.eq.s32.totalorder %s27, 1
    %p360 = scmp.ne.s32.totalorder %s355, %s357
    %p361 = scmp.eq.s32.totalorder %s27, 0
    %p362 = por %p360, %p361
    %p363 = scmp.ne.s32.totalorder %s355, %s357
    %p364 = scmp.eq.s32.totalorder %s32, 1
    %p365 = por %p363, %p364
    %p366 = scmp.ne.s32.totalorder %s357, %s358
    %p367 = scmp.eq.s32.totalorder %s32, 0
    %p368 = por %p366, %p367
    %p369 = scmp.ne.s32.totalorder %s357, %s358
    %p370 = scmp.eq.s32.totalorder %s33, 1
    %p371 = por %p369, %p370
    %p373 = scmp.ne.s32.totalorder %s358, %s372
    %p374 = scmp.eq.s32.totalorder %s33, 0
    %p375 = por %p373, %p374
    %s377 = sadd.s32 %s376, 1
    %p380 = scmp.eq.s32.totalorder %s27, 1
    %p381 = scmp.ne.s32.totalorder %s376, %s378
    %p382 = scmp.eq.s32.totalorder %s27, 0
    %p383 = por %p381, %p382
    %p384 = scmp.ne.s32.totalorder %s376, %s378
    %p385 = scmp.eq.s32.totalorder %s32, 1
    %p386 = por %p384, %p385
    %p387 = scmp.ne.s32.totalorder %s378, %s379
    %p388 = scmp.eq.s32.totalorder %s32, 0
    %p389 = por %p387, %p388
    %p390 = scmp.ne.s32.totalorder %s378, %s379
    %p391 = scmp.eq.s32.totalorder %s33, 1
    %p392 = por %p390, %p391
    %p394 = scmp.ne.s32.totalorder %s379, %s393
    %p395 = scmp.eq.s32.totalorder %s33, 0
    %p396 = por %p394, %p395
    %s398 = sadd.s32 %s397, 1
    %p401 = scmp.eq.s32.totalorder %s27, 1
    %p402 = scmp.ne.s32.totalorder %s397, %s399
    %p403 = scmp.eq.s32.totalorder %s27, 0
    %p404 = por %p402, %p403
    %p405 = scmp.ne.s32.totalorder %s397, %s399
    %p406 = scmp.eq.s32.totalorder %s32, 1
    %p407 = por %p405, %p406
    %p408 = scmp.ne.s32.totalorder %s399, %s400
    %p409 = scmp.eq.s32.totalorder %s32, 0
    %p410 = por %p408, %p409
    %p411 = scmp.ne.s32.totalorder %s399, %s400
    %p412 = scmp.eq.s32.totalorder %s33, 1
    %p413 = por %p411, %p412
    %p415 = scmp.ne.s32.totalorder %s400, %s414
    %p416 = scmp.eq.s32.totalorder %s33, 0
    %p417 = por %p415, %p416
    %s419 = sadd.s32 %s418, 1
    %p422 = scmp.eq.s32.totalorder %s27, 1
    %p423 = scmp.ne.s32.totalorder %s418, %s420
    %p424 = scmp.eq.s32.totalorder %s27, 0
    %p425 = por %p423, %p424
    %p426 = scmp.ne.s32.totalorder %s418, %s420
    %p427 = scmp.eq.s32.totalorder %s32, 1
    %p428 = por %p426, %p427
    %p429 = scmp.ne.s32.totalorder %s420, %s421
    %p430 = scmp.eq.s32.totalorder %s32, 0
    %p431 = por %p429, %p430
    %p432 = scmp.ne.s32.totalorder %s420, %s421
    %p433 = scmp.eq.s32.totalorder %s33, 1
    %p434 = por %p432, %p433
    %p436 = scmp.ne.s32.totalorder %s421, %s435
    %p437 = scmp.eq.s32.totalorder %s33, 0
    %p438 = por %p436, %p437
    %s439 = ssub.s32 %s27, %s34
    %p440 = scmp.eq.s32.totalorder %s439, 0
    %s442 = sadd.s32 %s441, 1
    %s443 = scalar_select %p440, %s441, %s442
    %p446 = pneg %p440
    %p447 = scmp.eq.s32.totalorder %s27, 1
    %p448 = por %p446, %p447
    %p449 = scmp.ne.s32.totalorder %s441, %s444
    %p450 = scmp.eq.s32.totalorder %s27, 0
    %p451 = por %p449, %p450
    %p452 = scmp.ne.s32.totalorder %s441, %s444
    %p453 = scmp.eq.s32.totalorder %s32, 1
    %p454 = por %p452, %p453
    %p455 = scmp.ne.s32.totalorder %s444, %s445
    %p456 = scmp.eq.s32.totalorder %s32, 0
    %p457 = por %p455, %p456
    %p458 = scmp.ne.s32.totalorder %s444, %s445
    %p459 = scmp.eq.s32.totalorder %s33, 1
    %p460 = por %p458, %p459
    %p462 = scmp.ne.s32.totalorder %s445, %s461
    %p463 = scmp.eq.s32.totalorder %s33, 0
    %p464 = por %p462, %p463
    %s465 = ssub.s32 %s27, %s34
    %p466 = scmp.eq.s32.totalorder %s465, 0
    %s468 = sadd.s32 %s467, 1
    %s469 = scalar_select %p466, %s467, %s468
    %p472 = pneg %p466
    %p473 = scmp.eq.s32.totalorder %s27, 1
    %p474 = por %p472, %p473
    %p475 = scmp.ne.s32.totalorder %s467, %s470
    %p476 = scmp.eq.s32.totalorder %s27, 0
    %p477 = por %p475, %p476
    %p478 = scmp.ne.s32.totalorder %s467, %s470
    %p479 = scmp.eq.s32.totalorder %s32, 1
    %p480 = por %p478, %p479
    %p481 = scmp.ne.s32.totalorder %s470, %s471
    %p482 = scmp.eq.s32.totalorder %s32, 0
    %p483 = por %p481, %p482
    %p484 = scmp.ne.s32.totalorder %s470, %s471
    %p485 = scmp.eq.s32.totalorder %s33, 1
    %p486 = por %p484, %p485
    %p488 = scmp.ne.s32.totalorder %s471, %s487
    %p489 = scmp.eq.s32.totalorder %s33, 0
    %p490 = por %p488, %p489
    %p491 = scmp.le.s32.totalorder 1, %s27
    %p492 = scmp.lt.s32.totalorder %s27, 3
    %p493 = pnand %p491, %p492
    %p494 = pneg %p493
    // Predicated region
    $region9: #{clip_vision_tower_forward.1} parent=5 // pred_check
      _
    $region10: #{clip_vision_tower_forward.1} parent=5 // pred_check_branch
      %496 = sbr.rel (%p493) target = $region12
    $region11: #{clip_vision_tower_forward.1} parent=5 // pred_region
      %s497 = ssub.s32 %s27, 1
      // Predicated region
      $region13: #{clip_vision_tower_forward.1} parent=11 // pred_check
        %p498 = pneg %p74
      $region14: #{clip_vision_tower_forward.1} parent=11 // pred_check_branch
        %500 = sbr.rel (%p498) target = $region16
      $region15: #{clip_vision_tower_forward.1} parent=11 // pred_region
        _
      $region16: #{clip_vision_tower_forward.1} parent=11 // pred_fallthru
        _
      // Predicated region
      $region17: #{clip_vision_tower_forward.1} parent=11 // pred_check
        %p501 = pneg %p95
      $region18: #{clip_vision_tower_forward.1} parent=11 // pred_check_branch
        %503 = sbr.rel (%p501) target = $region20
      $region19: #{clip_vision_tower_forward.1} parent=11 // pred_region
        _
      $region20: #{clip_vision_tower_forward.1} parent=11 // pred_fallthru
        _
      // Predicated region
      $region21: #{clip_vision_tower_forward.1} parent=11 // pred_check
        %p504 = pneg %p116
      $region22: #{clip_vision_tower_forward.1} parent=11 // pred_check_branch
        %506 = sbr.rel (%p504) target = $region24
      $region23: #{clip_vision_tower_forward.1} parent=11 // pred_region
        _
      $region24: #{clip_vision_tower_forward.1} parent=11 // pred_fallthru
        _
      // Predicated region
      $region25: #{clip_vision_tower_forward.1} parent=11 // pred_check
        %p507 = pneg %p137
      $region26: #{clip_vision_tower_forward.1} parent=11 // pred_check_branch
        %509 = sbr.rel (%p507) target = $region28
      $region27: #{clip_vision_tower_forward.1} parent=11 // pred_region
        _
      $region28: #{clip_vision_tower_forward.1} parent=11 // pred_fallthru
        _
      // Predicated region
      $region29: #{clip_vision_tower_forward.1} parent=11 // pred_check
        %p510 = pneg %p158
      $region30: #{clip_vision_tower_forward.1} parent=11 // pred_check_branch
        %512 = sbr.rel (%p510) target = $region32
      $region31: #{clip_vision_tower_forward.1} parent=11 // pred_region
        _
      $region32: #{clip_vision_tower_forward.1} parent=11 // pred_fallthru
        _
      // Predicated region
      $region33: #{clip_vision_tower_forward.1} parent=11 // pred_check
        %p513 = pneg %p179
      $region34: #{clip_vision_tower_forward.1} parent=11 // pred_check_branch
        %515 = sbr.rel (%p513) target = $region36
      $region35: #{clip_vision_tower_forward.1} parent=11 // pred_region
        _
      $region36: #{clip_vision_tower_forward.1} parent=11 // pred_fallthru
        _
      // Predicated region
      $region37: #{clip_vision_tower_forward.1} parent=11 // pred_check
        %p516 = pneg %p200
      $region38: #{clip_vision_tower_forward.1} parent=11 // pred_check_branch
        %518 = sbr.rel (%p516) target = $region40
      $region39: #{clip_vision_tower_forward.1} parent=11 // pred_region
        _
      $region40: #{clip_vision_tower_forward.1} parent=11 // pred_fallthru
        _
      // Predicated region
      $region41: #{clip_vision_tower_forward.1} parent=11 // pred_check
        %p519 = pneg %p221
      $region42: #{clip_vision_tower_forward.1} parent=11 // pred_check_branch
        %521 = sbr.rel (%p519) target = $region44
      $region43: #{clip_vision_tower_forward.1} parent=11 // pred_region
        _
      $region44: #{clip_vision_tower_forward.1} parent=11 // pred_fallthru
        _
      // Predicated region
      $region45: #{clip_vision_tower_forward.1} parent=11 // pred_check
        %p522 = pneg %p242
      $region46: #{clip_vision_tower_forward.1} parent=11 // pred_check_branch
        %524 = sbr.rel (%p522) target = $region48
      $region47: #{clip_vision_tower_forward.1} parent=11 // pred_region
        _
      $region48: #{clip_vision_tower_forward.1} parent=11 // pred_fallthru
        _
      // Predicated region
      $region49: #{clip_vision_tower_forward.1} parent=11 // pred_check
        %p525 = pneg %p263
      $region50: #{clip_vision_tower_forward.1} parent=11 // pred_check_branch
        %527 = sbr.rel (%p525) target = $region52
      $region51: #{clip_vision_tower_forward.1} parent=11 // pred_region
        _
      $region52: #{clip_vision_tower_forward.1} parent=11 // pred_fallthru
        _
      // Predicated region
      $region53: #{clip_vision_tower_forward.1} parent=11 // pred_check
        %p528 = pneg %p284
      $region54: #{clip_vision_tower_forward.1} parent=11 // pred_check_branch
        %530 = sbr.rel (%p528) target = $region56
      $region55: #{clip_vision_tower_forward.1} parent=11 // pred_region
        _
      $region56: #{clip_vision_tower_forward.1} parent=11 // pred_fallthru
        _
      // Predicated region
      $region57: #{clip_vision_tower_forward.1} parent=11 // pred_check
        %p531 = pneg %p305
      $region58: #{clip_vision_tower_forward.1} parent=11 // pred_check_branch
        %533 = sbr.rel (%p531) target = $region60
      $region59: #{clip_vision_tower_forward.1} parent=11 // pred_region
        _
      $region60: #{clip_vision_tower_forward.1} parent=11 // pred_fallthru
        _
      // Predicated region
      $region61: #{clip_vision_tower_forward.1} parent=11 // pred_check
        %p534 = pneg %p326
      $region62: #{clip_vision_tower_forward.1} parent=11 // pred_check_branch
        %536 = sbr.rel (%p534) target = $region64
      $region63: #{clip_vision_tower_forward.1} parent=11 // pred_region
        _
      $region64: #{clip_vision_tower_forward.1} parent=11 // pred_fallthru
        _
      // Predicated region
      $region65: #{clip_vision_tower_forward.1} parent=11 // pred_check
        %p537 = pneg %p347
      $region66: #{clip_vision_tower_forward.1} parent=11 // pred_check_branch
        %539 = sbr.rel (%p537) target = $region68
      $region67: #{clip_vision_tower_forward.1} parent=11 // pred_region
        _
      $region68: #{clip_vision_tower_forward.1} parent=11 // pred_fallthru
        _
      // Predicated region
      $region69: #{clip_vision_tower_forward.1} parent=11 // pred_check
        %p540 = pneg %p368
      $region70: #{clip_vision_tower_forward.1} parent=11 // pred_check_branch
        %542 = sbr.rel (%p540) target = $region72
      $region71: #{clip_vision_tower_forward.1} parent=11 // pred_region
        _
      $region72: #{clip_vision_tower_forward.1} parent=11 // pred_fallthru
        _
      // Predicated region
      $region73: #{clip_vision_tower_forward.1} parent=11 // pred_check
        %p543 = pneg %p389
      $region74: #{clip_vision_tower_forward.1} parent=11 // pred_check_branch
        %545 = sbr.rel (%p543) target = $region76
      $region75: #{clip_vision_tower_forward.1} parent=11 // pred_region
        _
      $region76: #{clip_vision_tower_forward.1} parent=11 // pred_fallthru
        _
      // Predicated region
      $region77: #{clip_vision_tower_forward.1} parent=11 // pred_check
        %p546 = pneg %p410
      $region78: #{clip_vision_tower_forward.1} parent=11 // pred_check_branch
        %548 = sbr.rel (%p546) target = $region80
      $region79: #{clip_vision_tower_forward.1} parent=11 // pred_region
        _
      $region80: #{clip_vision_tower_forward.1} parent=11 // pred_fallthru
        _
      // Predicated region
      $region81: #{clip_vision_tower_forward.1} parent=11 // pred_check
        %p549 = pneg %p431
      $region82: #{clip_vision_tower_forward.1} parent=11 // pred_check_branch
        %551 = sbr.rel (%p549) target = $region84
      $region83: #{clip_vision_tower_forward.1} parent=11 // pred_region
        _
      $region84: #{clip_vision_tower_forward.1} parent=11 // pred_fallthru
        _
    $region12: #{clip_vision_tower_forward.1} parent=5 // pred_fallthru
      _
    %p552 = scmp.lt.s32.totalorder %s27, 2
    // Predicated region
    $region85: #{clip_vision_tower_forward.1} parent=5 // pred_check
      %p553 = pneg %p552
    $region86: #{clip_vision_tower_forward.1} parent=5 // pred_check_branch
      %555 = sbr.rel (%p553) target = $region88
    $region87: #{clip_vision_tower_forward.1} parent=5 // pred_region
      // Predicated region
      $region89: #{clip_vision_tower_forward.1} parent=87 // pred_check
        %p556 = pneg %p47
      $region90: #{clip_vision_tower_forward.1} parent=87 // pred_check_branch
        %558 = sbr.rel (%p556) target = $region92
      $region91: #{clip_vision_tower_forward.1} parent=87 // pred_region
        %p559 = scmp.lt.s32.totalorder %s27, 1
        %s560 = scalar_select %p559, %s27, 1
        %s561 = smul.addr %s560, 2
        %s562 = smul.addr %s561, 8
        %s563 = scalar_lea.vmem %s0, %s562
      $region92: #{clip_vision_tower_forward.1} parent=87 // pred_fallthru
        _
    $region88: #{clip_vision_tower_forward.1} parent=5 // pred_fallthru
      _
    %p564 = scmp.le.s32.totalorder 1, %s27
    %p565 = scmp.lt.s32.totalorder %s27, 3
    %p566 = pnand %p564, %p565
    %p567 = pneg %p566
    // Predicated region
    $region93: #{clip_vision_tower_forward.1} parent=5 // pred_check
      _
    $region94: #{clip_vision_tower_forward.1} parent=5 // pred_check_branch
      %569 = sbr.rel (%p566) target = $region96
    $region95: #{clip_vision_tower_forward.1} parent=5 // pred_region
      %s570 = ssub.s32 %s27, 1
      %p571 = scmp.lt.s32.totalorder %s32, 1
      %s572 = scalar_select %p571, %s32, 1
      %s573 = smul.addr %s572, 2
      %s574 = smul.addr %s573, 8
      %s575 = scalar_lea.vmem %s0, %s574
      %p576 = pneg %p53
      %p577 = pneg %p50
      %p578 = pneg %p74
      %p579 = pneg %p71
      %p580 = pneg %p95
      %p581 = pneg %p92
      %p582 = pneg %p116
      %p583 = pneg %p113
      %p584 = pneg %p137
      %p585 = pneg %p134
      %p586 = pneg %p158
      %p587 = pneg %p155
      %p588 = pneg %p179
      %p589 = pneg %p176
      %p590 = pneg %p200
      %p591 = pneg %p197
      %p592 = pneg %p221
      %p593 = pneg %p218
      %p594 = pneg %p242
      %p595 = pneg %p239
      %p596 = pneg %p263
      %p597 = pneg %p260
      %p598 = pneg %p284
      %p599 = pneg %p281
      %p600 = pneg %p305
      %p601 = pneg %p302
      %p602 = pneg %p326
      %p603 = pneg %p323
      %p604 = pneg %p347
      %p605 = pneg %p344
      %p606 = pneg %p368
      %p607 = pneg %p365
      %p608 = pneg %p389
      %p609 = pneg %p386
      %p610 = pneg %p410
      %p611 = pneg %p407
      %p612 = pneg %p431
      %p613 = pneg %p428
      %p614 = pneg %p457
      %p615 = pneg %p454
      %p616 = scmp.lt.s32.totalorder %s32, 1
      %s617 = scalar_select %p616, %s32, 1
      %s618 = smul.addr %s617, 2
      %s619 = smul.addr %s618, 8
      %s620 = scalar_lea.vmem %s19, %s619
      %p621 = pneg %p483
      %p622 = pneg %p480
      %p623 = scmp.lt.s32.totalorder %s32, 1
      %s624 = scalar_select %p623, %s32, 1
      %s625 = smul.addr %s624, 12
      %s626 = smul.addr %s625, 8
      %s627 = scalar_lea.vmem %s20, %s626
      %p628 = scmp.lt.s32.totalorder %s32, 1
      %s629 = scalar_select %p628, %s32, 1
      %s630 = smul.addr %s629, 2
      %s631 = smul.addr %s630, 8
      %s632 = scalar_lea.vmem %s0, %s631
      %p633 = scmp.lt.s32.totalorder %s32, 1
      %s634 = scalar_select %p633, %s32, 1
      %s635 = smul.addr %s634, 2
      %s636 = smul.addr %s635, 8
      %s637 = scalar_lea.vmem %s19, %s636
      %p638 = scmp.lt.s32.totalorder %s32, 1
      %s639 = scalar_select %p638, %s32, 1
      %s640 = smul.addr %s639, 12
      %s641 = smul.addr %s640, 8
      %s642 = scalar_lea.vmem %s20, %s641
      %v644 = vld [vmem:[%s632] sm:$0xff]
      %v645 = vld [vmem:[%s632 + $0x8] sm:$0xff]
      %v646 = vpack.c.bf16 %v645, %v644
      %v647 = vld [vmem:[%s1] sm:$0xf]
      %v648 = vld [vmem:[%s1 + $0x4] sm:$0xf]
      %v649 = vld [vmem:[%s1 + $0x8] sm:$0xf]
      %v650 = vld [vmem:[%s1 + $0xc] sm:$0xf]
      %v651 = vld [vmem:[%s1 + $0x10] sm:$0xf]
      %v652 = vld [vmem:[%s1 + $0x14] sm:$0xf]
      %v653 = vld [vmem:[%s3] sm:$0xff]
      %v654 = vld [vmem:[%s3 + $0x8] sm:$0xff]
      %v655 = vld [vmem:[%s3 + $0x10] sm:$0x1]
      %v656 = vld [vmem:[%s2] sm:$0x1]
      %v657 = vadd.f32 %v656, %v653
      %vm658 = vcmask 253952
      %659 = vst.msk [vmem:[#allocation2] sm:$0x1] %vm658, %v657
      %v666 = vunpack.c.l.b16 %v647
      %v667 = vunpack.c.l.b16 %v648
      %v668 = vunpack.c.l.b16 %v649
      %v669 = vunpack.c.l.b16 %v650
      %v670 = vunpack.c.l.b16 %v651
      %v671 = vunpack.c.l.b16 %v652
      %v672 = vpack.c.b16 %v667, %v666
      %v673 = vpack.c.b16 %v669, %v668
      %v674 = vpack.c.b16 %v671, %v670
      %vm681 = vcmask 1046528
      %v682 = vrot.slane %v653, 1
      %v683 = vrot.slane %v654, 1
      %v684 = vsel %vm681, %v682, %v683
      %v685 = vrot.slane %v655, 1
      %v686 = vsel %vm681, %v683, %v685
      %vm689 = vcmask 392192
      %v691 = vsel %vm689, %v646, 0
      %693 = vmatpush.bf16.msra.mxu0 0
      %694 = vmatpush.bf16.msra.mxu0 0
      %695 = vmatpush.bf16.msra.mxu0 0
      %696 = vmatpush.bf16.msra.mxu0 0
      %697 = vmatpush.bf16.msra.mxu0 0
      %698 = vmatpush.bf16.msra.mxu0 %v674
      %699 = vmatpush.bf16.msra.mxu0 %v673
      %700 = vmatpush.bf16.msra.mxu0 %v672
      %701 = vmatmul.bf16.gmra.mxu0 %v691
      %v702 = vpop.f32.mrf.mxu0
      %v703 = vadd.f32 %v684, %v702
      %v704 = vpop.f32.mrf.mxu0
      %v705 = vadd.f32 %v686, %v704
      %706 = vdwg.mxu0
      %vm707 = vcmask 261120
      %708 = vst.msk [vmem:[#allocation2 + $0x1] sm:$0xff] %vm707, %v703
      %709 = vst.msk [vmem:[#allocation2 + $0x9] sm:$0xff] %vm707, %v705
      %v710 = vld [vmem:[#allocation2] sm:$0xff]
      %v711 = vld [vmem:[#allocation2 + $0x8] sm:$0xff]
      %v712 = vld [vmem:[#allocation2 + $0x10] sm:$0x1]
      %v713 = vld [vmem:[%s4] sm:$0x1]
      %v714 = vld [vmem:[%s5] sm:$0x1]
      %v715 = vsel %vm707, %v710, 0.0
      %716 = vadd.xlane.f32.xlu0 %v715
      %v717 = vpop.xlane.xlu0 %716
      %v718 = vsel %vm707, %v711, 0.0
      %719 = vadd.xlane.f32.xlu0 %v718
      %v720 = vpop.xlane.xlu0 %719
      %v721 = vsel %vm658, %v712, 0.0
      %722 = vadd.xlane.f32.xlu0 %v721
      %v723 = vpop.xlane.xlu0 %722
      %v724 = vrcp.pop 32.0
      %v725 = vmul.f32 32.0, %v724
      %v726 = vsub.f32 1.0, %v725
      %v727 = vmul.f32 %v724, %v726
      %v728 = vadd.f32 %v724, %v727
      %vm729 = vweird.f32 %v724
      %v730 = vsel %vm729, %v724, %v728
      %v731 = vmul.f32 %v717, %v730
      %v732 = vmul.f32 %v720, %v730
      %v733 = vmul.f32 %v723, %v730
      %v734 = vmul.f32 %v710, %v710
      %v735 = vmul.f32 %v711, %v711
      %v736 = vmul.f32 %v712, %v712
      %v737 = vsel %vm707, %v734, 0.0
      %738 = vadd.xlane.f32.xlu0 %v737
      %v739 = vpop.xlane.xlu0 %738
      %v740 = vsel %vm707, %v735, 0.0
      %741 = vadd.xlane.f32.xlu0 %v740
      %v742 = vpop.xlane.xlu0 %741
      %v743 = vsel %vm658, %v736, 0.0
      %744 = vadd.xlane.f32.xlu0 %v743
      %v745 = vpop.xlane.xlu0 %744
      %v746 = vmul.f32 %v739, %v730
      %v747 = vmul.f32 %v742, %v730
      %v748 = vmul.f32 %v745, %v730
      %v749 = vmul.f32 %v731, %v731
      %v750 = vmul.f32 %v732, %v732
      %v751 = vmul.f32 %v733, %v733
      %v752 = vsub.f32 %v746, %v749
      %v753 = vsub.f32 %v747, %v750
      %v754 = vsub.f32 %v748, %v751
      %v755 = vsub.f32 %v710, %v731
      %v756 = vsub.f32 %v711, %v732
      %v757 = vsub.f32 %v712, %v733
      %v758 = vadd.f32 %v752, 1e-05
      %v759 = vadd.f32 %v753, 1e-05
      %v760 = vadd.f32 %v754, 1e-05
      %v761 = vrsqrt.pop %v758
      %v762 = vmul.f32 %v761, %v758
      %v763 = vmul.f32 %v762, %v761
      %v764 = vmul.f32 0.5, %v763
      %v765 = vsub.f32 1.5, %v764
      %v766 = vmul.f32 %v761, %v765
      %vm767 = vweird.f32 %v758
      %vm768 = vweird.f32 %v761
      %vm769 = vmor %vm767, %vm768
      %v770 = vsel %vm769, %v761, %v766
      %v771 = vrsqrt.pop %v759
      %v772 = vmul.f32 %v771, %v759
      %v773 = vmul.f32 %v772, %v771
      %v774 = vmul.f32 0.5, %v773
      %v775 = vsub.f32 1.5, %v774
      %v776 = vmul.f32 %v771, %v775
      %vm777 = vweird.f32 %v759
      %vm778 = vweird.f32 %v771
      %vm779 = vmor %vm777, %vm778
      %v780 = vsel %vm779, %v771, %v776
      %v781 = vrsqrt.pop %v760
      %v782 = vmul.f32 %v781, %v760
      %v783 = vmul.f32 %v782, %v781
      %v784 = vmul.f32 0.5, %v783
      %v785 = vsub.f32 1.5, %v784
      %v786 = vmul.f32 %v781, %v785
      %vm787 = vweird.f32 %v760
      %vm788 = vweird.f32 %v781
      %vm789 = vmor %vm787, %vm788
      %v790 = vsel %vm789, %v781, %v786
      %v791 = vmul.f32 %v755, %v770
      %v792 = vmul.f32 %v756, %v780
      %v793 = vmul.f32 %v757, %v790
      %v795 = vperm.slane %v713, 0
      %v797 = vmul.f32 %v791, %v795
      %v798 = vmul.f32 %v792, %v795
      %v799 = vmul.f32 %v793, %v795
      %v801 = vperm.slane %v714, 0
      %v803 = vadd.f32 %v797, %v801
      %v804 = vadd.f32 %v798, %v801
      %v805 = vadd.f32 %v799, %v801
      %v806 = vld [vmem:[%s6] sm:$0x1]
      %v807 = vld [vmem:[%s7] sm:$0x1]
      %v808 = vsel %vm707, %v803, 0.0
      %809 = vadd.xlane.f32.xlu0 %v808
      %v810 = vpop.xlane.xlu0 %809
      %v811 = vsel %vm707, %v804, 0.0
      %812 = vadd.xlane.f32.xlu0 %v811
      %v813 = vpop.xlane.xlu0 %812
      %v814 = vsel %vm658, %v805, 0.0
      %815 = vadd.xlane.f32.xlu0 %v814
      %v816 = vpop.xlane.xlu0 %815
      %v817 = vmul.f32 %v810, %v730
      %v818 = vmul.f32 %v813, %v730
      %v819 = vmul.f32 %v816, %v730
      %v820 = vmul.f32 %v803, %v803
      %v821 = vmul.f32 %v804, %v804
      %v822 = vmul.f32 %v805, %v805
      %v823 = vsel %vm707, %v820, 0.0
      %824 = vadd.xlane.f32.xlu0 %v823
      %v825 = vpop.xlane.xlu0 %824
      %v826 = vsel %vm707, %v821, 0.0
      %827 = vadd.xlane.f32.xlu0 %v826
      %v828 = vpop.xlane.xlu0 %827
      %v829 = vsel %vm658, %v822, 0.0
      %830 = vadd.xlane.f32.xlu0 %v829
      %v831 = vpop.xlane.xlu0 %830
      %v832 = vmul.f32 %v825, %v730
      %v833 = vmul.f32 %v828, %v730
      %v834 = vmul.f32 %v831, %v730
      %v835 = vmul.f32 %v817, %v817
      %v836 = vmul.f32 %v818, %v818
      %v837 = vmul.f32 %v819, %v819
      %v838 = vsub.f32 %v832, %v835
      %v839 = vsub.f32 %v833, %v836
      %v840 = vsub.f32 %v834, %v837
      %v841 = vsub.f32 %v803, %v817
      %v842 = vsub.f32 %v804, %v818
      %v843 = vsub.f32 %v805, %v819
      %v844 = vadd.f32 %v838, 1e-05
      %v845 = vadd.f32 %v839, 1e-05
      %v846 = vadd.f32 %v840, 1e-05
      %v847 = vrsqrt.pop %v844
      %v848 = vmul.f32 %v847, %v844
      %v849 = vmul.f32 %v848, %v847
      %v850 = vmul.f32 0.5, %v849
      %v851 = vsub.f32 1.5, %v850
      %v852 = vmul.f32 %v847, %v851
      %vm853 = vweird.f32 %v844
      %vm854 = vweird.f32 %v847
      %vm855 = vmor %vm853, %vm854
      %v856 = vsel %vm855, %v847, %v852
      %v857 = vrsqrt.pop %v845
      %v858 = vmul.f32 %v857, %v845
      %v859 = vmul.f32 %v858, %v857
      %v860 = vmul.f32 0.5, %v859
      %v861 = vsub.f32 1.5, %v860
      %v862 = vmul.f32 %v857, %v861
      %vm863 = vweird.f32 %v845
      %vm864 = vweird.f32 %v857
      %vm865 = vmor %vm863, %vm864
      %v866 = vsel %vm865, %v857, %v862
      %v867 = vrsqrt.pop %v846
      %v868 = vmul.f32 %v867, %v846
      %v869 = vmul.f32 %v868, %v867
      %v870 = vmul.f32 0.5, %v869
      %v871 = vsub.f32 1.5, %v870
      %v872 = vmul.f32 %v867, %v871
      %vm873 = vweird.f32 %v846
      %vm874 = vweird.f32 %v867
      %vm875 = vmor %vm873, %vm874
      %v876 = vsel %vm875, %v867, %v872
      %v877 = vmul.f32 %v841, %v856
      %v878 = vmul.f32 %v842, %v866
      %v879 = vmul.f32 %v843, %v876
      %v881 = vperm.slane %v806, 0
      %v883 = vmul.f32 %v877, %v881
      %v884 = vmul.f32 %v878, %v881
      %v885 = vmul.f32 %v879, %v881
      %v887 = vperm.slane %v807, 0
      %v889 = vadd.f32 %v883, %v887
      %v890 = vadd.f32 %v884, %v887
      %v891 = vadd.f32 %v885, %v887
      %v892 = vpack.c.bf16 %v890, %v889
      %v893 = vpack.c.bf16 %v891, %v891
      %v894 = vld [vmem:[%s8] sm:$0xf]
      %v895 = vld [vmem:[%s8 + $0x4] sm:$0xf]
      %v896 = vld [vmem:[%s8 + $0x8] sm:$0xf]
      %v897 = vld [vmem:[%s8 + $0xc] sm:$0xf]
      %v898 = vld [vmem:[%s9] sm:$0x1]
      %v900 = vperm.slane %v898, 0
      %v906 = vunpack.c.l.b16 %v894
      %v907 = vunpack.c.l.b16 %v895
      %v908 = vunpack.c.l.b16 %v896
      %v909 = vunpack.c.l.b16 %v897
      %v910 = vpack.c.b16 %v907, %v906
      %v911 = vpack.c.b16 %v909, %v908
      %v915 = vsel %vm707, %v892, 0
      %v918 = vsel %vm707, %v893, 0
      %920 = vmatpush.bf16.msra.mxu0 0
      %921 = vmatpush.bf16.msra.mxu0 0
      %922 = vmatpush.bf16.msra.mxu0 0
      %923 = vmatpush.bf16.msra.mxu0 0
      %924 = vmatpush.bf16.msra.mxu0 0
      %925 = vmatpush.bf16.msra.mxu0 0
      %926 = vmatpush.bf16.msra.mxu0 %v911
      %927 = vmatpush.bf16.msra.mxu0 %v910
      %928 = vmatmul.bf16.gmra.mxu0 %v915
      %v929 = vpop.f32.mrf.mxu0
      %v930 = vadd.f32 %v900, %v929
      %v931 = vpop.f32.mrf.mxu0
      %v932 = vadd.f32 %v900, %v931
      %933 = vmatmul.bf16.gmra.mxu0 %v918
      %v934 = vpop.f32.mrf.mxu0
      %v935 = vadd.f32 %v900, %v934
      %v936 = vpop.f32.mrf.mxu0
      %937 = vdwg.mxu0
      %v938 = vpack.c.bf16 %v932, %v930
      %v939 = vpack.c.bf16 %v935, %v935
      %942 = vrot.lane.b32.xlu0 %v938, 96
      %v943 = vpop.permute.xlu0 %942
      %944 = vrot.lane.b32.xlu0 %v939, 96
      %v945 = vpop.permute.xlu0 %944
      %vm946 = vcmask 64512
      %v948 = vsel %vm946, %v938, 0
      %v951 = vsel %vm946, %v939, 0
      %v954 = vsel %vm946, %v943, 0
      %v957 = vsel %vm946, %v945, 0
      %959 = vmatpush.bf16.xpose.msra.mxu0 0
      %960 = vmatpush.bf16.xpose.msra.mxu0 0
      %961 = vmatpush.bf16.xpose.msra.mxu0 0
      %962 = vmatpush.bf16.xpose.msra.mxu0 0
      %963 = vmatpush.bf16.xpose.msra.mxu0 0
      %964 = vmatpush.bf16.xpose.msra.mxu0 0
      %965 = vmatpush.bf16.xpose.msra.mxu0 %v957
      %966 = vmatpush.bf16.xpose.msra.mxu0 %v954
      %967 = vmatmul.bf16.gmra.mxu0 %v948
      %v968 = vpop.f32.mrf.mxu0
      %v969 = vadd.f32 0.0, %v968
      %v970 = vpop.f32.mrf.mxu0
      %v971 = vadd.f32 0.0, %v970
      %972 = vmatmul.bf16.gmra.mxu0 %v951
      %v973 = vpop.f32.mrf.mxu0
      %v974 = vadd.f32 0.0, %v973
      %v975 = vpop.f32.mrf.mxu0
      %976 = vdwg.mxu0
      %vm977 = vcmask 138240
      %v978 = vsel %vm977, %v969, -inf
      %979 = vmax.xlane.f32.xlu0 %v978
      %v980 = vpop.xlane.xlu0 %979
      %v981 = vsel %vm977, %v971, -inf
      %982 = vmax.xlane.f32.xlu0 %v981
      %v983 = vpop.xlane.xlu0 %982
      %vm984 = vcmask 131072
      %v985 = vsel %vm984, %v974, -inf
      %986 = vmax.xlane.f32.xlu0 %v985
      %v987 = vpop.xlane.xlu0 %986
      %v988 = vsub.f32 %v969, %v980
      %v989 = vsub.f32 %v971, %v983
      %v990 = vsub.f32 %v974, %v987
      %v991 = vmul.f32 %v988, 1.442695
      %v992 = vpow.pop %v991
      %v993 = vmul.f32 %v989, 1.442695
      %v994 = vpow.pop %v993
      %v995 = vmul.f32 %v990, 1.442695
      %v996 = vpow.pop %v995
      %v997 = vsel %vm977, %v992, 0.0
      %998 = vadd.xlane.f32.xlu0 %v997
      %v999 = vpop.xlane.xlu0 %998
      %v1000 = vsel %vm977, %v994, 0.0
      %1001 = vadd.xlane.f32.xlu0 %v1000
      %v1002 = vpop.xlane.xlu0 %1001
      %v1003 = vsel %vm984, %v996, 0.0
      %1004 = vadd.xlane.f32.xlu0 %v1003
      %v1005 = vpop.xlane.xlu0 %1004
      %v1006 = vrcp.pop %v999
      %v1007 = vrcp.pop %v1002
      %v1008 = vrcp.pop %v1005
      %v1009 = vmul.f32 %v992, %v1006
      %v1010 = vmul.f32 %v994, %v1007
      %v1011 = vmul.f32 %v996, %v1008
      %v1012 = vpack.c.bf16 %v1010, %v1009
      %v1013 = vpack.c.bf16 %v1011, %v1011
      %1014 = vrot.lane.b32.xlu0 %v938, 64
      %v1015 = vpop.permute.xlu0 %1014
      %1016 = vrot.lane.b32.xlu0 %v939, 64
      %v1017 = vpop.permute.xlu0 %1016
      %v1020 = vsel %vm977, %v1012, 0
      %v1023 = vsel %vm977, %v1013, 0
      %vm1025 = vcmask 1040384
      %v1026 = vsel 0, 4294967295, 65535
      %v1027 = vsel %vm1025, %v1026, 0
      %v1029 = vand.u32 %v1017, %v1027
      %1031 = vmatpush.bf16.msra.mxu0 0
      %1032 = vmatpush.bf16.msra.mxu0 0
      %1033 = vmatpush.bf16.msra.mxu0 0
      %1034 = vmatpush.bf16.msra.mxu0 0
      %1035 = vmatpush.bf16.msra.mxu0 0
      %1036 = vmatpush.bf16.msra.mxu0 0
      %1037 = vmatpush.bf16.msra.mxu0 %v1029
      %1038 = vmatpush.bf16.msra.mxu0 %v1015
      %1039 = vmatmul.bf16.gmra.mxu0 %v1020
      %v1040 = vpop.f32.mrf.mxu0
      %v1041 = vadd.f32 0.0, %v1040
      %v1042 = vpop.f32.mrf.mxu0
      %v1043 = vadd.f32 0.0, %v1042
      %1044 = vmatmul.bf16.gmra.mxu0 %v1023
      %v1045 = vpop.f32.mrf.mxu0
      %v1046 = vadd.f32 0.0, %v1045
      %v1047 = vpop.f32.mrf.mxu0
      %1048 = vdwg.mxu0
      %1049 = vst.msk [vmem:[#allocation3] sm:$0xff] %vm946, %v1041
      %1050 = vst.msk [vmem:[#allocation3 + $0x8] sm:$0xff] %vm946, %v1043
      %vm1051 = vcmask 57344
      %1052 = vst.msk [vmem:[#allocation3 + $0x10] sm:$0x1] %vm1051, %v1046
      %1053 = vrot.lane.b32.xlu0 %v938, 120
      %v1054 = vpop.permute.xlu0 %1053
      %1055 = vrot.lane.b32.xlu0 %v939, 120
      %v1056 = vpop.permute.xlu0 %1055
      %1057 = vrot.lane.b32.xlu0 %v938, 88
      %v1058 = vpop.permute.xlu0 %1057
      %1059 = vrot.lane.b32.xlu0 %v939, 88
      %v1060 = vpop.permute.xlu0 %1059
      %v1062 = vsel %vm946, %v1054, 0
      %v1065 = vsel %vm946, %v1056, 0
      %v1068 = vsel %vm946, %v1058, 0
      %v1071 = vsel %vm946, %v1060, 0
      %1073 = vmatpush.bf16.xpose.msra.mxu0 0
      %1074 = vmatpush.bf16.xpose.msra.mxu0 0
      %1075 = vmatpush.bf16.xpose.msra.mxu0 0
      %1076 = vmatpush.bf16.xpose.msra.mxu0 0
      %1077 = vmatpush.bf16.xpose.msra.mxu0 0
      %1078 = vmatpush.bf16.xpose.msra.mxu0 0
      %1079 = vmatpush.bf16.xpose.msra.mxu0 %v1071
      %1080 = vmatpush.bf16.xpose.msra.mxu0 %v1068
      %1081 = vmatmul.bf16.gmra.mxu0 %v1062
      %v1082 = vpop.f32.mrf.mxu0
      %v1083 = vadd.f32 0.0, %v1082
      %v1084 = vpop.f32.mrf.mxu0
      %v1085 = vadd.f32 0.0, %v1084
      %1086 = vmatmul.bf16.gmra.mxu0 %v1065
      %v1087 = vpop.f32.mrf.mxu0
      %v1088 = vadd.f32 0.0, %v1087
      %v1089 = vpop.f32.mrf.mxu0
      %1090 = vdwg.mxu0
      %v1091 = vsel %vm977, %v1083, -inf
      %1092 = vmax.xlane.f32.xlu0 %v1091
      %v1093 = vpop.xlane.xlu0 %1092
      %v1094 = vsel %vm977, %v1085, -inf
      %1095 = vmax.xlane.f32.xlu0 %v1094
      %v1096 = vpop.xlane.xlu0 %1095
      %v1097 = vsel %vm984, %v1088, -inf
      %1098 = vmax.xlane.f32.xlu0 %v1097
      %v1099 = vpop.xlane.xlu0 %1098
      %v1100 = vsub.f32 %v1083, %v1093
      %v1101 = vsub.f32 %v1085, %v1096
      %v1102 = vsub.f32 %v1088, %v1099
      %v1103 = vmul.f32 %v1100, 1.442695
      %v1104 = vpow.pop %v1103
      %v1105 = vmul.f32 %v1101, 1.442695
      %v1106 = vpow.pop %v1105
      %v1107 = vmul.f32 %v1102, 1.442695
      %v1108 = vpow.pop %v1107
      %v1109 = vsel %vm977, %v1104, 0.0
      %1110 = vadd.xlane.f32.xlu0 %v1109
      %v1111 = vpop.xlane.xlu0 %1110
      %v1112 = vsel %vm977, %v1106, 0.0
      %1113 = vadd.xlane.f32.xlu0 %v1112
      %v1114 = vpop.xlane.xlu0 %1113
      %v1115 = vsel %vm984, %v1108, 0.0
      %1116 = vadd.xlane.f32.xlu0 %v1115
      %v1117 = vpop.xlane.xlu0 %1116
      %v1118 = vrcp.pop %v1111
      %v1119 = vrcp.pop %v1114
      %v1120 = vrcp.pop %v1117
      %v1121 = vmul.f32 %v1104, %v1118
      %v1122 = vmul.f32 %v1106, %v1119
      %v1123 = vmul.f32 %v1108, %v1120
      %v1124 = vpack.c.bf16 %v1122, %v1121
      %v1125 = vpack.c.bf16 %v1123, %v1123
      %1126 = vrot.lane.b32.xlu0 %v938, 56
      %v1127 = vpop.permute.xlu0 %1126
      %1128 = vrot.lane.b32.xlu0 %v939, 56
      %v1129 = vpop.permute.xlu0 %1128
      %v1132 = vsel %vm977, %v1124, 0
      %v1135 = vsel %vm977, %v1125, 0
      %v1138 = vand.u32 %v1129, %v1027
      %1140 = vmatpush.bf16.msra.mxu0 0
      %1141 = vmatpush.bf16.msra.mxu0 0
      %1142 = vmatpush.bf16.msra.mxu0 0
      %1143 = vmatpush.bf16.msra.mxu0 0
      %1144 = vmatpush.bf16.msra.mxu0 0
      %1145 = vmatpush.bf16.msra.mxu0 0
      %1146 = vmatpush.bf16.msra.mxu0 %v1138
      %1147 = vmatpush.bf16.msra.mxu0 %v1127
      %1148 = vmatmul.bf16.gmra.mxu0 %v1132
      %v1149 = vpop.f32.mrf.mxu0
      %v1150 = vadd.f32 0.0, %v1149
      %v1151 = vpop.f32.mrf.mxu0
      %v1152 = vadd.f32 0.0, %v1151
      %1153 = vmatmul.bf16.gmra.mxu0 %v1135
      %v1154 = vpop.f32.mrf.mxu0
      %v1155 = vadd.f32 0.0, %v1154
      %v1156 = vpop.f32.mrf.mxu0
      %1157 = vdwg.mxu0
      %1161 = vrot.lane.b32.xlu0 %v1150, 8
      %v1162 = vpop.permute.xlu0 %1161
      %1163 = vrot.lane.b32.xlu0 %v1152, 8
      %v1164 = vpop.permute.xlu0 %1163
      %1165 = vrot.lane.b32.xlu0 %v1155, 8
      %v1166 = vpop.permute.xlu0 %1165
      %vm1170 = vcmask 130112
      %1171 = vst.msk [vmem:[#allocation3] sm:$0xff] %vm1170, %v1162
      %1172 = vst.msk [vmem:[#allocation3 + $0x8] sm:$0xff] %vm1170, %v1164
      %vm1173 = vcmask 122944
      %1174 = vst.msk [vmem:[#allocation3 + $0x10] sm:$0x1] %vm1173, %v1166
      %1175 = vrot.lane.b32.xlu0 %v938, 112
      %v1176 = vpop.permute.xlu0 %1175
      %1177 = vrot.lane.b32.xlu0 %v939, 112
      %v1178 = vpop.permute.xlu0 %1177
      %1179 = vrot.lane.b32.xlu0 %v938, 80
      %v1180 = vpop.permute.xlu0 %1179
      %1181 = vrot.lane.b32.xlu0 %v939, 80
      %v1182 = vpop.permute.xlu0 %1181
      %v1184 = vsel %vm946, %v1176, 0
      %v1187 = vsel %vm946, %v1178, 0
      %v1190 = vsel %vm946, %v1180, 0
      %v1193 = vsel %vm946, %v1182, 0
      %1195 = vmatpush.bf16.xpose.msra.mxu0 0
      %1196 = vmatpush.bf16.xpose.msra.mxu0 0
      %1197 = vmatpush.bf16.xpose.msra.mxu0 0
      %1198 = vmatpush.bf16.xpose.msra.mxu0 0
      %1199 = vmatpush.bf16.xpose.msra.mxu0 0
      %1200 = vmatpush.bf16.xpose.msra.mxu0 0
      %1201 = vmatpush.bf16.xpose.msra.mxu0 %v1193
      %1202 = vmatpush.bf16.xpose.msra.mxu0 %v1190
      %1203 = vmatmul.bf16.gmra.mxu0 %v1184
      %v1204 = vpop.f32.mrf.mxu0
      %v1205 = vadd.f32 0.0, %v1204
      %v1206 = vpop.f32.mrf.mxu0
      %v1207 = vadd.f32 0.0, %v1206
      %1208 = vmatmul.bf16.gmra.mxu0 %v1187
      %v1209 = vpop.f32.mrf.mxu0
      %v1210 = vadd.f32 0.0, %v1209
      %v1211 = vpop.f32.mrf.mxu0
      %1212 = vdwg.mxu0
      %v1213 = vsel %vm977, %v1205, -inf
      %1214 = vmax.xlane.f32.xlu0 %v1213
      %v1215 = vpop.xlane.xlu0 %1214
      %v1216 = vsel %vm977, %v1207, -inf
      %1217 = vmax.xlane.f32.xlu0 %v1216
      %v1218 = vpop.xlane.xlu0 %1217
      %v1219 = vsel %vm984, %v1210, -inf
      %1220 = vmax.xlane.f32.xlu0 %v1219
      %v1221 = vpop.xlane.xlu0 %1220
      %v1222 = vsub.f32 %v1205, %v1215
      %v1223 = vsub.f32 %v1207, %v1218
      %v1224 = vsub.f32 %v1210, %v1221
      %v1225 = vmul.f32 %v1222, 1.442695
      %v1226 = vpow.pop %v1225
      %v1227 = vmul.f32 %v1223, 1.442695
      %v1228 = vpow.pop %v1227
      %v1229 = vmul.f32 %v1224, 1.442695
      %v1230 = vpow.pop %v1229
      %v1231 = vsel %vm977, %v1226, 0.0
      %1232 = vadd.xlane.f32.xlu0 %v1231
      %v1233 = vpop.xlane.xlu0 %1232
      %v1234 = vsel %vm977, %v1228, 0.0
      %1235 = vadd.xlane.f32.xlu0 %v1234
      %v1236 = vpop.xlane.xlu0 %1235
      %v1237 = vsel %vm984, %v1230, 0.0
      %1238 = vadd.xlane.f32.xlu0 %v1237
      %v1239 = vpop.xlane.xlu0 %1238
      %v1240 = vrcp.pop %v1233
      %v1241 = vrcp.pop %v1236
      %v1242 = vrcp.pop %v1239
      %v1243 = vmul.f32 %v1226, %v1240
      %v1244 = vmul.f32 %v1228, %v1241
      %v1245 = vmul.f32 %v1230, %v1242
      %v1246 = vpack.c.bf16 %v1244, %v1243
      %v1247 = vpack.c.bf16 %v1245, %v1245
      %1248 = vrot.lane.b32.xlu0 %v938, 48
      %v1249 = vpop.permute.xlu0 %1248
      %1250 = vrot.lane.b32.xlu0 %v939, 48
      %v1251 = vpop.permute.xlu0 %1250
      %v1254 = vsel %vm977, %v1246, 0
      %v1257 = vsel %vm977, %v1247, 0
      %v1260 = vand.u32 %v1251, %v1027
      %1262 = vmatpush.bf16.msra.mxu0 0
      %1263 = vmatpush.bf16.msra.mxu0 0
      %1264 = vmatpush.bf16.msra.mxu0 0
      %1265 = vmatpush.bf16.msra.mxu0 0
      %1266 = vmatpush.bf16.msra.mxu0 0
      %1267 = vmatpush.bf16.msra.mxu0 0
      %1268 = vmatpush.bf16.msra.mxu0 %v1260
      %1269 = vmatpush.bf16.msra.mxu0 %v1249
      %1270 = vmatmul.bf16.gmra.mxu0 %v1254
      %v1271 = vpop.f32.mrf.mxu0
      %v1272 = vadd.f32 0.0, %v1271
      %v1273 = vpop.f32.mrf.mxu0
      %v1274 = vadd.f32 0.0, %v1273
      %1275 = vmatmul.bf16.gmra.mxu0 %v1257
      %v1276 = vpop.f32.mrf.mxu0
      %v1277 = vadd.f32 0.0, %v1276
      %v1278 = vpop.f32.mrf.mxu0
      %1279 = vdwg.mxu0
      %1283 = vrot.lane.b32.xlu0 %v1272, 16
      %v1284 = vpop.permute.xlu0 %1283
      %1285 = vrot.lane.b32.xlu0 %v1274, 16
      %v1286 = vpop.permute.xlu0 %1285
      %1287 = vrot.lane.b32.xlu0 %v1277, 16
      %v1288 = vpop.permute.xlu0 %1287
      %vm1292 = vcmask 195712
      %1293 = vst.msk [vmem:[#allocation3] sm:$0xff] %vm1292, %v1284
      %1294 = vst.msk [vmem:[#allocation3 + $0x8] sm:$0xff] %vm1292, %v1286
      %vm1295 = vcmask 188544
      %1296 = vst.msk [vmem:[#allocation3 + $0x10] sm:$0x1] %vm1295, %v1288
      %1297 = vrot.lane.b32.xlu0 %v938, 104
      %v1298 = vpop.permute.xlu0 %1297
      %1299 = vrot.lane.b32.xlu0 %v939, 104
      %v1300 = vpop.permute.xlu0 %1299
      %1301 = vrot.lane.b32.xlu0 %v938, 72
      %v1302 = vpop.permute.xlu0 %1301
      %1303 = vrot.lane.b32.xlu0 %v939, 72
      %v1304 = vpop.permute.xlu0 %1303
      %v1306 = vsel %vm946, %v1298, 0
      %v1309 = vsel %vm946, %v1300, 0
      %v1312 = vsel %vm946, %v1302, 0
      %v1315 = vsel %vm946, %v1304, 0
      %1317 = vmatpush.bf16.xpose.msra.mxu0 0
      %1318 = vmatpush.bf16.xpose.msra.mxu0 0
      %1319 = vmatpush.bf16.xpose.msra.mxu0 0
      %1320 = vmatpush.bf16.xpose.msra.mxu0 0
      %1321 = vmatpush.bf16.xpose.msra.mxu0 0
      %1322 = vmatpush.bf16.xpose.msra.mxu0 0
      %1323 = vmatpush.bf16.xpose.msra.mxu0 %v1315
      %1324 = vmatpush.bf16.xpose.msra.mxu0 %v1312
      %1325 = vmatmul.bf16.gmra.mxu0 %v1306
      %v1326 = vpop.f32.mrf.mxu0
      %v1327 = vadd.f32 0.0, %v1326
      %v1328 = vpop.f32.mrf.mxu0
      %v1329 = vadd.f32 0.0, %v1328
      %1330 = vmatmul.bf16.gmra.mxu0 %v1309
      %v1331 = vpop.f32.mrf.mxu0
      %v1332 = vadd.f32 0.0, %v1331
      %v1333 = vpop.f32.mrf.mxu0
      %1334 = vdwg.mxu0
      %v1335 = vsel %vm977, %v1327, -inf
      %1336 = vmax.xlane.f32.xlu0 %v1335
      %v1337 = vpop.xlane.xlu0 %1336
      %v1338 = vsel %vm977, %v1329, -inf
      %1339 = vmax.xlane.f32.xlu0 %v1338
      %v1340 = vpop.xlane.xlu0 %1339
      %v1341 = vsel %vm984, %v1332, -inf
      %1342 = vmax.xlane.f32.xlu0 %v1341
      %v1343 = vpop.xlane.xlu0 %1342
      %v1344 = vsub.f32 %v1327, %v1337
      %v1345 = vsub.f32 %v1329, %v1340
      %v1346 = vsub.f32 %v1332, %v1343
      %v1347 = vmul.f32 %v1344, 1.442695
      %v1348 = vpow.pop %v1347
      %v1349 = vmul.f32 %v1345, 1.442695
      %v1350 = vpow.pop %v1349
      %v1351 = vmul.f32 %v1346, 1.442695
      %v1352 = vpow.pop %v1351
      %v1353 = vsel %vm977, %v1348, 0.0
      %1354 = vadd.xlane.f32.xlu0 %v1353
      %v1355 = vpop.xlane.xlu0 %1354
      %v1356 = vsel %vm977, %v1350, 0.0
      %1357 = vadd.xlane.f32.xlu0 %v1356
      %v1358 = vpop.xlane.xlu0 %1357
      %v1359 = vsel %vm984, %v1352, 0.0
      %1360 = vadd.xlane.f32.xlu0 %v1359
      %v1361 = vpop.xlane.xlu0 %1360
      %v1362 = vrcp.pop %v1355
      %v1363 = vrcp.pop %v1358
      %v1364 = vrcp.pop %v1361
      %v1365 = vmul.f32 %v1348, %v1362
      %v1366 = vmul.f32 %v1350, %v1363
      %v1367 = vmul.f32 %v1352, %v1364
      %v1368 = vpack.c.bf16 %v1366, %v1365
      %v1369 = vpack.c.bf16 %v1367, %v1367
      %1370 = vrot.lane.b32.xlu0 %v938, 40
      %v1371 = vpop.permute.xlu0 %1370
      %1372 = vrot.lane.b32.xlu0 %v939, 40
      %v1373 = vpop.permute.xlu0 %1372
      %v1376 = vsel %vm977, %v1368, 0
      %v1379 = vsel %vm977, %v1369, 0
      %v1382 = vand.u32 %v1373, %v1027
      %1384 = vmatpush.bf16.msra.mxu0 0
      %1385 = vmatpush.bf16.msra.mxu0 0
      %1386 = vmatpush.bf16.msra.mxu0 0
      %1387 = vmatpush.bf16.msra.mxu0 0
      %1388 = vmatpush.bf16.msra.mxu0 0
      %1389 = vmatpush.bf16.msra.mxu0 0
      %1390 = vmatpush.bf16.msra.mxu0 %v1382
      %1391 = vmatpush.bf16.msra.mxu0 %v1371
      %1392 = vmatmul.bf16.gmra.mxu0 %v1376
      %v1393 = vpop.f32.mrf.mxu0
      %v1394 = vadd.f32 0.0, %v1393
      %v1395 = vpop.f32.mrf.mxu0
      %v1396 = vadd.f32 0.0, %v1395
      %1397 = vmatmul.bf16.gmra.mxu0 %v1379
      %v1398 = vpop.f32.mrf.mxu0
      %v1399 = vadd.f32 0.0, %v1398
      %v1400 = vpop.f32.mrf.mxu0
      %1401 = vdwg.mxu0
      %1405 = vrot.lane.b32.xlu0 %v1394, 24
      %v1406 = vpop.permute.xlu0 %1405
      %1407 = vrot.lane.b32.xlu0 %v1396, 24
      %v1408 = vpop.permute.xlu0 %1407
      %1409 = vrot.lane.b32.xlu0 %v1399, 24
      %v1410 = vpop.permute.xlu0 %1409
      %vm1414 = vcmask 261312
      %1415 = vst.msk [vmem:[#allocation3] sm:$0xff] %vm1414, %v1406
      %1416 = vst.msk [vmem:[#allocation3 + $0x8] sm:$0xff] %vm1414, %v1408
      %vm1417 = vcmask 254144
      %1418 = vst.msk [vmem:[#allocation3 + $0x10] sm:$0x1] %vm1417, %v1410
      %v1419 = vld [vmem:[#allocation3] sm:$0xff]
      %v1420 = vld [vmem:[#allocation3 + $0x8] sm:$0xff]
      %v1421 = vld [vmem:[#allocation3 + $0x10] sm:$0x1]
      %v1422 = vpack.c.bf16 %v1420, %v1419
      %v1423 = vpack.c.bf16 %v1421, %v1421
      %v1424 = vld [vmem:[%s10] sm:$0xf]
      %v1425 = vld [vmem:[%s10 + $0x4] sm:$0xf]
      %v1426 = vld [vmem:[%s10 + $0x8] sm:$0xf]
      %v1427 = vld [vmem:[%s10 + $0xc] sm:$0xf]
      %v1428 = vld [vmem:[%s11] sm:$0x1]
      %v1430 = vperm.slane %v1428, 0
      %v1436 = vunpack.c.l.b16 %v1424
      %v1437 = vunpack.c.l.b16 %v1425
      %v1438 = vunpack.c.l.b16 %v1426
      %v1439 = vunpack.c.l.b16 %v1427
      %v1440 = vpack.c.b16 %v1437, %v1436
      %v1441 = vpack.c.b16 %v1439, %v1438
      %v1445 = vsel %vm707, %v1422, 0
      %v1448 = vsel %vm707, %v1423, 0
      %1450 = vmatpush.bf16.msra.mxu0 0
      %1451 = vmatpush.bf16.msra.mxu0 0
      %1452 = vmatpush.bf16.msra.mxu0 0
      %1453 = vmatpush.bf16.msra.mxu0 0
      %1454 = vmatpush.bf16.msra.mxu0 0
      %1455 = vmatpush.bf16.msra.mxu0 0
      %1456 = vmatpush.bf16.msra.mxu0 %v1441
      %1457 = vmatpush.bf16.msra.mxu0 %v1440
      %1458 = vmatmul.bf16.gmra.mxu0 %v1445
      %v1459 = vpop.f32.mrf.mxu0
      %v1460 = vadd.f32 %v1430, %v1459
      %v1461 = vpop.f32.mrf.mxu0
      %v1462 = vadd.f32 %v1430, %v1461
      %1463 = vmatmul.bf16.gmra.mxu0 %v1448
      %v1464 = vpop.f32.mrf.mxu0
      %v1465 = vadd.f32 %v1430, %v1464
      %v1466 = vpop.f32.mrf.mxu0
      %1467 = vdwg.mxu0
      %v1468 = vadd.f32 %v803, %v1460
      %v1469 = vadd.f32 %v804, %v1462
      %v1470 = vadd.f32 %v805, %v1465
      %v1471 = vld [vmem:[%s12] sm:$0x1]
      %v1472 = vld [vmem:[%s13] sm:$0x1]
      %v1473 = vsel %vm707, %v1468, 0.0
      %1474 = vadd.xlane.f32.xlu0 %v1473
      %v1475 = vpop.xlane.xlu0 %1474
      %v1476 = vsel %vm707, %v1469, 0.0
      %1477 = vadd.xlane.f32.xlu0 %v1476
      %v1478 = vpop.xlane.xlu0 %1477
      %v1479 = vsel %vm658, %v1470, 0.0
      %1480 = vadd.xlane.f32.xlu0 %v1479
      %v1481 = vpop.xlane.xlu0 %1480
      %v1482 = vmul.f32 %v1475, %v730
      %v1483 = vmul.f32 %v1478, %v730
      %v1484 = vmul.f32 %v1481, %v730
      %v1485 = vmul.f32 %v1468, %v1468
      %v1486 = vmul.f32 %v1469, %v1469
      %v1487 = vmul.f32 %v1470, %v1470
      %v1488 = vsel %vm707, %v1485, 0.0
      %1489 = vadd.xlane.f32.xlu0 %v1488
      %v1490 = vpop.xlane.xlu0 %1489
      %v1491 = vsel %vm707, %v1486, 0.0
      %1492 = vadd.xlane.f32.xlu0 %v1491
      %v1493 = vpop.xlane.xlu0 %1492
      %v1494 = vsel %vm658, %v1487, 0.0
      %1495 = vadd.xlane.f32.xlu0 %v1494
      %v1496 = vpop.xlane.xlu0 %1495
      %v1497 = vmul.f32 %v1490, %v730
      %v1498 = vmul.f32 %v1493, %v730
      %v1499 = vmul.f32 %v1496, %v730
      %v1500 = vmul.f32 %v1482, %v1482
      %v1501 = vmul.f32 %v1483, %v1483
      %v1502 = vmul.f32 %v1484, %v1484
      %v1503 = vsub.f32 %v1497, %v1500
      %v1504 = vsub.f32 %v1498, %v1501
      %v1505 = vsub.f32 %v1499, %v1502
      %v1506 = vsub.f32 %v1468, %v1482
      %v1507 = vsub.f32 %v1469, %v1483
      %v1508 = vsub.f32 %v1470, %v1484
      %v1509 = vadd.f32 %v1503, 1e-05
      %v1510 = vadd.f32 %v1504, 1e-05
      %v1511 = vadd.f32 %v1505, 1e-05
      %v1512 = vrsqrt.pop %v1509
      %v1513 = vmul.f32 %v1512, %v1509
      %v1514 = vmul.f32 %v1513, %v1512
      %v1515 = vmul.f32 0.5, %v1514
      %v1516 = vsub.f32 1.5, %v1515
      %v1517 = vmul.f32 %v1512, %v1516
      %vm1518 = vweird.f32 %v1509
      %vm1519 = vweird.f32 %v1512
      %vm1520 = vmor %vm1518, %vm1519
      %v1521 = vsel %vm1520, %v1512, %v1517
      %v1522 = vrsqrt.pop %v1510
      %v1523 = vmul.f32 %v1522, %v1510
      %v1524 = vmul.f32 %v1523, %v1522
      %v1525 = vmul.f32 0.5, %v1524
      %v1526 = vsub.f32 1.5, %v1525
      %v1527 = vmul.f32 %v1522, %v1526
      %vm1528 = vweird.f32 %v1510
      %vm1529 = vweird.f32 %v1522
      %vm1530 = vmor %vm1528, %vm1529
      %v1531 = vsel %vm1530, %v1522, %v1527
      %v1532 = vrsqrt.pop %v1511
      %v1533 = vmul.f32 %v1532, %v1511
      %v1534 = vmul.f32 %v1533, %v1532
      %v1535 = vmul.f32 0.5, %v1534
      %v1536 = vsub.f32 1.5, %v1535
      %v1537 = vmul.f32 %v1532, %v1536
      %vm1538 = vweird.f32 %v1511
      %vm1539 = vweird.f32 %v1532
      %vm1540 = vmor %vm1538, %vm1539
      %v1541 = vsel %vm1540, %v1532, %v1537
      %v1542 = vmul.f32 %v1506, %v1521
      %v1543 = vmul.f32 %v1507, %v1531
      %v1544 = vmul.f32 %v1508, %v1541
      %v1546 = vperm.slane %v1471, 0
      %v1548 = vmul.f32 %v1542, %v1546
      %v1549 = vmul.f32 %v1543, %v1546
      %v1550 = vmul.f32 %v1544, %v1546
      %v1552 = vperm.slane %v1472, 0
      %v1554 = vadd.f32 %v1548, %v1552
      %v1555 = vadd.f32 %v1549, %v1552
      %v1556 = vadd.f32 %v1550, %v1552
      %v1557 = vpack.c.bf16 %v1555, %v1554
      %v1558 = vpack.c.bf16 %v1556, %v1556
      %v1559 = vld [vmem:[%s14] sm:$0xf]
      %v1560 = vld [vmem:[%s14 + $0x4] sm:$0xf]
      %v1561 = vld [vmem:[%s14 + $0x8] sm:$0xf]
      %v1562 = vld [vmem:[%s14 + $0xc] sm:$0xf]
      %v1563 = vld [vmem:[%s15] sm:$0x1]
      %v1565 = vperm.slane %v1563, 0
      %v1571 = vunpack.c.l.b16 %v1559
      %v1572 = vunpack.c.l.b16 %v1560
      %v1573 = vunpack.c.l.b16 %v1561
      %v1574 = vunpack.c.l.b16 %v1562
      %v1575 = vpack.c.b16 %v1572, %v1571
      %v1576 = vpack.c.b16 %v1574, %v1573
      %v1580 = vsel %vm707, %v1557, 0
      %v1583 = vsel %vm707, %v1558, 0
      %1585 = vmatpush.bf16.msra.mxu0 0
      %1586 = vmatpush.bf16.msra.mxu0 0
      %1587 = vmatpush.bf16.msra.mxu0 0
      %1588 = vmatpush.bf16.msra.mxu0 0
      %1589 = vmatpush.bf16.msra.mxu0 0
      %1590 = vmatpush.bf16.msra.mxu0 0
      %1591 = vmatpush.bf16.msra.mxu0 %v1576
      %1592 = vmatpush.bf16.msra.mxu0 %v1575
      %1593 = vmatmul.bf16.gmra.mxu0 %v1580
      %v1594 = vpop.f32.mrf.mxu0
      %v1595 = vadd.f32 %v1565, %v1594
      %v1596 = vpop.f32.mrf.mxu0
      %v1597 = vadd.f32 %v1565, %v1596
      %1598 = vmatmul.bf16.gmra.mxu0 %v1583
      %v1599 = vpop.f32.mrf.mxu0
      %v1600 = vadd.f32 %v1565, %v1599
      %v1601 = vpop.f32.mrf.mxu0
      %1602 = vdwg.mxu0
      %v1603 = vmul.f32 %v1595, 1.702
      %v1604 = vmul.f32 %v1597, 1.702
      %v1605 = vmul.f32 %v1600, 1.702
      %v1606 = vxor.u32 %v1603, 2147483648
      %v1607 = vxor.u32 %v1604, 2147483648
      %v1608 = vxor.u32 %v1605, 2147483648
      %v1609 = vmul.f32 %v1606, 1.442695
      %v1610 = vpow.pop %v1609
      %v1611 = vmul.f32 %v1607, 1.442695
      %v1612 = vpow.pop %v1611
      %v1613 = vmul.f32 %v1608, 1.442695
      %v1614 = vpow.pop %v1613
      %v1615 = vadd.f32 %v1610, 1.0
      %v1616 = vadd.f32 %v1612, 1.0
      %v1617 = vadd.f32 %v1614, 1.0
      %v1618 = vrcp.pop %v1615
      %v1619 = vmul.f32 %v1615, %v1618
      %v1620 = vsub.f32 1.0, %v1619
      %v1621 = vmul.f32 %v1618, %v1620
      %v1622 = vadd.f32 %v1618, %v1621
      %vm1623 = vweird.f32 %v1615
      %vm1624 = vweird.f32 %v1618
      %vm1625 = vmor %vm1623, %vm1624
      %v1626 = vsel %vm1625, %v1618, %v1622
      %v1627 = vand.u32 2147483647, %v1615
      %vm1628 = vcmp.eq.f32.partialorder %v1627, 8.507059e+37
      %v1629 = vand.u32 %v1615, 2147483648
      %v1630 = vor.u32 1.1754944e-38, %v1629
      %v1631 = vsel %vm1628, %v1630, %v1626
      %v1632 = vmul.f32 1.0, %v1631
      %v1633 = vrcp.pop %v1616
      %v1634 = vmul.f32 %v1616, %v1633
      %v1635 = vsub.f32 1.0, %v1634
      %v1636 = vmul.f32 %v1633, %v1635
      %v1637 = vadd.f32 %v1633, %v1636
      %vm1638 = vweird.f32 %v1616
      %vm1639 = vweird.f32 %v1633
      %vm1640 = vmor %vm1638, %vm1639
      %v1641 = vsel %vm1640, %v1633, %v1637
      %v1642 = vand.u32 2147483647, %v1616
      %vm1643 = vcmp.eq.f32.partialorder %v1642, 8.507059e+37
      %v1644 = vand.u32 %v1616, 2147483648
      %v1645 = vor.u32 1.1754944e-38, %v1644
      %v1646 = vsel %vm1643, %v1645, %v1641
      %v1647 = vmul.f32 1.0, %v1646
      %v1648 = vrcp.pop %v1617
      %v1649 = vmul.f32 %v1617, %v1648
      %v1650 = vsub.f32 1.0, %v1649
      %v1651 = vmul.f32 %v1648, %v1650
      %v1652 = vadd.f32 %v1648, %v1651
      %vm1653 = vweird.f32 %v1617
      %vm1654 = vweird.f32 %v1648
      %vm1655 = vmor %vm1653, %vm1654
      %v1656 = vsel %vm1655, %v1648, %v1652
      %v1657 = vand.u32 2147483647, %v1617
      %vm1658 = vcmp.eq.f32.partialorder %v1657, 8.507059e+37
      %v1659 = vand.u32 %v1617, 2147483648
      %v1660 = vor.u32 1.1754944e-38, %v1659
      %v1661 = vsel %vm1658, %v1660, %v1656
      %v1662 = vmul.f32 1.0, %v1661
      %v1663 = vmul.f32 %v1595, %v1632
      %v1664 = vmul.f32 %v1597, %v1647
      %v1665 = vmul.f32 %v1600, %v1662
      %v1666 = vpack.c.bf16 %v1664, %v1663
      %v1667 = vpack.c.bf16 %v1665, %v1665
      %v1668 = vld [vmem:[%s16] sm:$0xf]
      %v1669 = vld [vmem:[%s16 + $0x4] sm:$0xf]
      %v1670 = vld [vmem:[%s16 + $0x8] sm:$0xf]
      %v1671 = vld [vmem:[%s16 + $0xc] sm:$0xf]
      %v1672 = vld [vmem:[%s16 + $0x10] sm:$0xf]
      %v1673 = vld [vmem:[%s16 + $0x14] sm:$0xf]
      %v1674 = vld [vmem:[%s16 + $0x18] sm:$0xf]
      %v1675 = vld [vmem:[%s16 + $0x1c] sm:$0xf]
      %v1684 = vunpack.c.l.b16 %v1668
      %v1685 = vunpack.c.l.b16 %v1669
      %v1686 = vunpack.c.l.b16 %v1670
      %v1687 = vunpack.c.l.b16 %v1671
      %v1688 = vunpack.c.l.b16 %v1672
      %v1689 = vunpack.c.l.b16 %v1673
      %v1690 = vunpack.c.l.b16 %v1674
      %v1691 = vunpack.c.l.b16 %v1675
      %v1692 = vpack.c.b16 %v1685, %v1684
      %v1693 = vpack.c.b16 %v1687, %v1686
      %v1694 = vpack.c.b16 %v1689, %v1688
      %v1695 = vpack.c.b16 %v1691, %v1690
      %vm1700 = vcmask 523264
      %v1702 = vsel %vm1700, %v1666, 0
      %v1705 = vsel %vm1700, %v1667, 0
      %1707 = vmatpush.bf16.msra.mxu0 0
      %1708 = vmatpush.bf16.msra.mxu0 0
      %1709 = vmatpush.bf16.msra.mxu0 0
      %1710 = vmatpush.bf16.msra.mxu0 0
      %1711 = vmatpush.bf16.msra.mxu0 %v1695
      %1712 = vmatpush.bf16.msra.mxu0 %v1694
      %1713 = vmatpush.bf16.msra.mxu0 %v1693
      %1714 = vmatpush.bf16.msra.mxu0 %v1692
      %1715 = vmatmul.bf16.gmra.mxu0 %v1702
      %v1716 = vpop.f32.mrf.mxu0
      %v1717 = vadd.f32 0.0, %v1716
      %v1718 = vpop.f32.mrf.mxu0
      %v1719 = vadd.f32 0.0, %v1718
      %1720 = vmatmul.bf16.gmra.mxu0 %v1705
      %v1721 = vpop.f32.mrf.mxu0
      %v1722 = vadd.f32 0.0, %v1721
      %v1723 = vpop.f32.mrf.mxu0
      %1724 = vdwg.mxu0
      %v1725 = vadd.f32 %v1468, %v1717
      %v1726 = vadd.f32 %v1469, %v1719
      %v1727 = vadd.f32 %v1470, %v1722
      %v1728 = vld [vmem:[%s17] sm:$0x1]
      %v1730 = vperm.slane %v1728, 0
      %v1732 = vadd.f32 %v1725, %v1730
      %v1733 = vadd.f32 %v1726, %v1730
      %v1734 = vadd.f32 %v1727, %v1730
      %s1735 = scalar_lea.vmem %s6, 1
      %v1736 = vld [vmem:[%s1735] sm:$0x1]
      %s1737 = scalar_lea.vmem %s7, 1
      %v1738 = vld [vmem:[%s1737] sm:$0x1]
      %v1739 = vsel %vm707, %v1732, 0.0
      %1740 = vadd.xlane.f32.xlu0 %v1739
      %v1741 = vpop.xlane.xlu0 %1740
      %v1742 = vsel %vm707, %v1733, 0.0
      %1743 = vadd.xlane.f32.xlu0 %v1742
      %v1744 = vpop.xlane.xlu0 %1743
      %v1745 = vsel %vm658, %v1734, 0.0
      %1746 = vadd.xlane.f32.xlu0 %v1745
      %v1747 = vpop.xlane.xlu0 %1746
      %v1748 = vmul.f32 %v1741, %v730
      %v1749 = vmul.f32 %v1744, %v730
      %v1750 = vmul.f32 %v1747, %v730
      %v1751 = vmul.f32 %v1732, %v1732
      %v1752 = vmul.f32 %v1733, %v1733
      %v1753 = vmul.f32 %v1734, %v1734
      %v1754 = vsel %vm707, %v1751, 0.0
      %1755 = vadd.xlane.f32.xlu0 %v1754
      %v1756 = vpop.xlane.xlu0 %1755
      %v1757 = vsel %vm707, %v1752, 0.0
      %1758 = vadd.xlane.f32.xlu0 %v1757
      %v1759 = vpop.xlane.xlu0 %1758
      %v1760 = vsel %vm658, %v1753, 0.0
      %1761 = vadd.xlane.f32.xlu0 %v1760
      %v1762 = vpop.xlane.xlu0 %1761
      %v1763 = vmul.f32 %v1756, %v730
      %v1764 = vmul.f32 %v1759, %v730
      %v1765 = vmul.f32 %v1762, %v730
      %v1766 = vmul.f32 %v1748, %v1748
      %v1767 = vmul.f32 %v1749, %v1749
      %v1768 = vmul.f32 %v1750, %v1750
      %v1769 = vsub.f32 %v1763, %v1766
      %v1770 = vsub.f32 %v1764, %v1767
      %v1771 = vsub.f32 %v1765, %v1768
      %v1772 = vsub.f32 %v1732, %v1748
      %v1773 = vsub.f32 %v1733, %v1749
      %v1774 = vsub.f32 %v1734, %v1750
      %v1775 = vadd.f32 %v1769, 1e-05
      %v1776 = vadd.f32 %v1770, 1e-05
      %v1777 = vadd.f32 %v1771, 1e-05
      %v1778 = vrsqrt.pop %v1775
      %v1779 = vmul.f32 %v1778, %v1775
      %v1780 = vmul.f32 %v1779, %v1778
      %v1781 = vmul.f32 0.5, %v1780
      %v1782 = vsub.f32 1.5, %v1781
      %v1783 = vmul.f32 %v1778, %v1782
      %vm1784 = vweird.f32 %v1775
      %vm1785 = vweird.f32 %v1778
      %vm1786 = vmor %vm1784, %vm1785
      %v1787 = vsel %vm1786, %v1778, %v1783
      %v1788 = vrsqrt.pop %v1776
      %v1789 = vmul.f32 %v1788, %v1776
      %v1790 = vmul.f32 %v1789, %v1788
      %v1791 = vmul.f32 0.5, %v1790
      %v1792 = vsub.f32 1.5, %v1791
      %v1793 = vmul.f32 %v1788, %v1792
      %vm1794 = vweird.f32 %v1776
      %vm1795 = vweird.f32 %v1788
      %vm1796 = vmor %vm1794, %vm1795
      %v1797 = vsel %vm1796, %v1788, %v1793
      %v1798 = vrsqrt.pop %v1777
      %v1799 = vmul.f32 %v1798, %v1777
      %v1800 = vmul.f32 %v1799, %v1798
      %v1801 = vmul.f32 0.5, %v1800
      %v1802 = vsub.f32 1.5, %v1801
      %v1803 = vmul.f32 %v1798, %v1802
      %vm1804 = vweird.f32 %v1777
      %vm1805 = vweird.f32 %v1798
      %vm1806 = vmor %vm1804, %vm1805
      %v1807 = vsel %vm1806, %v1798, %v1803
      %v1808 = vmul.f32 %v1772, %v1787
      %v1809 = vmul.f32 %v1773, %v1797
      %v1810 = vmul.f32 %v1774, %v1807
      %v1812 = vperm.slane %v1736, 0
      %v1814 = vmul.f32 %v1808, %v1812
      %v1815 = vmul.f32 %v1809, %v1812
      %v1816 = vmul.f32 %v1810, %v1812
      %v1818 = vperm.slane %v1738, 0
      %v1820 = vadd.f32 %v1814, %v1818
      %v1821 = vadd.f32 %v1815, %v1818
      %v1822 = vadd.f32 %v1816, %v1818
      %v1823 = vpack.c.bf16 %v1821, %v1820
      %v1824 = vpack.c.bf16 %v1822, %v1822
      %s1825 = scalar_lea.vmem %s8, 16
      %v1826 = vld [vmem:[%s1825] sm:$0xf]
      %v1827 = vld [vmem:[%s1825 + $0x4] sm:$0xf]
      %v1828 = vld [vmem:[%s1825 + $0x8] sm:$0xf]
      %v1829 = vld [vmem:[%s1825 + $0xc] sm:$0xf]
      %s1830 = scalar_lea.vmem %s9, 1
      %v1831 = vld [vmem:[%s1830] sm:$0x1]
      %v1833 = vperm.slane %v1831, 0
      %v1839 = vunpack.c.l.b16 %v1826
      %v1840 = vunpack.c.l.b16 %v1827
      %v1841 = vunpack.c.l.b16 %v1828
      %v1842 = vunpack.c.l.b16 %v1829
      %v1843 = vpack.c.b16 %v1840, %v1839
      %v1844 = vpack.c.b16 %v1842, %v1841
      %v1848 = vsel %vm707, %v1823, 0
      %v1851 = vsel %vm707, %v1824, 0
      %1853 = vmatpush.bf16.msra.mxu0 0
      %1854 = vmatpush.bf16.msra.mxu0 0
      %1855 = vmatpush.bf16.msra.mxu0 0
      %1856 = vmatpush.bf16.msra.mxu0 0
      %1857 = vmatpush.bf16.msra.mxu0 0
      %1858 = vmatpush.bf16.msra.mxu0 0
      %1859 = vmatpush.bf16.msra.mxu0 %v1844
      %1860 = vmatpush.bf16.msra.mxu0 %v1843
      %1861 = vmatmul.bf16.gmra.mxu0 %v1848
      %v1862 = vpop.f32.mrf.mxu0
      %v1863 = vadd.f32 %v1833, %v1862
      %v1864 = vpop.f32.mrf.mxu0
      %v1865 = vadd.f32 %v1833, %v1864
      %1866 = vmatmul.bf16.gmra.mxu0 %v1851
      %v1867 = vpop.f32.mrf.mxu0
      %v1868 = vadd.f32 %v1833, %v1867
      %v1869 = vpop.f32.mrf.mxu0
      %1870 = vdwg.mxu0
      %v1871 = vpack.c.bf16 %v1865, %v1863
      %v1872 = vpack.c.bf16 %v1868, %v1868
      %1875 = vrot.lane.b32.xlu0 %v1871, 96
      %v1876 = vpop.permute.xlu0 %1875
      %1877 = vrot.lane.b32.xlu0 %v1872, 96
      %v1878 = vpop.permute.xlu0 %1877
      %v1880 = vsel %vm946, %v1871, 0
      %v1883 = vsel %vm946, %v1872, 0
      %v1886 = vsel %vm946, %v1876, 0
      %v1889 = vsel %vm946, %v1878, 0
      %1891 = vmatpush.bf16.xpose.msra.mxu0 0
      %1892 = vmatpush.bf16.xpose.msra.mxu0 0
      %1893 = vmatpush.bf16.xpose.msra.mxu0 0
      %1894 = vmatpush.bf16.xpose.msra.mxu0 0
      %1895 = vmatpush.bf16.xpose.msra.mxu0 0
      %1896 = vmatpush.bf16.xpose.msra.mxu0 0
      %1897 = vmatpush.bf16.xpose.msra.mxu0 %v1889
      %1898 = vmatpush.bf16.xpose.msra.mxu0 %v1886
      %1899 = vmatmul.bf16.gmra.mxu0 %v1880
      %v1900 = vpop.f32.mrf.mxu0
      %v1901 = vadd.f32 0.0, %v1900
      %v1902 = vpop.f32.mrf.mxu0
      %v1903 = vadd.f32 0.0, %v1902
      %1904 = vmatmul.bf16.gmra.mxu0 %v1883
      %v1905 = vpop.f32.mrf.mxu0
      %v1906 = vadd.f32 0.0, %v1905
      %v1907 = vpop.f32.mrf.mxu0
      %1908 = vdwg.mxu0
      %v1909 = vsel %vm977, %v1901, -inf
      %1910 = vmax.xlane.f32.xlu0 %v1909
      %v1911 = vpop.xlane.xlu0 %1910
      %v1912 = vsel %vm977, %v1903, -inf
      %1913 = vmax.xlane.f32.xlu0 %v1912
      %v1914 = vpop.xlane.xlu0 %1913
      %v1915 = vsel %vm984, %v1906, -inf
      %1916 = vmax.xlane.f32.xlu0 %v1915
      %v1917 = vpop.xlane.xlu0 %1916
      %v1918 = vsub.f32 %v1901, %v1911
      %v1919 = vsub.f32 %v1903, %v1914
      %v1920 = vsub.f32 %v1906, %v1917
      %v1921 = vmul.f32 %v1918, 1.442695
      %v1922 = vpow.pop %v1921
      %v1923 = vmul.f32 %v1919, 1.442695
      %v1924 = vpow.pop %v1923
      %v1925 = vmul.f32 %v1920, 1.442695
      %v1926 = vpow.pop %v1925
      %v1927 = vsel %vm977, %v1922, 0.0
      %1928 = vadd.xlane.f32.xlu0 %v1927
      %v1929 = vpop.xlane.xlu0 %1928
      %v1930 = vsel %vm977, %v1924, 0.0
      %1931 = vadd.xlane.f32.xlu0 %v1930
      %v1932 = vpop.xlane.xlu0 %1931
      %v1933 = vsel %vm984, %v1926, 0.0
      %1934 = vadd.xlane.f32.xlu0 %v1933
      %v1935 = vpop.xlane.xlu0 %1934
      %v1936 = vrcp.pop %v1929
      %v1937 = vrcp.pop %v1932
      %v1938 = vrcp.pop %v1935
      %v1939 = vmul.f32 %v1922, %v1936
      %v1940 = vmul.f32 %v1924, %v1937
      %v1941 = vmul.f32 %v1926, %v1938
      %v1942 = vpack.c.bf16 %v1940, %v1939
      %v1943 = vpack.c.bf16 %v1941, %v1941
      %1944 = vrot.lane.b32.xlu0 %v1871, 64
      %v1945 = vpop.permute.xlu0 %1944
      %1946 = vrot.lane.b32.xlu0 %v1872, 64
      %v1947 = vpop.permute.xlu0 %1946
      %v1950 = vsel %vm977, %v1942, 0
      %v1953 = vsel %vm977, %v1943, 0
      %v1956 = vand.u32 %v1947, %v1027
      %1958 = vmatpush.bf16.msra.mxu0 0
      %1959 = vmatpush.bf16.msra.mxu0 0
      %1960 = vmatpush.bf16.msra.mxu0 0
      %1961 = vmatpush.bf16.msra.mxu0 0
      %1962 = vmatpush.bf16.msra.mxu0 0
      %1963 = vmatpush.bf16.msra.mxu0 0
      %1964 = vmatpush.bf16.msra.mxu0 %v1956
      %1965 = vmatpush.bf16.msra.mxu0 %v1945
      %1966 = vmatmul.bf16.gmra.mxu0 %v1950
      %v1967 = vpop.f32.mrf.mxu0
      %v1968 = vadd.f32 0.0, %v1967
      %v1969 = vpop.f32.mrf.mxu0
      %v1970 = vadd.f32 0.0, %v1969
      %1971 = vmatmul.bf16.gmra.mxu0 %v1953
      %v1972 = vpop.f32.mrf.mxu0
      %v1973 = vadd.f32 0.0, %v1972
      %v1974 = vpop.f32.mrf.mxu0
      %1975 = vdwg.mxu0
      %1976 = vst.msk [vmem:[#allocation3] sm:$0xff] %vm946, %v1968
      %1977 = vst.msk [vmem:[#allocation3 + $0x8] sm:$0xff] %vm946, %v1970
      %1978 = vst.msk [vmem:[#allocation3 + $0x10] sm:$0x1] %vm1051, %v1973
      %1979 = vrot.lane.b32.xlu0 %v1871, 120
      %v1980 = vpop.permute.xlu0 %1979
      %1981 = vrot.lane.b32.xlu0 %v1872, 120
      %v1982 = vpop.permute.xlu0 %1981
      %1983 = vrot.lane.b32.xlu0 %v1871, 88
      %v1984 = vpop.permute.xlu0 %1983
      %1985 = vrot.lane.b32.xlu0 %v1872, 88
      %v1986 = vpop.permute.xlu0 %1985
      %v1988 = vsel %vm946, %v1980, 0
      %v1991 = vsel %vm946, %v1982, 0
      %v1994 = vsel %vm946, %v1984, 0
      %v1997 = vsel %vm946, %v1986, 0
      %1999 = vmatpush.bf16.xpose.msra.mxu0 0
      %2000 = vmatpush.bf16.xpose.msra.mxu0 0
      %2001 = vmatpush.bf16.xpose.msra.mxu0 0
      %2002 = vmatpush.bf16.xpose.msra.mxu0 0
      %2003 = vmatpush.bf16.xpose.msra.mxu0 0
      %2004 = vmatpush.bf16.xpose.msra.mxu0 0
      %2005 = vmatpush.bf16.xpose.msra.mxu0 %v1997
      %2006 = vmatpush.bf16.xpose.msra.mxu0 %v1994
      %2007 = vmatmul.bf16.gmra.mxu0 %v1988
      %v2008 = vpop.f32.mrf.mxu0
      %v2009 = vadd.f32 0.0, %v2008
      %v2010 = vpop.f32.mrf.mxu0
      %v2011 = vadd.f32 0.0, %v2010
      %2012 = vmatmul.bf16.gmra.mxu0 %v1991
      %v2013 = vpop.f32.mrf.mxu0
      %v2014 = vadd.f32 0.0, %v2013
      %v2015 = vpop.f32.mrf.mxu0
      %2016 = vdwg.mxu0
      %v2017 = vsel %vm977, %v2009, -inf
      %2018 = vmax.xlane.f32.xlu0 %v2017
      %v2019 = vpop.xlane.xlu0 %2018
      %v2020 = vsel %vm977, %v2011, -inf
      %2021 = vmax.xlane.f32.xlu0 %v2020
      %v2022 = vpop.xlane.xlu0 %2021
      %v2023 = vsel %vm984, %v2014, -inf
      %2024 = vmax.xlane.f32.xlu0 %v2023
      %v2025 = vpop.xlane.xlu0 %2024
      %v2026 = vsub.f32 %v2009, %v2019
      %v2027 = vsub.f32 %v2011, %v2022
      %v2028 = vsub.f32 %v2014, %v2025
      %v2029 = vmul.f32 %v2026, 1.442695
      %v2030 = vpow.pop %v2029
      %v2031 = vmul.f32 %v2027, 1.442695
      %v2032 = vpow.pop %v2031
      %v2033 = vmul.f32 %v2028, 1.442695
      %v2034 = vpow.pop %v2033
      %v2035 = vsel %vm977, %v2030, 0.0
      %2036 = vadd.xlane.f32.xlu0 %v2035
      %v2037 = vpop.xlane.xlu0 %2036
      %v2038 = vsel %vm977, %v2032, 0.0
      %2039 = vadd.xlane.f32.xlu0 %v2038
      %v2040 = vpop.xlane.xlu0 %2039
      %v2041 = vsel %vm984, %v2034, 0.0
      %2042 = vadd.xlane.f32.xlu0 %v2041
      %v2043 = vpop.xlane.xlu0 %2042
      %v2044 = vrcp.pop %v2037
      %v2045 = vrcp.pop %v2040
      %v2046 = vrcp.pop %v2043
      %v2047 = vmul.f32 %v2030, %v2044
      %v2048 = vmul.f32 %v2032, %v2045
      %v2049 = vmul.f32 %v2034, %v2046
      %v2050 = vpack.c.bf16 %v2048, %v2047
      %v2051 = vpack.c.bf16 %v2049, %v2049
      %2052 = vrot.lane.b32.xlu0 %v1871, 56
      %v2053 = vpop.permute.xlu0 %2052
      %2054 = vrot.lane.b32.xlu0 %v1872, 56
      %v2055 = vpop.permute.xlu0 %2054
      %v2058 = vsel %vm977, %v2050, 0
      %v2061 = vsel %vm977, %v2051, 0
      %v2064 = vand.u32 %v2055, %v1027
      %2066 = vmatpush.bf16.msra.mxu0 0
      %2067 = vmatpush.bf16.msra.mxu0 0
      %2068 = vmatpush.bf16.msra.mxu0 0
      %2069 = vmatpush.bf16.msra.mxu0 0
      %2070 = vmatpush.bf16.msra.mxu0 0
      %2071 = vmatpush.bf16.msra.mxu0 0
      %2072 = vmatpush.bf16.msra.mxu0 %v2064
      %2073 = vmatpush.bf16.msra.mxu0 %v2053
      %2074 = vmatmul.bf16.gmra.mxu0 %v2058
      %v2075 = vpop.f32.mrf.mxu0
      %v2076 = vadd.f32 0.0, %v2075
      %v2077 = vpop.f32.mrf.mxu0
      %v2078 = vadd.f32 0.0, %v2077
      %2079 = vmatmul.bf16.gmra.mxu0 %v2061
      %v2080 = vpop.f32.mrf.mxu0
      %v2081 = vadd.f32 0.0, %v2080
      %v2082 = vpop.f32.mrf.mxu0
      %2083 = vdwg.mxu0
      %2087 = vrot.lane.b32.xlu0 %v2076, 8
      %v2088 = vpop.permute.xlu0 %2087
      %2089 = vrot.lane.b32.xlu0 %v2078, 8
      %v2090 = vpop.permute.xlu0 %2089
      %2091 = vrot.lane.b32.xlu0 %v2081, 8
      %v2092 = vpop.permute.xlu0 %2091
      %2096 = vst.msk [vmem:[#allocation3] sm:$0xff] %vm1170, %v2088
      %2097 = vst.msk [vmem:[#allocation3 + $0x8] sm:$0xff] %vm1170, %v2090
      %2098 = vst.msk [vmem:[#allocation3 + $0x10] sm:$0x1] %vm1173, %v2092
      %2099 = vrot.lane.b32.xlu0 %v1871, 112
      %v2100 = vpop.permute.xlu0 %2099
      %2101 = vrot.lane.b32.xlu0 %v1872, 112
      %v2102 = vpop.permute.xlu0 %2101
      %2103 = vrot.lane.b32.xlu0 %v1871, 80
      %v2104 = vpop.permute.xlu0 %2103
      %2105 = vrot.lane.b32.xlu0 %v1872, 80
      %v2106 = vpop.permute.xlu0 %2105
      %v2108 = vsel %vm946, %v2100, 0
      %v2111 = vsel %vm946, %v2102, 0
      %v2114 = vsel %vm946, %v2104, 0
      %v2117 = vsel %vm946, %v2106, 0
      %2119 = vmatpush.bf16.xpose.msra.mxu0 0
      %2120 = vmatpush.bf16.xpose.msra.mxu0 0
      %2121 = vmatpush.bf16.xpose.msra.mxu0 0
      %2122 = vmatpush.bf16.xpose.msra.mxu0 0
      %2123 = vmatpush.bf16.xpose.msra.mxu0 0
      %2124 = vmatpush.bf16.xpose.msra.mxu0 0
      %2125 = vmatpush.bf16.xpose.msra.mxu0 %v2117
      %2126 = vmatpush.bf16.xpose.msra.mxu0 %v2114
      %2127 = vmatmul.bf16.gmra.mxu0 %v2108
      %v2128 = vpop.f32.mrf.mxu0
      %v2129 = vadd.f32 0.0, %v2128
      %v2130 = vpop.f32.mrf.mxu0
      %v2131 = vadd.f32 0.0, %v2130
      %2132 = vmatmul.bf16.gmra.mxu0 %v2111
      %v2133 = vpop.f32.mrf.mxu0
      %v2134 = vadd.f32 0.0, %v2133
      %v2135 = vpop.f32.mrf.mxu0
      %2136 = vdwg.mxu0
      %v2137 = vsel %vm977, %v2129, -inf
      %2138 = vmax.xlane.f32.xlu0 %v2137
      %v2139 = vpop.xlane.xlu0 %2138
      %v2140 = vsel %vm977, %v2131, -inf
      %2141 = vmax.xlane.f32.xlu0 %v2140
      %v2142 = vpop.xlane.xlu0 %2141
      %v2143 = vsel %vm984, %v2134, -inf
      %2144 = vmax.xlane.f32.xlu0 %v2143
      %v2145 = vpop.xlane.xlu0 %2144
      %v2146 = vsub.f32 %v2129, %v2139
      %v2147 = vsub.f32 %v2131, %v2142
      %v2148 = vsub.f32 %v2134, %v2145
      %v2149 = vmul.f32 %v2146, 1.442695
      %v2150 = vpow.pop %v2149
      %v2151 = vmul.f32 %v2147, 1.442695
      %v2152 = vpow.pop %v2151
      %v2153 = vmul.f32 %v2148, 1.442695
      %v2154 = vpow.pop %v2153
      %v2155 = vsel %vm977, %v2150, 0.0
      %2156 = vadd.xlane.f32.xlu0 %v2155
      %v2157 = vpop.xlane.xlu0 %2156
      %v2158 = vsel %vm977, %v2152, 0.0
      %2159 = vadd.xlane.f32.xlu0 %v2158
      %v2160 = vpop.xlane.xlu0 %2159
      %v2161 = vsel %vm984, %v2154, 0.0
      %2162 = vadd.xlane.f32.xlu0 %v2161
      %v2163 = vpop.xlane.xlu0 %2162
      %v2164 = vrcp.pop %v2157
      %v2165 = vrcp.pop %v2160
      %v2166 = vrcp.pop %v2163
      %v2167 = vmul.f32 %v2150, %v2164
      %v2168 = vmul.f32 %v2152, %v2165
      %v2169 = vmul.f32 %v2154, %v2166
      %v2170 = vpack.c.bf16 %v2168, %v2167
      %v2171 = vpack.c.bf16 %v2169, %v2169
      %2172 = vrot.lane.b32.xlu0 %v1871, 48
      %v2173 = vpop.permute.xlu0 %2172
      %2174 = vrot.lane.b32.xlu0 %v1872, 48
      %v2175 = vpop.permute.xlu0 %2174
      %v2178 = vsel %vm977, %v2170, 0
      %v2181 = vsel %vm977, %v2171, 0
      %v2184 = vand.u32 %v2175, %v1027
      %2186 = vmatpush.bf16.msra.mxu0 0
      %2187 = vmatpush.bf16.msra.mxu0 0
      %2188 = vmatpush.bf16.msra.mxu0 0
      %2189 = vmatpush.bf16.msra.mxu0 0
      %2190 = vmatpush.bf16.msra.mxu0 0
      %2191 = vmatpush.bf16.msra.mxu0 0
      %2192 = vmatpush.bf16.msra.mxu0 %v2184
      %2193 = vmatpush.bf16.msra.mxu0 %v2173
      %2194 = vmatmul.bf16.gmra.mxu0 %v2178
      %v2195 = vpop.f32.mrf.mxu0
      %v2196 = vadd.f32 0.0, %v2195
      %v2197 = vpop.f32.mrf.mxu0
      %v2198 = vadd.f32 0.0, %v2197
      %2199 = vmatmul.bf16.gmra.mxu0 %v2181
      %v2200 = vpop.f32.mrf.mxu0
      %v2201 = vadd.f32 0.0, %v2200
      %v2202 = vpop.f32.mrf.mxu0
      %2203 = vdwg.mxu0
      %2207 = vrot.lane.b32.xlu0 %v2196, 16
      %v2208 = vpop.permute.xlu0 %2207
      %2209 = vrot.lane.b32.xlu0 %v2198, 16
      %v2210 = vpop.permute.xlu0 %2209
      %2211 = vrot.lane.b32.xlu0 %v2201, 16
      %v2212 = vpop.permute.xlu0 %2211
      %2216 = vst.msk [vmem:[#allocation3] sm:$0xff] %vm1292, %v2208
      %2217 = vst.msk [vmem:[#allocation3 + $0x8] sm:$0xff] %vm1292, %v2210
      %2218 = vst.msk [vmem:[#allocation3 + $0x10] sm:$0x1] %vm1295, %v2212
      %2219 = vrot.lane.b32.xlu0 %v1871, 104
      %v2220 = vpop.permute.xlu0 %2219
      %2221 = vrot.lane.b32.xlu0 %v1872, 104
      %v2222 = vpop.permute.xlu0 %2221
      %2223 = vrot.lane.b32.xlu0 %v1871, 72
      %v2224 = vpop.permute.xlu0 %2223
      %2225 = vrot.lane.b32.xlu0 %v1872, 72
      %v2226 = vpop.permute.xlu0 %2225
      %v2228 = vsel %vm946, %v2220, 0
      %v2231 = vsel %vm946, %v2222, 0
      %v2234 = vsel %vm946, %v2224, 0
      %v2237 = vsel %vm946, %v2226, 0
      %2239 = vmatpush.bf16.xpose.msra.mxu0 0
      %2240 = vmatpush.bf16.xpose.msra.mxu0 0
      %2241 = vmatpush.bf16.xpose.msra.mxu0 0
      %2242 = vmatpush.bf16.xpose.msra.mxu0 0
      %2243 = vmatpush.bf16.xpose.msra.mxu0 0
      %2244 = vmatpush.bf16.xpose.msra.mxu0 0
      %2245 = vmatpush.bf16.xpose.msra.mxu0 %v2237
      %2246 = vmatpush.bf16.xpose.msra.mxu0 %v2234
      %2247 = vmatmul.bf16.gmra.mxu0 %v2228
      %v2248 = vpop.f32.mrf.mxu0
      %v2249 = vadd.f32 0.0, %v2248
      %v2250 = vpop.f32.mrf.mxu0
      %v2251 = vadd.f32 0.0, %v2250
      %2252 = vmatmul.bf16.gmra.mxu0 %v2231
      %v2253 = vpop.f32.mrf.mxu0
      %v2254 = vadd.f32 0.0, %v2253
      %v2255 = vpop.f32.mrf.mxu0
      %2256 = vdwg.mxu0
      %v2257 = vsel %vm977, %v2249, -inf
      %2258 = vmax.xlane.f32.xlu0 %v2257
      %v2259 = vpop.xlane.xlu0 %2258
      %v2260 = vsel %vm977, %v2251, -inf
      %2261 = vmax.xlane.f32.xlu0 %v2260
      %v2262 = vpop.xlane.xlu0 %2261
      %v2263 = vsel %vm984, %v2254, -inf
      %2264 = vmax.xlane.f32.xlu0 %v2263
      %v2265 = vpop.xlane.xlu0 %2264
      %v2266 = vsub.f32 %v2249, %v2259
      %v2267 = vsub.f32 %v2251, %v2262
      %v2268 = vsub.f32 %v2254, %v2265
      %v2269 = vmul.f32 %v2266, 1.442695
      %v2270 = vpow.pop %v2269
      %v2271 = vmul.f32 %v2267, 1.442695
      %v2272 = vpow.pop %v2271
      %v2273 = vmul.f32 %v2268, 1.442695
      %v2274 = vpow.pop %v2273
      %v2275 = vsel %vm977, %v2270, 0.0
      %2276 = vadd.xlane.f32.xlu0 %v2275
      %v2277 = vpop.xlane.xlu0 %2276
      %v2278 = vsel %vm977, %v2272, 0.0
      %2279 = vadd.xlane.f32.xlu0 %v2278
      %v2280 = vpop.xlane.xlu0 %2279
      %v2281 = vsel %vm984, %v2274, 0.0
      %2282 = vadd.xlane.f32.xlu0 %v2281
      %v2283 = vpop.xlane.xlu0 %2282
      %v2284 = vrcp.pop %v2277
      %v2285 = vrcp.pop %v2280
      %v2286 = vrcp.pop %v2283
      %v2287 = vmul.f32 %v2270, %v2284
      %v2288 = vmul.f32 %v2272, %v2285
      %v2289 = vmul.f32 %v2274, %v2286
      %v2290 = vpack.c.bf16 %v2288, %v2287
      %v2291 = vpack.c.bf16 %v2289, %v2289
      %2292 = vrot.lane.b32.xlu0 %v1871, 40
      %v2293 = vpop.permute.xlu0 %2292
      %2294 = vrot.lane.b32.xlu0 %v1872, 40
      %v2295 = vpop.permute.xlu0 %2294
      %v2298 = vsel %vm977, %v2290, 0
      %v2301 = vsel %vm977, %v2291, 0
      %v2304 = vand.u32 %v2295, %v1027
      %2306 = vmatpush.bf16.msra.mxu0 0
      %2307 = vmatpush.bf16.msra.mxu0 0
      %2308 = vmatpush.bf16.msra.mxu0 0
      %2309 = vmatpush.bf16.msra.mxu0 0
      %2310 = vmatpush.bf16.msra.mxu0 0
      %2311 = vmatpush.bf16.msra.mxu0 0
      %2312 = vmatpush.bf16.msra.mxu0 %v2304
      %2313 = vmatpush.bf16.msra.mxu0 %v2293
      %2314 = vmatmul.bf16.gmra.mxu0 %v2298
      %v2315 = vpop.f32.mrf.mxu0
      %v2316 = vadd.f32 0.0, %v2315
      %v2317 = vpop.f32.mrf.mxu0
      %v2318 = vadd.f32 0.0, %v2317
      %2319 = vmatmul.bf16.gmra.mxu0 %v2301
      %v2320 = vpop.f32.mrf.mxu0
      %v2321 = vadd.f32 0.0, %v2320
      %v2322 = vpop.f32.mrf.mxu0
      %2323 = vdwg.mxu0
      %2327 = vrot.lane.b32.xlu0 %v2316, 24
      %v2328 = vpop.permute.xlu0 %2327
      %2329 = vrot.lane.b32.xlu0 %v2318, 24
      %v2330 = vpop.permute.xlu0 %2329
      %2331 = vrot.lane.b32.xlu0 %v2321, 24
      %v2332 = vpop.permute.xlu0 %2331
      %2336 = vst.msk [vmem:[#allocation3] sm:$0xff] %vm1414, %v2328
      %2337 = vst.msk [vmem:[#allocation3 + $0x8] sm:$0xff] %vm1414, %v2330
      %2338 = vst.msk [vmem:[#allocation3 + $0x10] sm:$0x1] %vm1417, %v2332
      %vm2339 = vcmask 261121
      %2340 = vst.msk [vmem:[%s637 - $0x1] sm:$0xfe] %vm2339, %v1732
      %2341 = vst.msk [vmem:[%s637 + $0x7] sm:$0xff] %vm707, %v1733
      %2342 = vst.msk [vmem:[%s637 + $0xf] sm:$0x1] %vm658, %v1734
      %v2346 = vrot.slane %v1732, 1
      %v2347 = vrot.slane %v1733, 1
      %v2348 = vsel %vm681, %v2346, %v2347
      %v2349 = vrot.slane %v1734, 1
      %v2350 = vsel %vm681, %v2347, %v2349
      %2353 = vxpose.xlu0.b32.start [1/16] %v2348, 128
      %2354 = vxpose.xlu0.b32.cont [2/16] %v2350, 128
      %2355 = vxpose.xlu0.b32.cont [3/16] 0.0, 128
      %2356 = vxpose.xlu0.b32.cont [4/16] 0.0, 128
      %2357 = vxpose.xlu0.b32.cont [5/16] 0.0, 128
      %2358 = vxpose.xlu0.b32.cont [6/16] 0.0, 128
      %2359 = vxpose.xlu0.b32.cont [7/16] 0.0, 128
      %2360 = vxpose.xlu0.b32.cont [8/16] 0.0, 128
      %2361 = vxpose.xlu0.b32.cont [9/16] 0.0, 128
      %2362 = vxpose.xlu0.b32.cont [10/16] 0.0, 128
      %2363 = vxpose.xlu0.b32.cont [11/16] 0.0, 128
      %2364 = vxpose.xlu0.b32.cont [12/16] 0.0, 128
      %2365 = vxpose.xlu0.b32.cont [13/16] 0.0, 128
      %2366 = vxpose.xlu0.b32.cont [14/16] 0.0, 128
      %2367 = vxpose.xlu0.b32.cont [15/16] 0.0, 128
      %2368 = vxpose.xlu0.b32.end [16/16] 0.0, 128
      %v2369 = vpop.trf.xlu0
      %v2370 = vpop.trf.xlu0
      %v2371 = vpop.trf.xlu0
      %v2372 = vpop.trf.xlu0
      %v2373 = vpop.trf.xlu0
      %v2374 = vpop.trf.xlu0
      %v2375 = vpop.trf.xlu0
      %v2376 = vpop.trf.xlu0
      %v2377 = vpop.trf.xlu0
      %v2378 = vpop.trf.xlu0
      %v2379 = vpop.trf.xlu0
      %v2380 = vpop.trf.xlu0
      %v2381 = vpop.trf.xlu0
      %v2382 = vpop.trf.xlu0
      %v2383 = vpop.trf.xlu0
      %v2384 = vpop.trf.xlu0
      %v2385 = vpack.c.bf16 %v2370, %v2369
      %v2386 = vpack.c.bf16 %v2372, %v2371
      %v2387 = vld [vmem:[%s18] sm:$0xff]
      %v2388 = vld [vmem:[%s18 + $0x8] sm:$0xf]
      %v2389 = vld [vmem:[%s18 + $0xc] sm:$0xff]
      %v2390 = vld [vmem:[%s18 + $0x14] sm:$0xf]
      %v2395 = vunpack.c.l.b16 %v2387
      %v2396 = vunpack.c.h.b16 %v2387
      %v2397 = vunpack.c.l.b16 %v2388
      %v2398 = vunpack.c.l.b16 %v2389
      %v2399 = vunpack.c.h.b16 %v2389
      %v2400 = vunpack.c.l.b16 %v2390
      %v2401 = vpack.c.b16 %v2398, %v2395
      %v2402 = vpack.c.b16 %v2399, %v2396
      %v2403 = vpack.c.b16 %v2400, %v2397
      %vm2407 = vcmask 130048
      %v2409 = vsel %vm2407, %v2385, 0
      %v2412 = vsel %vm2407, %v2386, 0
      %2414 = vmatpush.bf16.msra.mxu0 0
      %2415 = vmatpush.bf16.msra.mxu0 0
      %2416 = vmatpush.bf16.msra.mxu0 0
      %2417 = vmatpush.bf16.msra.mxu0 0
      %2418 = vmatpush.bf16.msra.mxu0 0
      %2419 = vmatpush.bf16.msra.mxu0 0
      %2420 = vmatpush.bf16.msra.mxu0 0
      %2421 = vmatpush.bf16.msra.mxu0 %v2401
      %2422 = vmatmul.bf16.gmra.mxu0 %v2409
      %v2423 = vpop.f32.mrf.mxu0
      %v2424 = vadd.f32 0.0, %v2423
      %v2425 = vpop.f32.mrf.mxu0
      %v2426 = vadd.f32 0.0, %v2425
      %2427 = vmatmul.bf16.gmra.mxu0 %v2412
      %v2428 = vpop.f32.mrf.mxu0
      %v2429 = vadd.f32 0.0, %v2428
      %v2430 = vpop.f32.mrf.mxu0
      %v2431 = vadd.f32 0.0, %v2430
      %2432 = vdwg.mxu0
      %2433 = vmatpush.bf16.msra.mxu0 0
      %2434 = vmatpush.bf16.msra.mxu0 0
      %2435 = vmatpush.bf16.msra.mxu0 0
      %2436 = vmatpush.bf16.msra.mxu0 0
      %2437 = vmatpush.bf16.msra.mxu0 0
      %2438 = vmatpush.bf16.msra.mxu0 0
      %2439 = vmatpush.bf16.msra.mxu0 0
      %2440 = vmatpush.bf16.msra.mxu0 %v2402
      %2441 = vmatmul.bf16.gmra.mxu0 %v2409
      %v2442 = vpop.f32.mrf.mxu0
      %v2443 = vadd.f32 0.0, %v2442
      %v2444 = vpop.f32.mrf.mxu0
      %v2445 = vadd.f32 0.0, %v2444
      %2446 = vmatmul.bf16.gmra.mxu0 %v2412
      %v2447 = vpop.f32.mrf.mxu0
      %v2448 = vadd.f32 0.0, %v2447
      %v2449 = vpop.f32.mrf.mxu0
      %v2450 = vadd.f32 0.0, %v2449
      %2451 = vdwg.mxu0
      %2452 = vmatpush.bf16.msra.mxu0 0
      %2453 = vmatpush.bf16.msra.mxu0 0
      %2454 = vmatpush.bf16.msra.mxu0 0
      %2455 = vmatpush.bf16.msra.mxu0 0
      %2456 = vmatpush.bf16.msra.mxu0 0
      %2457 = vmatpush.bf16.msra.mxu0 0
      %2458 = vmatpush.bf16.msra.mxu0 0
      %2459 = vmatpush.bf16.msra.mxu0 %v2403
      %2460 = vmatmul.bf16.gmra.mxu0 %v2409
      %v2461 = vpop.f32.mrf.mxu0
      %v2462 = vadd.f32 0.0, %v2461
      %v2463 = vpop.f32.mrf.mxu0
      %v2464 = vadd.f32 0.0, %v2463
      %2465 = vmatmul.bf16.gmra.mxu0 %v2412
      %v2466 = vpop.f32.mrf.mxu0
      %v2467 = vadd.f32 0.0, %v2466
      %v2468 = vpop.f32.mrf.mxu0
      %v2469 = vadd.f32 0.0, %v2468
      %2470 = vdwg.mxu0
      %2471 = vst [vmem:[%s642] sm:$0xff] %v2424
      %2472 = vst [vmem:[%s642 + $0x8] sm:$0xff] %v2443
      %2473 = vst [vmem:[%s642 + $0x10] sm:$0xff] %v2462
      %2474 = vst [vmem:[%s642 + $0x18] sm:$0xff] %v2426
      %2475 = vst [vmem:[%s642 + $0x20] sm:$0xff] %v2445
      %2476 = vst [vmem:[%s642 + $0x28] sm:$0xff] %v2464
      %2477 = vst [vmem:[%s642 + $0x30] sm:$0xff] %v2429
      %2478 = vst [vmem:[%s642 + $0x38] sm:$0xff] %v2448
      %2479 = vst [vmem:[%s642 + $0x40] sm:$0xff] %v2467
      %2480 = vst [vmem:[%s642 + $0x48] sm:$0xff] %v2431
      %2481 = vst [vmem:[%s642 + $0x50] sm:$0xff] %v2450
      %2482 = vst [vmem:[%s642 + $0x58] sm:$0xff] %v2469
      %p2483 = scmp.lt.s32.totalorder %s32, 1
      %s2484 = scalar_select %p2483, %s32, 1
      %s2485 = smul.addr %s2484, 2
      %s2486 = smul.addr %s2485, 8
      %s2487 = scalar_lea.vmem %s19, %s2486
      %p2488 = scmp.lt.s32.totalorder %s32, 1
      %s2489 = scalar_select %p2488, %s32, 1
      %s2490 = smul.addr %s2489, 12
      %s2491 = smul.addr %s2490, 8
      %s2492 = scalar_lea.vmem %s20, %s2491
      // Predicated region
      $region97: #{clip_vision_tower_forward.1} parent=95 // pred_check
        %p2493 = pneg %p454
      $region98: #{clip_vision_tower_forward.1} parent=95 // pred_check_branch
        %2495 = sbr.rel (%p2493) target = $region100
      $region99: #{clip_vision_tower_forward.1} parent=95 // pred_region
        _
      $region100: #{clip_vision_tower_forward.1} parent=95 // pred_fallthru
        _
      // Predicated region
      $region101: #{clip_vision_tower_forward.1} parent=95 // pred_check
        %p2496 = pneg %p480
      $region102: #{clip_vision_tower_forward.1} parent=95 // pred_check_branch
        %2498 = sbr.rel (%p2496) target = $region104
      $region103: #{clip_vision_tower_forward.1} parent=95 // pred_region
        _
      $region104: #{clip_vision_tower_forward.1} parent=95 // pred_fallthru
        _
    $region96: #{clip_vision_tower_forward.1} parent=5 // pred_fallthru
      _
    %p2499 = scmp.le.s32.totalorder 2, %s27
    // Predicated region
    $region105: #{clip_vision_tower_forward.1} parent=5 // pred_check
      %p2500 = pneg %p2499
    $region106: #{clip_vision_tower_forward.1} parent=5 // pred_check_branch
      %2502 = sbr.rel (%p2500) target = $region108
    $region107: #{clip_vision_tower_forward.1} parent=5 // pred_region
      %s2503 = ssub.s32 %s27, 2
      // Predicated region
      $region109: #{clip_vision_tower_forward.1} parent=107 // pred_check
        %p2504 = pneg %p460
      $region110: #{clip_vision_tower_forward.1} parent=107 // pred_check_branch
        %2506 = sbr.rel (%p2504) target = $region112
      $region111: #{clip_vision_tower_forward.1} parent=107 // pred_region
        %p2507 = scmp.lt.s32.totalorder %s33, 1
        %s2508 = scalar_select %p2507, %s33, 1
        %s2509 = smul.addr %s2508, 2
        %s2510 = smul.addr %s2509, 8
        %s2511 = scalar_lea.vmem %s19, %s2510
      $region112: #{clip_vision_tower_forward.1} parent=107 // pred_fallthru
        _
      // Predicated region
      $region113: #{clip_vision_tower_forward.1} parent=107 // pred_check
        %p2512 = pneg %p486
      $region114: #{clip_vision_tower_forward.1} parent=107 // pred_check_branch
        %2514 = sbr.rel (%p2512) target = $region116
      $region115: #{clip_vision_tower_forward.1} parent=107 // pred_region
        %p2515 = scmp.lt.s32.totalorder %s33, 1
        %s2516 = scalar_select %p2515, %s33, 1
        %s2517 = smul.addr %s2516, 12
        %s2518 = smul.addr %s2517, 8
        %s2519 = scalar_lea.vmem %s20, %s2518
      $region116: #{clip_vision_tower_forward.1} parent=107 // pred_fallthru
        _
    $region108: #{clip_vision_tower_forward.1} parent=5 // pred_fallthru
      _
  $region6: #{clip_vision_tower_forward.1} parent=0 // loop_footer
    %s31 = sadd.s32 1, %s27
  $region7: #{clip_vision_tower_forward.1} parent=0 // loop_footer_branch
    %26 = sbr.rel target = $region3
  $region8: #{clip_vision_tower_forward.1} parent=0 // loop_exit
    _

</llo_original>
